<compile_context>
chip_gen: v7x
topology: tpu7x:2x2x1
jax: 0.10.0
libtpu: 0.0.40
codegen_flags: <defaults>
</compile_context>

<pallas_src>
import jax
import jax.numpy as jnp
from jax.experimental import pallas as pl
from jax.experimental.pallas import tpu as pltpu

_PI = float(jnp.pi)


def _round_up(n, m):
    return ((n + m - 1) // m) * m


def _signed_area(vx, vy):
    """Shoelace signed area of a polygon given as python lists of (1, T) rows."""
    n = len(vx)
    acc = vx[n - 1] * vy[0] - vx[0] * vy[n - 1]
    for i in range(n - 1):
        acc = acc + vx[i] * vy[i + 1] - vx[i + 1] * vy[i]
    return 0.5 * acc


def _corners(cx, cy, hh, ww, sn, cs):
    """Rotated-rectangle corners, same math as IOU.getCorners (CCW order)."""
    wd2 = ww * 0.5
    hd2 = hh * 0.5
    xs = (-wd2, wd2, wd2, -wd2)
    ys = (-hd2, -hd2, hd2, hd2)
    out_x = [cs * xv - sn * yv + cx for xv, yv in zip(xs, ys)]
    out_y = [sn * xv + cs * yv + cy for xv, yv in zip(xs, ys)]
    return out_x, out_y


def _iou_training_kernel(inp_ref, tgt_ref, dist_ref, iou_ref):
    # inp_ref: (4, T) raw network outputs, tgt_ref: (6, T) targets,
    # dist_ref/iou_ref: (1, T) per-box L2 distance and rotated IoU.
    # Batch is on the lane axis -> every op below is lane-dense.

    # de-normalise the network outputs ('training' branch)
    px_c = inp_ref[0:1, :] * 500.0 + 500.0
    py_c = inp_ref[1:2, :] * 500.0 + 500.0
    pw = inp_ref[2:3, :] * 50.0 + 50.0
    theta = inp_ref[3:4, :] * _PI + _PI
    psin = jnp.sin(theta)
    pcos = jnp.cos(theta)

    tx = tgt_ref[0:1, :]
    ty = tgt_ref[1:2, :]
    th = tgt_ref[2:3, :]
    tw = tgt_ref[3:4, :]
    tsin = tgt_ref[4:5, :]
    tcos = tgt_ref[5:6, :]

    ph = th  # inputs[:, 2] = targets[:, 2]  (feature-2 diff is identically 0)

    # per-box L2 distance over the 6 features
    d0 = px_c - tx
    d1 = py_c - ty
    d3 = pw - tw
    d4 = psin - tsin
    d5 = pcos - tcos
    dist_ref[...] = jnp.sqrt(d0 * d0 + d1 * d1 + d3 * d3 + d4 * d4 + d5 * d5)

    # rotated-rectangle corners (kept as python lists of (1, T) lane rows)
    subj_x, subj_y = _corners(px_c, py_c, ph, pw, psin, pcos)   # predicted quad
    clip_x, clip_y = _corners(tx, ty, th, tw, tsin, tcos)       # target quad

    area_subj = jnp.abs(_signed_area(subj_x, subj_y))
    clip_signed = _signed_area(clip_x, clip_y)
    area_clip = jnp.abs(clip_signed)
    # orientation of the clip quad (+1 CCW / -1 CW) so the half-plane test
    # is robust regardless of the quad winding.
    orient = jnp.where(clip_signed >= 0.0, 1.0, -1.0).astype(jnp.float32)

    # Sutherland-Hodgman clip of the predicted quad by the 4 target edges,
    # fully unrolled and vectorized over the lane (batch) axis.  Instead of
    # compacting the vertex list (which would need per-lane scatters), every
    # input edge always emits exactly 2 vertices; the degenerate emissions
    # (duplicates / points placed on the clip line) provably do not change
    # the signed area, so the shoelace of the final vertex list equals the
    # true intersection area.
    cur_x, cur_y = subj_x, subj_y
    for k in range(4):
        kn = (k + 1) % 4
        ax_ = clip_x[k]                    # clip-edge start (lies on clip line)
        ay_ = clip_y[k]
        ex_ = clip_x[kn] - ax_
        ey_ = clip_y[kn] - ay_
        # signed distance (up to a scale) of every current vertex to the clip line
        dvals = [orient * (ex_ * (vy - ay_) - ey_ * (vx - ax_))
                 for vx, vy in zip(cur_x, cur_y)]
        nxt_x, nxt_y = [], []
        n = len(cur_x)
        for i in range(n):
            j = (i + 1) % n
            sx_, sy_, ds_ = cur_x[i], cur_y[i], dvals[i]
            qx_, qy_, de_ = cur_x[j], cur_y[j], dvals[j]
            s_in = ds_ >= 0.0
            e_in = de_ >= 0.0
            crossing = s_in != e_in
            denom = ds_ - de_
            # sign-preserving clamp (only used when crossing, where |denom|>0)
            denom = jnp.where(denom >= 0.0,
                              jnp.maximum(denom, 1e-20),
                              jnp.minimum(denom, -1e-20))
            t = ds_ / denom
            ix_ = sx_ + t * (qx_ - sx_)
            iy_ = sy_ + t * (qy_ - sy_)
            # slot 0: crossing -> intersection; both-in -> end vertex;
            #         both-out -> a point on the clip line (area-neutral)
            s0x = jnp.where(crossing, ix_, jnp.where(s_in, qx_, ax_))
            s0y = jnp.where(crossing, iy_, jnp.where(s_in, qy_, ay_))
            # slot 1: end vertex if inside; else intersection (exit) or line point
            s1x = jnp.where(e_in, qx_, jnp.where(s_in, ix_, ax_))
            s1y = jnp.where(e_in, qy_, jnp.where(s_in, iy_, ay_))
            nxt_x += [s0x, s1x]
            nxt_y += [s0y, s1y]
        cur_x, cur_y = nxt_x, nxt_y

    inter = jnp.abs(_signed_area(cur_x, cur_y))
    union = jnp.maximum(area_subj + area_clip - inter, 1e-12)
    iou_ref[...] = inter * pl.reciprocal(union, approx=True)


def _run_kernel(inp_t, tgt_t, tile_b):
    b_pad = inp_t.shape[1]
    grid = (b_pad // tile_b,)
    return pl.pallas_call(
        _iou_training_kernel,
        out_shape=(
            jax.ShapeDtypeStruct((1, b_pad), jnp.float32),   # per-box distance
            jax.ShapeDtypeStruct((1, b_pad), jnp.float32),   # per-box IoU
        ),
        grid=grid,
        in_specs=[
            pl.BlockSpec((4, tile_b), lambda i: (0, i)),
            pl.BlockSpec((6, tile_b), lambda i: (0, i)),
        ],
        out_specs=(
            pl.BlockSpec((1, tile_b), lambda i: (0, i)),
            pl.BlockSpec((1, tile_b), lambda i: (0, i)),
        ),
        compiler_params=pltpu.CompilerParams(
            dimension_semantics=("parallel",)),
    )(inp_t, tgt_t)


@jax.jit
def iou_training(inputs_, targets):
    """Equivalent of IOU.forward(inputs_, targets, flag='training')."""
    b = targets.shape[0]
    inp_t = inputs_.astype(jnp.float32).T        # (4, B)
    tgt_t = targets.astype(jnp.float32).T        # (6, B)

    # lane-dense padding / tiling of the batch axis
    if b <= 512:
        b_pad = _round_up(b, 128)
        tile_b = b_pad
    else:
        tile_b = 512
        b_pad = _round_up(b, tile_b)
    pad = b_pad - b
    inp_t = jnp.pad(inp_t, ((0, 0), (0, pad)))
    tgt_t = jnp.pad(tgt_t, ((0, 0), (0, pad)))

    dist, ious = _run_kernel(inp_t, tgt_t, tile_b)   # each (1, b_pad)

    mask = jnp.arange(b_pad) < b
    loss = jnp.sum(jnp.where(mask, dist[0], 0.0)) / b
    iou_mean = jnp.sum(jnp.where(mask, ious[0], 0.0)) / b
    iou_max = jnp.max(jnp.where(mask, ious[0], -jnp.inf))
    return loss, iou_mean, iou_max

# TODO(synk): 'validation' branch not implemented (data-dependent Python control
# flow + cross-indexing of inputs_ by the best-box index; no clean static form).


if __name__ == "__main__":
    key = jax.random.PRNGKey(0)
    k1, k2, k3 = jax.random.split(key, 3)

    B = 8
    # raw network outputs in (-0.8, 0.8) like a squashed regression head
    inputs_ = jax.random.uniform(k1, (B, 4), minval=-0.8, maxval=0.8,
                                 dtype=jnp.float32)
    # synthetic targets: [x, y, h, w, sin(theta), cos(theta)]
    theta_t = jax.random.uniform(k2, (B,), minval=0.0, maxval=2.0 * _PI,
                                 dtype=jnp.float32)
    xy_t = jax.random.uniform(k3, (B, 2), minval=300.0, maxval=700.0,
                              dtype=jnp.float32)
    h_t = jnp.full((B, 1), 60.0, jnp.float32)
    w_t = jnp.full((B, 1), 40.0, jnp.float32)
    targets = jnp.concatenate(
        [xy_t, h_t, w_t, jnp.sin(theta_t)[:, None], jnp.cos(theta_t)[:, None]],
        axis=1)

    loss, iou_mean, iou_max = iou_training(inputs_, targets)
    jax.block_until_ready((loss, iou_mean, iou_max))

    # sanity checks: loss matches a pure-JAX reference, IoU values are sane
    inputs_full = jnp.stack(
        [inputs_[:, 0] * 500.0 + 500.0,
         inputs_[:, 1] * 500.0 + 500.0,
         targets[:, 2],
         inputs_[:, 2] * 50.0 + 50.0,
         jnp.sin(inputs_[:, 3] * _PI + _PI),
         jnp.cos(inputs_[:, 3] * _PI + _PI)], axis=1)
    loss_ref = jnp.mean(jnp.sqrt(jnp.sum((inputs_full - targets) ** 2, axis=1)))
    assert jnp.isfinite(loss) and jnp.isfinite(iou_mean) and jnp.isfinite(iou_max)
    assert abs(float(loss) - float(loss_ref)) <= 1e-2 * max(1.0, float(loss_ref))
    assert -1e-6 <= float(iou_mean) <= 1.0 + 1e-2
    assert -1e-6 <= float(iou_max) <= 1.0 + 1e-2

    print("KERNEL_OK")
</pallas_src>

<mosaic_0001>
module attributes {stable_mosaic.version = 11 : i64} {
  func.func @_iou_training_kernel(%arg0: i32, %arg1: memref<4x128xf32, #tpu.memory_space<vmem>>, %arg2: memref<6x128xf32, #tpu.memory_space<vmem>>, %arg3: memref<1x128xf32, #tpu.memory_space<vmem>>, %arg4: memref<1x128xf32, #tpu.memory_space<vmem>>) attributes {dimension_semantics = [#tpu.dimension_semantics<parallel>], iteration_bounds = array<i64: 1>, scalar_prefetch = 0 : i64, scratch_operands = 0 : i64, tpu.core_type = #tpu.core_type<tc>, window_params = [{transform_indices = @transform_0, window_bounds = array<i64: 4, 128>}, {transform_indices = @transform_1, window_bounds = array<i64: 6, 128>}, {transform_indices = @transform_2, window_bounds = array<i64: 1, 128>}, {transform_indices = @transform_3, window_bounds = array<i64: 1, 128>}]} {
    %c0 = arith.constant 0 : index
    %c0_0 = arith.constant 0 : index
    %0 = vector.load %arg1[%c0, %c0_0] : memref<4x128xf32, #tpu.memory_space<vmem>>, vector<1x128xf32>
    %cst = arith.constant 5.000000e+02 : f32
    %1 = vector.broadcast %cst : f32 to vector<1x128xf32>
    %2 = arith.mulf %0, %1 : vector<1x128xf32>
    %cst_1 = arith.constant 5.000000e+02 : f32
    %3 = vector.broadcast %cst_1 : f32 to vector<1x128xf32>
    %4 = arith.addf %2, %3 : vector<1x128xf32>
    %c1 = arith.constant 1 : index
    %c0_2 = arith.constant 0 : index
    %5 = vector.load %arg1[%c1, %c0_2] : memref<4x128xf32, #tpu.memory_space<vmem>>, vector<1x128xf32>
    %cst_3 = arith.constant 5.000000e+02 : f32
    %6 = vector.broadcast %cst_3 : f32 to vector<1x128xf32>
    %7 = arith.mulf %5, %6 : vector<1x128xf32>
    %cst_4 = arith.constant 5.000000e+02 : f32
    %8 = vector.broadcast %cst_4 : f32 to vector<1x128xf32>
    %9 = arith.addf %7, %8 : vector<1x128xf32>
    %c2 = arith.constant 2 : index
    %c0_5 = arith.constant 0 : index
    %10 = vector.load %arg1[%c2, %c0_5] : memref<4x128xf32, #tpu.memory_space<vmem>>, vector<1x128xf32>
    %cst_6 = arith.constant 5.000000e+01 : f32
    %11 = vector.broadcast %cst_6 : f32 to vector<1x128xf32>
    %12 = arith.mulf %10, %11 : vector<1x128xf32>
    %cst_7 = arith.constant 5.000000e+01 : f32
    %13 = vector.broadcast %cst_7 : f32 to vector<1x128xf32>
    %14 = arith.addf %12, %13 : vector<1x128xf32>
    %c3 = arith.constant 3 : index
    %c0_8 = arith.constant 0 : index
    %15 = vector.load %arg1[%c3, %c0_8] : memref<4x128xf32, #tpu.memory_space<vmem>>, vector<1x128xf32>
    %cst_9 = arith.constant 3.14159274 : f32
    %16 = vector.broadcast %cst_9 : f32 to vector<1x128xf32>
    %17 = arith.mulf %15, %16 : vector<1x128xf32>
    %cst_10 = arith.constant 3.14159274 : f32
    %18 = vector.broadcast %cst_10 : f32 to vector<1x128xf32>
    %19 = arith.addf %17, %18 : vector<1x128xf32>
    %20 = math.sin %19 : vector<1x128xf32>
    %21 = math.cos %19 : vector<1x128xf32>
    %c0_11 = arith.constant 0 : index
    %c0_12 = arith.constant 0 : index
    %22 = vector.load %arg2[%c0_11, %c0_12] : memref<6x128xf32, #tpu.memory_space<vmem>>, vector<1x128xf32>
    %c1_13 = arith.constant 1 : index
    %c0_14 = arith.constant 0 : index
    %23 = vector.load %arg2[%c1_13, %c0_14] : memref<6x128xf32, #tpu.memory_space<vmem>>, vector<1x128xf32>
    %c2_15 = arith.constant 2 : index
    %c0_16 = arith.constant 0 : index
    %24 = vector.load %arg2[%c2_15, %c0_16] : memref<6x128xf32, #tpu.memory_space<vmem>>, vector<1x128xf32>
    %c3_17 = arith.constant 3 : index
    %c0_18 = arith.constant 0 : index
    %25 = vector.load %arg2[%c3_17, %c0_18] : memref<6x128xf32, #tpu.memory_space<vmem>>, vector<1x128xf32>
    %c4 = arith.constant 4 : index
    %c0_19 = arith.constant 0 : index
    %26 = vector.load %arg2[%c4, %c0_19] : memref<6x128xf32, #tpu.memory_space<vmem>>, vector<1x128xf32>
    %c5 = arith.constant 5 : index
    %c0_20 = arith.constant 0 : index
    %27 = vector.load %arg2[%c5, %c0_20] : memref<6x128xf32, #tpu.memory_space<vmem>>, vector<1x128xf32>
    %28 = arith.subf %4, %22 : vector<1x128xf32>
    %29 = arith.subf %9, %23 : vector<1x128xf32>
    %30 = arith.subf %14, %25 : vector<1x128xf32>
    %31 = arith.subf %20, %26 : vector<1x128xf32>
    %32 = arith.subf %21, %27 : vector<1x128xf32>
    %33 = arith.mulf %28, %28 : vector<1x128xf32>
    %34 = arith.mulf %29, %29 : vector<1x128xf32>
    %35 = arith.addf %33, %34 : vector<1x128xf32>
    %36 = arith.mulf %30, %30 : vector<1x128xf32>
    %37 = arith.addf %35, %36 : vector<1x128xf32>
    %38 = arith.mulf %31, %31 : vector<1x128xf32>
    %39 = arith.addf %37, %38 : vector<1x128xf32>
    %40 = arith.mulf %32, %32 : vector<1x128xf32>
    %41 = arith.addf %39, %40 : vector<1x128xf32>
    %42 = math.sqrt %41 : vector<1x128xf32>
    %c0_21 = arith.constant 0 : index
    %c0_22 = arith.constant 0 : index
    %43 = vector.load %arg3[%c0_21, %c0_22] : memref<1x128xf32, #tpu.memory_space<vmem>>, vector<1x128xf32>
    tpu.vector_store %arg3[%c0_21, %c0_22], %42 {strides = array<i32>} : memref<1x128xf32, #tpu.memory_space<vmem>>, vector<1x128xf32>,
    %cst_23 = arith.constant 5.000000e-01 : f32
    %44 = vector.broadcast %cst_23 : f32 to vector<1x128xf32>
    %45 = arith.mulf %14, %44 : vector<1x128xf32>
    %cst_24 = arith.constant 5.000000e-01 : f32
    %46 = vector.broadcast %cst_24 : f32 to vector<1x128xf32>
    %47 = arith.mulf %24, %46 : vector<1x128xf32>
    %cst_25 = arith.constant 0.000000e+00 : f32
    %48 = vector.broadcast %cst_25 : f32 to vector<1x128xf32>
    %49 = arith.subf %48, %45 : vector<1x128xf32>
    %cst_26 = arith.constant 0.000000e+00 : f32
    %50 = vector.broadcast %cst_26 : f32 to vector<1x128xf32>
    %51 = arith.subf %50, %45 : vector<1x128xf32>
    %cst_27 = arith.constant 0.000000e+00 : f32
    %52 = vector.broadcast %cst_27 : f32 to vector<1x128xf32>
    %53 = arith.subf %52, %47 : vector<1x128xf32>
    %cst_28 = arith.constant 0.000000e+00 : f32
    %54 = vector.broadcast %cst_28 : f32 to vector<1x128xf32>
    %55 = arith.subf %54, %47 : vector<1x128xf32>
    %56 = arith.mulf %21, %49 : vector<1x128xf32>
    %57 = arith.mulf %20, %53 : vector<1x128xf32>
    %58 = arith.subf %56, %57 : vector<1x128xf32>
    %59 = arith.addf %58, %4 : vector<1x128xf32>
    %60 = arith.mulf %21, %45 : vector<1x128xf32>
    %61 = arith.mulf %20, %55 : vector<1x128xf32>
    %62 = arith.subf %60, %61 : vector<1x128xf32>
    %63 = arith.addf %62, %4 : vector<1x128xf32>
    %64 = arith.mulf %21, %45 : vector<1x128xf32>
    %65 = arith.mulf %20, %47 : vector<1x128xf32>
    %66 = arith.subf %64, %65 : vector<1x128xf32>
    %67 = arith.addf %66, %4 : vector<1x128xf32>
    %68 = arith.mulf %21, %51 : vector<1x128xf32>
    %69 = arith.mulf %20, %47 : vector<1x128xf32>
    %70 = arith.subf %68, %69 : vector<1x128xf32>
    %71 = arith.addf %70, %4 : vector<1x128xf32>
    %72 = arith.mulf %20, %49 : vector<1x128xf32>
    %73 = arith.mulf %21, %53 : vector<1x128xf32>
    %74 = arith.addf %72, %73 : vector<1x128xf32>
    %75 = arith.addf %74, %9 : vector<1x128xf32>
    %76 = arith.mulf %20, %45 : vector<1x128xf32>
    %77 = arith.mulf %21, %55 : vector<1x128xf32>
    %78 = arith.addf %76, %77 : vector<1x128xf32>
    %79 = arith.addf %78, %9 : vector<1x128xf32>
    %80 = arith.mulf %20, %45 : vector<1x128xf32>
    %81 = arith.mulf %21, %47 : vector<1x128xf32>
    %82 = arith.addf %80, %81 : vector<1x128xf32>
    %83 = arith.addf %82, %9 : vector<1x128xf32>
    %84 = arith.mulf %20, %51 : vector<1x128xf32>
    %85 = arith.mulf %21, %47 : vector<1x128xf32>
    %86 = arith.addf %84, %85 : vector<1x128xf32>
    %87 = arith.addf %86, %9 : vector<1x128xf32>
    %cst_29 = arith.constant 5.000000e-01 : f32
    %88 = vector.broadcast %cst_29 : f32 to vector<1x128xf32>
    %89 = arith.mulf %25, %88 : vector<1x128xf32>
    %cst_30 = arith.constant 5.000000e-01 : f32
    %90 = vector.broadcast %cst_30 : f32 to vector<1x128xf32>
    %91 = arith.mulf %24, %90 : vector<1x128xf32>
    %cst_31 = arith.constant 0.000000e+00 : f32
    %92 = vector.broadcast %cst_31 : f32 to vector<1x128xf32>
    %93 = arith.subf %92, %89 : vector<1x128xf32>
    %cst_32 = arith.constant 0.000000e+00 : f32
    %94 = vector.broadcast %cst_32 : f32 to vector<1x128xf32>
    %95 = arith.subf %94, %89 : vector<1x128xf32>
    %cst_33 = arith.constant 0.000000e+00 : f32
    %96 = vector.broadcast %cst_33 : f32 to vector<1x128xf32>
    %97 = arith.subf %96, %91 : vector<1x128xf32>
    %cst_34 = arith.constant 0.000000e+00 : f32
    %98 = vector.broadcast %cst_34 : f32 to vector<1x128xf32>
    %99 = arith.subf %98, %91 : vector<1x128xf32>
    %100 = arith.mulf %27, %93 : vector<1x128xf32>
    %101 = arith.mulf %26, %97 : vector<1x128xf32>
    %102 = arith.subf %100, %101 : vector<1x128xf32>
    %103 = arith.addf %102, %22 : vector<1x128xf32>
    %104 = arith.mulf %27, %89 : vector<1x128xf32>
    %105 = arith.mulf %26, %99 : vector<1x128xf32>
    %106 = arith.subf %104, %105 : vector<1x128xf32>
    %107 = arith.addf %106, %22 : vector<1x128xf32>
    %108 = arith.mulf %27, %89 : vector<1x128xf32>
    %109 = arith.mulf %26, %91 : vector<1x128xf32>
    %110 = arith.subf %108, %109 : vector<1x128xf32>
    %111 = arith.addf %110, %22 : vector<1x128xf32>
    %112 = arith.mulf %27, %95 : vector<1x128xf32>
    %113 = arith.mulf %26, %91 : vector<1x128xf32>
    %114 = arith.subf %112, %113 : vector<1x128xf32>
    %115 = arith.addf %114, %22 : vector<1x128xf32>
    %116 = arith.mulf %26, %93 : vector<1x128xf32>
    %117 = arith.mulf %27, %97 : vector<1x128xf32>
    %118 = arith.addf %116, %117 : vector<1x128xf32>
    %119 = arith.addf %118, %23 : vector<1x128xf32>
    %120 = arith.mulf %26, %89 : vector<1x128xf32>
    %121 = arith.mulf %27, %99 : vector<1x128xf32>
    %122 = arith.addf %120, %121 : vector<1x128xf32>
    %123 = arith.addf %122, %23 : vector<1x128xf32>
    %124 = arith.mulf %26, %89 : vector<1x128xf32>
    %125 = arith.mulf %27, %91 : vector<1x128xf32>
    %126 = arith.addf %124, %125 : vector<1x128xf32>
    %127 = arith.addf %126, %23 : vector<1x128xf32>
    %128 = arith.mulf %26, %95 : vector<1x128xf32>
    %129 = arith.mulf %27, %91 : vector<1x128xf32>
    %130 = arith.addf %128, %129 : vector<1x128xf32>
    %131 = arith.addf %130, %23 : vector<1x128xf32>
    %132 = arith.mulf %71, %75 : vector<1x128xf32>
    %133 = arith.mulf %59, %87 : vector<1x128xf32>
    %134 = arith.subf %132, %133 : vector<1x128xf32>
    %135 = arith.mulf %59, %79 : vector<1x128xf32>
    %136 = arith.addf %134, %135 : vector<1x128xf32>
    %137 = arith.mulf %63, %75 : vector<1x128xf32>
    %138 = arith.subf %136, %137 : vector<1x128xf32>
    %139 = arith.mulf %63, %83 : vector<1x128xf32>
    %140 = arith.addf %138, %139 : vector<1x128xf32>
    %141 = arith.mulf %67, %79 : vector<1x128xf32>
    %142 = arith.subf %140, %141 : vector<1x128xf32>
    %143 = arith.mulf %67, %87 : vector<1x128xf32>
    %144 = arith.addf %142, %143 : vector<1x128xf32>
    %145 = arith.mulf %71, %83 : vector<1x128xf32>
    %146 = arith.subf %144, %145 : vector<1x128xf32>
    %cst_35 = arith.constant 5.000000e-01 : f32
    %147 = vector.broadcast %cst_35 : f32 to vector<1x128xf32>
    %148 = arith.mulf %147, %146 : vector<1x128xf32>
    %149 = math.absf %148 : vector<1x128xf32>
    %150 = arith.mulf %115, %119 : vector<1x128xf32>
    %151 = arith.mulf %103, %131 : vector<1x128xf32>
    %152 = arith.subf %150, %151 : vector<1x128xf32>
    %153 = arith.mulf %103, %123 : vector<1x128xf32>
    %154 = arith.addf %152, %153 : vector<1x128xf32>
    %155 = arith.mulf %107, %119 : vector<1x128xf32>
    %156 = arith.subf %154, %155 : vector<1x128xf32>
    %157 = arith.mulf %107, %127 : vector<1x128xf32>
    %158 = arith.addf %156, %157 : vector<1x128xf32>
    %159 = arith.mulf %111, %123 : vector<1x128xf32>
    %160 = arith.subf %158, %159 : vector<1x128xf32>
    %161 = arith.mulf %111, %131 : vector<1x128xf32>
    %162 = arith.addf %160, %161 : vector<1x128xf32>
    %163 = arith.mulf %115, %127 : vector<1x128xf32>
    %164 = arith.subf %162, %163 : vector<1x128xf32>
    %cst_36 = arith.constant 5.000000e-01 : f32
    %165 = vector.broadcast %cst_36 : f32 to vector<1x128xf32>
    %166 = arith.mulf %165, %164 : vector<1x128xf32>
    %167 = math.absf %166 : vector<1x128xf32>
    %cst_37 = arith.constant 0.000000e+00 : f32
    %168 = vector.broadcast %cst_37 : f32 to vector<1x128xf32>
    %169 = arith.cmpf oge, %166, %168 : vector<1x128xf32>
    %cst_38 = arith.constant 1.000000e+00 : f32
    %cst_39 = arith.constant -1.000000e+00 : f32
    %170 = vector.broadcast %cst_38 : f32 to vector<1x128xf32>
    %171 = vector.broadcast %cst_39 : f32 to vector<1x128xf32>
    %172 = arith.select %169, %170, %171 : vector<1x128xi1>, vector<1x128xf32>
    %173 = arith.subf %107, %103 : vector<1x128xf32>
    %174 = arith.subf %123, %119 : vector<1x128xf32>
    %175 = arith.subf %75, %119 : vector<1x128xf32>
    %176 = arith.mulf %173, %175 : vector<1x128xf32>
    %177 = arith.subf %59, %103 : vector<1x128xf32>
    %178 = arith.mulf %174, %177 : vector<1x128xf32>
    %179 = arith.subf %176, %178 : vector<1x128xf32>
    %180 = arith.mulf %172, %179 : vector<1x128xf32>
    %181 = arith.subf %79, %119 : vector<1x128xf32>
    %182 = arith.mulf %173, %181 : vector<1x128xf32>
    %183 = arith.subf %63, %103 : vector<1x128xf32>
    %184 = arith.mulf %174, %183 : vector<1x128xf32>
    %185 = arith.subf %182, %184 : vector<1x128xf32>
    %186 = arith.mulf %172, %185 : vector<1x128xf32>
    %187 = arith.subf %83, %119 : vector<1x128xf32>
    %188 = arith.mulf %173, %187 : vector<1x128xf32>
    %189 = arith.subf %67, %103 : vector<1x128xf32>
    %190 = arith.mulf %174, %189 : vector<1x128xf32>
    %191 = arith.subf %188, %190 : vector<1x128xf32>
    %192 = arith.mulf %172, %191 : vector<1x128xf32>
    %193 = arith.subf %87, %119 : vector<1x128xf32>
    %194 = arith.mulf %173, %193 : vector<1x128xf32>
    %195 = arith.subf %71, %103 : vector<1x128xf32>
    %196 = arith.mulf %174, %195 : vector<1x128xf32>
    %197 = arith.subf %194, %196 : vector<1x128xf32>
    %198 = arith.mulf %172, %197 : vector<1x128xf32>
    %cst_40 = arith.constant 0.000000e+00 : f32
    %199 = vector.broadcast %cst_40 : f32 to vector<1x128xf32>
    %200 = arith.cmpf oge, %180, %199 : vector<1x128xf32>
    %cst_41 = arith.constant 0.000000e+00 : f32
    %201 = vector.broadcast %cst_41 : f32 to vector<1x128xf32>
    %202 = arith.cmpf oge, %186, %201 : vector<1x128xf32>
    %203 = arith.xori %200, %202 : vector<1x128xi1>
    %204 = arith.subf %180, %186 : vector<1x128xf32>
    %cst_42 = arith.constant 0.000000e+00 : f32
    %205 = vector.broadcast %cst_42 : f32 to vector<1x128xf32>
    %206 = arith.cmpf oge, %204, %205 : vector<1x128xf32>
    %cst_43 = arith.constant 9.99999968E-21 : f32
    %207 = vector.broadcast %cst_43 : f32 to vector<1x128xf32>
    %208 = arith.maximumf %204, %207 : vector<1x128xf32>
    %cst_44 = arith.constant -9.99999968E-21 : f32
    %209 = vector.broadcast %cst_44 : f32 to vector<1x128xf32>
    %210 = arith.minimumf %204, %209 : vector<1x128xf32>
    %211 = arith.select %206, %208, %210 : vector<1x128xi1>, vector<1x128xf32>
    %212 = arith.divf %180, %211 : vector<1x128xf32>
    %213 = arith.subf %63, %59 : vector<1x128xf32>
    %214 = arith.mulf %212, %213 : vector<1x128xf32>
    %215 = arith.addf %59, %214 : vector<1x128xf32>
    %216 = arith.subf %79, %75 : vector<1x128xf32>
    %217 = arith.mulf %212, %216 : vector<1x128xf32>
    %218 = arith.addf %75, %217 : vector<1x128xf32>
    %219 = arith.select %200, %63, %103 : vector<1x128xi1>, vector<1x128xf32>
    %220 = arith.select %203, %215, %219 : vector<1x128xi1>, vector<1x128xf32>
    %221 = arith.select %200, %79, %119 : vector<1x128xi1>, vector<1x128xf32>
    %222 = arith.select %203, %218, %221 : vector<1x128xi1>, vector<1x128xf32>
    %223 = arith.select %200, %215, %103 : vector<1x128xi1>, vector<1x128xf32>
    %224 = arith.select %202, %63, %223 : vector<1x128xi1>, vector<1x128xf32>
    %225 = arith.select %200, %218, %119 : vector<1x128xi1>, vector<1x128xf32>
    %226 = arith.select %202, %79, %225 : vector<1x128xi1>, vector<1x128xf32>
    %cst_45 = arith.constant 0.000000e+00 : f32
    %227 = vector.broadcast %cst_45 : f32 to vector<1x128xf32>
    %228 = arith.cmpf oge, %186, %227 : vector<1x128xf32>
    %cst_46 = arith.constant 0.000000e+00 : f32
    %229 = vector.broadcast %cst_46 : f32 to vector<1x128xf32>
    %230 = arith.cmpf oge, %192, %229 : vector<1x128xf32>
    %231 = arith.xori %228, %230 : vector<1x128xi1>
    %232 = arith.subf %186, %192 : vector<1x128xf32>
    %cst_47 = arith.constant 0.000000e+00 : f32
    %233 = vector.broadcast %cst_47 : f32 to vector<1x128xf32>
    %234 = arith.cmpf oge, %232, %233 : vector<1x128xf32>
    %cst_48 = arith.constant 9.99999968E-21 : f32
    %235 = vector.broadcast %cst_48 : f32 to vector<1x128xf32>
    %236 = arith.maximumf %232, %235 : vector<1x128xf32>
    %cst_49 = arith.constant -9.99999968E-21 : f32
    %237 = vector.broadcast %cst_49 : f32 to vector<1x128xf32>
    %238 = arith.minimumf %232, %237 : vector<1x128xf32>
    %239 = arith.select %234, %236, %238 : vector<1x128xi1>, vector<1x128xf32>
    %240 = arith.divf %186, %239 : vector<1x128xf32>
    %241 = arith.subf %67, %63 : vector<1x128xf32>
    %242 = arith.mulf %240, %241 : vector<1x128xf32>
    %243 = arith.addf %63, %242 : vector<1x128xf32>
    %244 = arith.subf %83, %79 : vector<1x128xf32>
    %245 = arith.mulf %240, %244 : vector<1x128xf32>
    %246 = arith.addf %79, %245 : vector<1x128xf32>
    %247 = arith.select %228, %67, %103 : vector<1x128xi1>, vector<1x128xf32>
    %248 = arith.select %231, %243, %247 : vector<1x128xi1>, vector<1x128xf32>
    %249 = arith.select %228, %83, %119 : vector<1x128xi1>, vector<1x128xf32>
    %250 = arith.select %231, %246, %249 : vector<1x128xi1>, vector<1x128xf32>
    %251 = arith.select %228, %243, %103 : vector<1x128xi1>, vector<1x128xf32>
    %252 = arith.select %230, %67, %251 : vector<1x128xi1>, vector<1x128xf32>
    %253 = arith.select %228, %246, %119 : vector<1x128xi1>, vector<1x128xf32>
    %254 = arith.select %230, %83, %253 : vector<1x128xi1>, vector<1x128xf32>
    %cst_50 = arith.constant 0.000000e+00 : f32
    %255 = vector.broadcast %cst_50 : f32 to vector<1x128xf32>
    %256 = arith.cmpf oge, %192, %255 : vector<1x128xf32>
    %cst_51 = arith.constant 0.000000e+00 : f32
    %257 = vector.broadcast %cst_51 : f32 to vector<1x128xf32>
    %258 = arith.cmpf oge, %198, %257 : vector<1x128xf32>
    %259 = arith.xori %256, %258 : vector<1x128xi1>
    %260 = arith.subf %192, %198 : vector<1x128xf32>
    %cst_52 = arith.constant 0.000000e+00 : f32
    %261 = vector.broadcast %cst_52 : f32 to vector<1x128xf32>
    %262 = arith.cmpf oge, %260, %261 : vector<1x128xf32>
    %cst_53 = arith.constant 9.99999968E-21 : f32
    %263 = vector.broadcast %cst_53 : f32 to vector<1x128xf32>
    %264 = arith.maximumf %260, %263 : vector<1x128xf32>
    %cst_54 = arith.constant -9.99999968E-21 : f32
    %265 = vector.broadcast %cst_54 : f32 to vector<1x128xf32>
    %266 = arith.minimumf %260, %265 : vector<1x128xf32>
    %267 = arith.select %262, %264, %266 : vector<1x128xi1>, vector<1x128xf32>
    %268 = arith.divf %192, %267 : vector<1x128xf32>
    %269 = arith.subf %71, %67 : vector<1x128xf32>
    %270 = arith.mulf %268, %269 : vector<1x128xf32>
    %271 = arith.addf %67, %270 : vector<1x128xf32>
    %272 = arith.subf %87, %83 : vector<1x128xf32>
    %273 = arith.mulf %268, %272 : vector<1x128xf32>
    %274 = arith.addf %83, %273 : vector<1x128xf32>
    %275 = arith.select %256, %71, %103 : vector<1x128xi1>, vector<1x128xf32>
    %276 = arith.select %259, %271, %275 : vector<1x128xi1>, vector<1x128xf32>
    %277 = arith.select %256, %87, %119 : vector<1x128xi1>, vector<1x128xf32>
    %278 = arith.select %259, %274, %277 : vector<1x128xi1>, vector<1x128xf32>
    %279 = arith.select %256, %271, %103 : vector<1x128xi1>, vector<1x128xf32>
    %280 = arith.select %258, %71, %279 : vector<1x128xi1>, vector<1x128xf32>
    %281 = arith.select %256, %274, %119 : vector<1x128xi1>, vector<1x128xf32>
    %282 = arith.select %258, %87, %281 : vector<1x128xi1>, vector<1x128xf32>
    %cst_55 = arith.constant 0.000000e+00 : f32
    %283 = vector.broadcast %cst_55 : f32 to vector<1x128xf32>
    %284 = arith.cmpf oge, %198, %283 : vector<1x128xf32>
    %cst_56 = arith.constant 0.000000e+00 : f32
    %285 = vector.broadcast %cst_56 : f32 to vector<1x128xf32>
    %286 = arith.cmpf oge, %180, %285 : vector<1x128xf32>
    %287 = arith.xori %284, %286 : vector<1x128xi1>
    %288 = arith.subf %198, %180 : vector<1x128xf32>
    %cst_57 = arith.constant 0.000000e+00 : f32
    %289 = vector.broadcast %cst_57 : f32 to vector<1x128xf32>
    %290 = arith.cmpf oge, %288, %289 : vector<1x128xf32>
    %cst_58 = arith.constant 9.99999968E-21 : f32
    %291 = vector.broadcast %cst_58 : f32 to vector<1x128xf32>
    %292 = arith.maximumf %288, %291 : vector<1x128xf32>
    %cst_59 = arith.constant -9.99999968E-21 : f32
    %293 = vector.broadcast %cst_59 : f32 to vector<1x128xf32>
    %294 = arith.minimumf %288, %293 : vector<1x128xf32>
    %295 = arith.select %290, %292, %294 : vector<1x128xi1>, vector<1x128xf32>
    %296 = arith.divf %198, %295 : vector<1x128xf32>
    %297 = arith.subf %59, %71 : vector<1x128xf32>
    %298 = arith.mulf %296, %297 : vector<1x128xf32>
    %299 = arith.addf %71, %298 : vector<1x128xf32>
    %300 = arith.subf %75, %87 : vector<1x128xf32>
    %301 = arith.mulf %296, %300 : vector<1x128xf32>
    %302 = arith.addf %87, %301 : vector<1x128xf32>
    %303 = arith.select %284, %59, %103 : vector<1x128xi1>, vector<1x128xf32>
    %304 = arith.select %287, %299, %303 : vector<1x128xi1>, vector<1x128xf32>
    %305 = arith.select %284, %75, %119 : vector<1x128xi1>, vector<1x128xf32>
    %306 = arith.select %287, %302, %305 : vector<1x128xi1>, vector<1x128xf32>
    %307 = arith.select %284, %299, %103 : vector<1x128xi1>, vector<1x128xf32>
    %308 = arith.select %286, %59, %307 : vector<1x128xi1>, vector<1x128xf32>
    %309 = arith.select %284, %302, %119 : vector<1x128xi1>, vector<1x128xf32>
    %310 = arith.select %286, %75, %309 : vector<1x128xi1>, vector<1x128xf32>
    %311 = arith.subf %111, %107 : vector<1x128xf32>
    %312 = arith.subf %127, %123 : vector<1x128xf32>
    %313 = arith.subf %222, %123 : vector<1x128xf32>
    %314 = arith.mulf %311, %313 : vector<1x128xf32>
    %315 = arith.subf %220, %107 : vector<1x128xf32>
    %316 = arith.mulf %312, %315 : vector<1x128xf32>
    %317 = arith.subf %314, %316 : vector<1x128xf32>
    %318 = arith.mulf %172, %317 : vector<1x128xf32>
    %319 = arith.subf %226, %123 : vector<1x128xf32>
    %320 = arith.mulf %311, %319 : vector<1x128xf32>
    %321 = arith.subf %224, %107 : vector<1x128xf32>
    %322 = arith.mulf %312, %321 : vector<1x128xf32>
    %323 = arith.subf %320, %322 : vector<1x128xf32>
    %324 = arith.mulf %172, %323 : vector<1x128xf32>
    %325 = arith.subf %250, %123 : vector<1x128xf32>
    %326 = arith.mulf %311, %325 : vector<1x128xf32>
    %327 = arith.subf %248, %107 : vector<1x128xf32>
    %328 = arith.mulf %312, %327 : vector<1x128xf32>
    %329 = arith.subf %326, %328 : vector<1x128xf32>
    %330 = arith.mulf %172, %329 : vector<1x128xf32>
    %331 = arith.subf %254, %123 : vector<1x128xf32>
    %332 = arith.mulf %311, %331 : vector<1x128xf32>
    %333 = arith.subf %252, %107 : vector<1x128xf32>
    %334 = arith.mulf %312, %333 : vector<1x128xf32>
    %335 = arith.subf %332, %334 : vector<1x128xf32>
    %336 = arith.mulf %172, %335 : vector<1x128xf32>
    %337 = arith.subf %278, %123 : vector<1x128xf32>
    %338 = arith.mulf %311, %337 : vector<1x128xf32>
    %339 = arith.subf %276, %107 : vector<1x128xf32>
    %340 = arith.mulf %312, %339 : vector<1x128xf32>
    %341 = arith.subf %338, %340 : vector<1x128xf32>
    %342 = arith.mulf %172, %341 : vector<1x128xf32>
    %343 = arith.subf %282, %123 : vector<1x128xf32>
    %344 = arith.mulf %311, %343 : vector<1x128xf32>
    %345 = arith.subf %280, %107 : vector<1x128xf32>
    %346 = arith.mulf %312, %345 : vector<1x128xf32>
    %347 = arith.subf %344, %346 : vector<1x128xf32>
    %348 = arith.mulf %172, %347 : vector<1x128xf32>
    %349 = arith.subf %306, %123 : vector<1x128xf32>
    %350 = arith.mulf %311, %349 : vector<1x128xf32>
    %351 = arith.subf %304, %107 : vector<1x128xf32>
    %352 = arith.mulf %312, %351 : vector<1x128xf32>
    %353 = arith.subf %350, %352 : vector<1x128xf32>
    %354 = arith.mulf %172, %353 : vector<1x128xf32>
    %355 = arith.subf %310, %123 : vector<1x128xf32>
    %356 = arith.mulf %311, %355 : vector<1x128xf32>
    %357 = arith.subf %308, %107 : vector<1x128xf32>
    %358 = arith.mulf %312, %357 : vector<1x128xf32>
    %359 = arith.subf %356, %358 : vector<1x128xf32>
    %360 = arith.mulf %172, %359 : vector<1x128xf32>
    %cst_60 = arith.constant 0.000000e+00 : f32
    %361 = vector.broadcast %cst_60 : f32 to vector<1x128xf32>
    %362 = arith.cmpf oge, %318, %361 : vector<1x128xf32>
    %cst_61 = arith.constant 0.000000e+00 : f32
    %363 = vector.broadcast %cst_61 : f32 to vector<1x128xf32>
    %364 = arith.cmpf oge, %324, %363 : vector<1x128xf32>
    %365 = arith.xori %362, %364 : vector<1x128xi1>
    %366 = arith.subf %318, %324 : vector<1x128xf32>
    %cst_62 = arith.constant 0.000000e+00 : f32
    %367 = vector.broadcast %cst_62 : f32 to vector<1x128xf32>
    %368 = arith.cmpf oge, %366, %367 : vector<1x128xf32>
    %cst_63 = arith.constant 9.99999968E-21 : f32
    %369 = vector.broadcast %cst_63 : f32 to vector<1x128xf32>
    %370 = arith.maximumf %366, %369 : vector<1x128xf32>
    %cst_64 = arith.constant -9.99999968E-21 : f32
    %371 = vector.broadcast %cst_64 : f32 to vector<1x128xf32>
    %372 = arith.minimumf %366, %371 : vector<1x128xf32>
    %373 = arith.select %368, %370, %372 : vector<1x128xi1>, vector<1x128xf32>
    %374 = arith.divf %318, %373 : vector<1x128xf32>
    %375 = arith.subf %224, %220 : vector<1x128xf32>
    %376 = arith.mulf %374, %375 : vector<1x128xf32>
    %377 = arith.addf %220, %376 : vector<1x128xf32>
    %378 = arith.subf %226, %222 : vector<1x128xf32>
    %379 = arith.mulf %374, %378 : vector<1x128xf32>
    %380 = arith.addf %222, %379 : vector<1x128xf32>
    %381 = arith.select %362, %224, %107 : vector<1x128xi1>, vector<1x128xf32>
    %382 = arith.select %365, %377, %381 : vector<1x128xi1>, vector<1x128xf32>
    %383 = arith.select %362, %226, %123 : vector<1x128xi1>, vector<1x128xf32>
    %384 = arith.select %365, %380, %383 : vector<1x128xi1>, vector<1x128xf32>
    %385 = arith.select %362, %377, %107 : vector<1x128xi1>, vector<1x128xf32>
    %386 = arith.select %364, %224, %385 : vector<1x128xi1>, vector<1x128xf32>
    %387 = arith.select %362, %380, %123 : vector<1x128xi1>, vector<1x128xf32>
    %388 = arith.select %364, %226, %387 : vector<1x128xi1>, vector<1x128xf32>
    %cst_65 = arith.constant 0.000000e+00 : f32
    %389 = vector.broadcast %cst_65 : f32 to vector<1x128xf32>
    %390 = arith.cmpf oge, %324, %389 : vector<1x128xf32>
    %cst_66 = arith.constant 0.000000e+00 : f32
    %391 = vector.broadcast %cst_66 : f32 to vector<1x128xf32>
    %392 = arith.cmpf oge, %330, %391 : vector<1x128xf32>
    %393 = arith.xori %390, %392 : vector<1x128xi1>
    %394 = arith.subf %324, %330 : vector<1x128xf32>
    %cst_67 = arith.constant 0.000000e+00 : f32
    %395 = vector.broadcast %cst_67 : f32 to vector<1x128xf32>
    %396 = arith.cmpf oge, %394, %395 : vector<1x128xf32>
    %cst_68 = arith.constant 9.99999968E-21 : f32
    %397 = vector.broadcast %cst_68 : f32 to vector<1x128xf32>
    %398 = arith.maximumf %394, %397 : vector<1x128xf32>
    %cst_69 = arith.constant -9.99999968E-21 : f32
    %399 = vector.broadcast %cst_69 : f32 to vector<1x128xf32>
    %400 = arith.minimumf %394, %399 : vector<1x128xf32>
    %401 = arith.select %396, %398, %400 : vector<1x128xi1>, vector<1x128xf32>
    %402 = arith.divf %324, %401 : vector<1x128xf32>
    %403 = arith.subf %248, %224 : vector<1x128xf32>
    %404 = arith.mulf %402, %403 : vector<1x128xf32>
    %405 = arith.addf %224, %404 : vector<1x128xf32>
    %406 = arith.subf %250, %226 : vector<1x128xf32>
    %407 = arith.mulf %402, %406 : vector<1x128xf32>
    %408 = arith.addf %226, %407 : vector<1x128xf32>
    %409 = arith.select %390, %248, %107 : vector<1x128xi1>, vector<1x128xf32>
    %410 = arith.select %393, %405, %409 : vector<1x128xi1>, vector<1x128xf32>
    %411 = arith.select %390, %250, %123 : vector<1x128xi1>, vector<1x128xf32>
    %412 = arith.select %393, %408, %411 : vector<1x128xi1>, vector<1x128xf32>
    %413 = arith.select %390, %405, %107 : vector<1x128xi1>, vector<1x128xf32>
    %414 = arith.select %392, %248, %413 : vector<1x128xi1>, vector<1x128xf32>
    %415 = arith.select %390, %408, %123 : vector<1x128xi1>, vector<1x128xf32>
    %416 = arith.select %392, %250, %415 : vector<1x128xi1>, vector<1x128xf32>
    %cst_70 = arith.constant 0.000000e+00 : f32
    %417 = vector.broadcast %cst_70 : f32 to vector<1x128xf32>
    %418 = arith.cmpf oge, %330, %417 : vector<1x128xf32>
    %cst_71 = arith.constant 0.000000e+00 : f32
    %419 = vector.broadcast %cst_71 : f32 to vector<1x128xf32>
    %420 = arith.cmpf oge, %336, %419 : vector<1x128xf32>
    %421 = arith.xori %418, %420 : vector<1x128xi1>
    %422 = arith.subf %330, %336 : vector<1x128xf32>
    %cst_72 = arith.constant 0.000000e+00 : f32
    %423 = vector.broadcast %cst_72 : f32 to vector<1x128xf32>
    %424 = arith.cmpf oge, %422, %423 : vector<1x128xf32>
    %cst_73 = arith.constant 9.99999968E-21 : f32
    %425 = vector.broadcast %cst_73 : f32 to vector<1x128xf32>
    %426 = arith.maximumf %422, %425 : vector<1x128xf32>
    %cst_74 = arith.constant -9.99999968E-21 : f32
    %427 = vector.broadcast %cst_74 : f32 to vector<1x128xf32>
    %428 = arith.minimumf %422, %427 : vector<1x128xf32>
    %429 = arith.select %424, %426, %428 : vector<1x128xi1>, vector<1x128xf32>
    %430 = arith.divf %330, %429 : vector<1x128xf32>
    %431 = arith.subf %252, %248 : vector<1x128xf32>
    %432 = arith.mulf %430, %431 : vector<1x128xf32>
    %433 = arith.addf %248, %432 : vector<1x128xf32>
    %434 = arith.subf %254, %250 : vector<1x128xf32>
    %435 = arith.mulf %430, %434 : vector<1x128xf32>
    %436 = arith.addf %250, %435 : vector<1x128xf32>
    %437 = arith.select %418, %252, %107 : vector<1x128xi1>, vector<1x128xf32>
    %438 = arith.select %421, %433, %437 : vector<1x128xi1>, vector<1x128xf32>
    %439 = arith.select %418, %254, %123 : vector<1x128xi1>, vector<1x128xf32>
    %440 = arith.select %421, %436, %439 : vector<1x128xi1>, vector<1x128xf32>
    %441 = arith.select %418, %433, %107 : vector<1x128xi1>, vector<1x128xf32>
    %442 = arith.select %420, %252, %441 : vector<1x128xi1>, vector<1x128xf32>
    %443 = arith.select %418, %436, %123 : vector<1x128xi1>, vector<1x128xf32>
    %444 = arith.select %420, %254, %443 : vector<1x128xi1>, vector<1x128xf32>
    %cst_75 = arith.constant 0.000000e+00 : f32
    %445 = vector.broadcast %cst_75 : f32 to vector<1x128xf32>
    %446 = arith.cmpf oge, %336, %445 : vector<1x128xf32>
    %cst_76 = arith.constant 0.000000e+00 : f32
    %447 = vector.broadcast %cst_76 : f32 to vector<1x128xf32>
    %448 = arith.cmpf oge, %342, %447 : vector<1x128xf32>
    %449 = arith.xori %446, %448 : vector<1x128xi1>
    %450 = arith.subf %336, %342 : vector<1x128xf32>
    %cst_77 = arith.constant 0.000000e+00 : f32
    %451 = vector.broadcast %cst_77 : f32 to vector<1x128xf32>
    %452 = arith.cmpf oge, %450, %451 : vector<1x128xf32>
    %cst_78 = arith.constant 9.99999968E-21 : f32
    %453 = vector.broadcast %cst_78 : f32 to vector<1x128xf32>
    %454 = arith.maximumf %450, %453 : vector<1x128xf32>
    %cst_79 = arith.constant -9.99999968E-21 : f32
    %455 = vector.broadcast %cst_79 : f32 to vector<1x128xf32>
    %456 = arith.minimumf %450, %455 : vector<1x128xf32>
    %457 = arith.select %452, %454, %456 : vector<1x128xi1>, vector<1x128xf32>
    %458 = arith.divf %336, %457 : vector<1x128xf32>
    %459 = arith.subf %276, %252 : vector<1x128xf32>
    %460 = arith.mulf %458, %459 : vector<1x128xf32>
    %461 = arith.addf %252, %460 : vector<1x128xf32>
    %462 = arith.subf %278, %254 : vector<1x128xf32>
    %463 = arith.mulf %458, %462 : vector<1x128xf32>
    %464 = arith.addf %254, %463 : vector<1x128xf32>
    %465 = arith.select %446, %276, %107 : vector<1x128xi1>, vector<1x128xf32>
    %466 = arith.select %449, %461, %465 : vector<1x128xi1>, vector<1x128xf32>
    %467 = arith.select %446, %278, %123 : vector<1x128xi1>, vector<1x128xf32>
    %468 = arith.select %449, %464, %467 : vector<1x128xi1>, vector<1x128xf32>
    %469 = arith.select %446, %461, %107 : vector<1x128xi1>, vector<1x128xf32>
    %470 = arith.select %448, %276, %469 : vector<1x128xi1>, vector<1x128xf32>
    %471 = arith.select %446, %464, %123 : vector<1x128xi1>, vector<1x128xf32>
    %472 = arith.select %448, %278, %471 : vector<1x128xi1>, vector<1x128xf32>
    %cst_80 = arith.constant 0.000000e+00 : f32
    %473 = vector.broadcast %cst_80 : f32 to vector<1x128xf32>
    %474 = arith.cmpf oge, %342, %473 : vector<1x128xf32>
    %cst_81 = arith.constant 0.000000e+00 : f32
    %475 = vector.broadcast %cst_81 : f32 to vector<1x128xf32>
    %476 = arith.cmpf oge, %348, %475 : vector<1x128xf32>
    %477 = arith.xori %474, %476 : vector<1x128xi1>
    %478 = arith.subf %342, %348 : vector<1x128xf32>
    %cst_82 = arith.constant 0.000000e+00 : f32
    %479 = vector.broadcast %cst_82 : f32 to vector<1x128xf32>
    %480 = arith.cmpf oge, %478, %479 : vector<1x128xf32>
    %cst_83 = arith.constant 9.99999968E-21 : f32
    %481 = vector.broadcast %cst_83 : f32 to vector<1x128xf32>
    %482 = arith.maximumf %478, %481 : vector<1x128xf32>
    %cst_84 = arith.constant -9.99999968E-21 : f32
    %483 = vector.broadcast %cst_84 : f32 to vector<1x128xf32>
    %484 = arith.minimumf %478, %483 : vector<1x128xf32>
    %485 = arith.select %480, %482, %484 : vector<1x128xi1>, vector<1x128xf32>
    %486 = arith.divf %342, %485 : vector<1x128xf32>
    %487 = arith.subf %280, %276 : vector<1x128xf32>
    %488 = arith.mulf %486, %487 : vector<1x128xf32>
    %489 = arith.addf %276, %488 : vector<1x128xf32>
    %490 = arith.subf %282, %278 : vector<1x128xf32>
    %491 = arith.mulf %486, %490 : vector<1x128xf32>
    %492 = arith.addf %278, %491 : vector<1x128xf32>
    %493 = arith.select %474, %280, %107 : vector<1x128xi1>, vector<1x128xf32>
    %494 = arith.select %477, %489, %493 : vector<1x128xi1>, vector<1x128xf32>
    %495 = arith.select %474, %282, %123 : vector<1x128xi1>, vector<1x128xf32>
    %496 = arith.select %477, %492, %495 : vector<1x128xi1>, vector<1x128xf32>
    %497 = arith.select %474, %489, %107 : vector<1x128xi1>, vector<1x128xf32>
    %498 = arith.select %476, %280, %497 : vector<1x128xi1>, vector<1x128xf32>
    %499 = arith.select %474, %492, %123 : vector<1x128xi1>, vector<1x128xf32>
    %500 = arith.select %476, %282, %499 : vector<1x128xi1>, vector<1x128xf32>
    %cst_85 = arith.constant 0.000000e+00 : f32
    %501 = vector.broadcast %cst_85 : f32 to vector<1x128xf32>
    %502 = arith.cmpf oge, %348, %501 : vector<1x128xf32>
    %cst_86 = arith.constant 0.000000e+00 : f32
    %503 = vector.broadcast %cst_86 : f32 to vector<1x128xf32>
    %504 = arith.cmpf oge, %354, %503 : vector<1x128xf32>
    %505 = arith.xori %502, %504 : vector<1x128xi1>
    %506 = arith.subf %348, %354 : vector<1x128xf32>
    %cst_87 = arith.constant 0.000000e+00 : f32
    %507 = vector.broadcast %cst_87 : f32 to vector<1x128xf32>
    %508 = arith.cmpf oge, %506, %507 : vector<1x128xf32>
    %cst_88 = arith.constant 9.99999968E-21 : f32
    %509 = vector.broadcast %cst_88 : f32 to vector<1x128xf32>
    %510 = arith.maximumf %506, %509 : vector<1x128xf32>
    %cst_89 = arith.constant -9.99999968E-21 : f32
    %511 = vector.broadcast %cst_89 : f32 to vector<1x128xf32>
    %512 = arith.minimumf %506, %511 : vector<1x128xf32>
    %513 = arith.select %508, %510, %512 : vector<1x128xi1>, vector<1x128xf32>
    %514 = arith.divf %348, %513 : vector<1x128xf32>
    %515 = arith.subf %304, %280 : vector<1x128xf32>
    %516 = arith.mulf %514, %515 : vector<1x128xf32>
    %517 = arith.addf %280, %516 : vector<1x128xf32>
    %518 = arith.subf %306, %282 : vector<1x128xf32>
    %519 = arith.mulf %514, %518 : vector<1x128xf32>
    %520 = arith.addf %282, %519 : vector<1x128xf32>
    %521 = arith.select %502, %304, %107 : vector<1x128xi1>, vector<1x128xf32>
    %522 = arith.select %505, %517, %521 : vector<1x128xi1>, vector<1x128xf32>
    %523 = arith.select %502, %306, %123 : vector<1x128xi1>, vector<1x128xf32>
    %524 = arith.select %505, %520, %523 : vector<1x128xi1>, vector<1x128xf32>
    %525 = arith.select %502, %517, %107 : vector<1x128xi1>, vector<1x128xf32>
    %526 = arith.select %504, %304, %525 : vector<1x128xi1>, vector<1x128xf32>
    %527 = arith.select %502, %520, %123 : vector<1x128xi1>, vector<1x128xf32>
    %528 = arith.select %504, %306, %527 : vector<1x128xi1>, vector<1x128xf32>
    %cst_90 = arith.constant 0.000000e+00 : f32
    %529 = vector.broadcast %cst_90 : f32 to vector<1x128xf32>
    %530 = arith.cmpf oge, %354, %529 : vector<1x128xf32>
    %cst_91 = arith.constant 0.000000e+00 : f32
    %531 = vector.broadcast %cst_91 : f32 to vector<1x128xf32>
    %532 = arith.cmpf oge, %360, %531 : vector<1x128xf32>
    %533 = arith.xori %530, %532 : vector<1x128xi1>
    %534 = arith.subf %354, %360 : vector<1x128xf32>
    %cst_92 = arith.constant 0.000000e+00 : f32
    %535 = vector.broadcast %cst_92 : f32 to vector<1x128xf32>
    %536 = arith.cmpf oge, %534, %535 : vector<1x128xf32>
    %cst_93 = arith.constant 9.99999968E-21 : f32
    %537 = vector.broadcast %cst_93 : f32 to vector<1x128xf32>
    %538 = arith.maximumf %534, %537 : vector<1x128xf32>
    %cst_94 = arith.constant -9.99999968E-21 : f32
    %539 = vector.broadcast %cst_94 : f32 to vector<1x128xf32>
    %540 = arith.minimumf %534, %539 : vector<1x128xf32>
    %541 = arith.select %536, %538, %540 : vector<1x128xi1>, vector<1x128xf32>
    %542 = arith.divf %354, %541 : vector<1x128xf32>
    %543 = arith.subf %308, %304 : vector<1x128xf32>
    %544 = arith.mulf %542, %543 : vector<1x128xf32>
    %545 = arith.addf %304, %544 : vector<1x128xf32>
    %546 = arith.subf %310, %306 : vector<1x128xf32>
    %547 = arith.mulf %542, %546 : vector<1x128xf32>
    %548 = arith.addf %306, %547 : vector<1x128xf32>
    %549 = arith.select %530, %308, %107 : vector<1x128xi1>, vector<1x128xf32>
    %550 = arith.select %533, %545, %549 : vector<1x128xi1>, vector<1x128xf32>
    %551 = arith.select %530, %310, %123 : vector<1x128xi1>, vector<1x128xf32>
    %552 = arith.select %533, %548, %551 : vector<1x128xi1>, vector<1x128xf32>
    %553 = arith.select %530, %545, %107 : vector<1x128xi1>, vector<1x128xf32>
    %554 = arith.select %532, %308, %553 : vector<1x128xi1>, vector<1x128xf32>
    %555 = arith.select %530, %548, %123 : vector<1x128xi1>, vector<1x128xf32>
    %556 = arith.select %532, %310, %555 : vector<1x128xi1>, vector<1x128xf32>
    %cst_95 = arith.constant 0.000000e+00 : f32
    %557 = vector.broadcast %cst_95 : f32 to vector<1x128xf32>
    %558 = arith.cmpf oge, %360, %557 : vector<1x128xf32>
    %cst_96 = arith.constant 0.000000e+00 : f32
    %559 = vector.broadcast %cst_96 : f32 to vector<1x128xf32>
    %560 = arith.cmpf oge, %318, %559 : vector<1x128xf32>
    %561 = arith.xori %558, %560 : vector<1x128xi1>
    %562 = arith.subf %360, %318 : vector<1x128xf32>
    %cst_97 = arith.constant 0.000000e+00 : f32
    %563 = vector.broadcast %cst_97 : f32 to vector<1x128xf32>
    %564 = arith.cmpf oge, %562, %563 : vector<1x128xf32>
    %cst_98 = arith.constant 9.99999968E-21 : f32
    %565 = vector.broadcast %cst_98 : f32 to vector<1x128xf32>
    %566 = arith.maximumf %562, %565 : vector<1x128xf32>
    %cst_99 = arith.constant -9.99999968E-21 : f32
    %567 = vector.broadcast %cst_99 : f32 to vector<1x128xf32>
    %568 = arith.minimumf %562, %567 : vector<1x128xf32>
    %569 = arith.select %564, %566, %568 : vector<1x128xi1>, vector<1x128xf32>
    %570 = arith.divf %360, %569 : vector<1x128xf32>
    %571 = arith.subf %220, %308 : vector<1x128xf32>
    %572 = arith.mulf %570, %571 : vector<1x128xf32>
    %573 = arith.addf %308, %572 : vector<1x128xf32>
    %574 = arith.subf %222, %310 : vector<1x128xf32>
    %575 = arith.mulf %570, %574 : vector<1x128xf32>
    %576 = arith.addf %310, %575 : vector<1x128xf32>
    %577 = arith.select %558, %220, %107 : vector<1x128xi1>, vector<1x128xf32>
    %578 = arith.select %561, %573, %577 : vector<1x128xi1>, vector<1x128xf32>
    %579 = arith.select %558, %222, %123 : vector<1x128xi1>, vector<1x128xf32>
    %580 = arith.select %561, %576, %579 : vector<1x128xi1>, vector<1x128xf32>
    %581 = arith.select %558, %573, %107 : vector<1x128xi1>, vector<1x128xf32>
    %582 = arith.select %560, %220, %581 : vector<1x128xi1>, vector<1x128xf32>
    %583 = arith.select %558, %576, %123 : vector<1x128xi1>, vector<1x128xf32>
    %584 = arith.select %560, %222, %583 : vector<1x128xi1>, vector<1x128xf32>
    %585 = arith.subf %115, %111 : vector<1x128xf32>
    %586 = arith.subf %131, %127 : vector<1x128xf32>
    %587 = arith.subf %384, %127 : vector<1x128xf32>
    %588 = arith.mulf %585, %587 : vector<1x128xf32>
    %589 = arith.subf %382, %111 : vector<1x128xf32>
    %590 = arith.mulf %586, %589 : vector<1x128xf32>
    %591 = arith.subf %588, %590 : vector<1x128xf32>
    %592 = arith.mulf %172, %591 : vector<1x128xf32>
    %593 = arith.subf %388, %127 : vector<1x128xf32>
    %594 = arith.mulf %585, %593 : vector<1x128xf32>
    %595 = arith.subf %386, %111 : vector<1x128xf32>
    %596 = arith.mulf %586, %595 : vector<1x128xf32>
    %597 = arith.subf %594, %596 : vector<1x128xf32>
    %598 = arith.mulf %172, %597 : vector<1x128xf32>
    %599 = arith.subf %412, %127 : vector<1x128xf32>
    %600 = arith.mulf %585, %599 : vector<1x128xf32>
    %601 = arith.subf %410, %111 : vector<1x128xf32>
    %602 = arith.mulf %586, %601 : vector<1x128xf32>
    %603 = arith.subf %600, %602 : vector<1x128xf32>
    %604 = arith.mulf %172, %603 : vector<1x128xf32>
    %605 = arith.subf %416, %127 : vector<1x128xf32>
    %606 = arith.mulf %585, %605 : vector<1x128xf32>
    %607 = arith.subf %414, %111 : vector<1x128xf32>
    %608 = arith.mulf %586, %607 : vector<1x128xf32>
    %609 = arith.subf %606, %608 : vector<1x128xf32>
    %610 = arith.mulf %172, %609 : vector<1x128xf32>
    %611 = arith.subf %440, %127 : vector<1x128xf32>
    %612 = arith.mulf %585, %611 : vector<1x128xf32>
    %613 = arith.subf %438, %111 : vector<1x128xf32>
    %614 = arith.mulf %586, %613 : vector<1x128xf32>
    %615 = arith.subf %612, %614 : vector<1x128xf32>
    %616 = arith.mulf %172, %615 : vector<1x128xf32>
    %617 = arith.subf %444, %127 : vector<1x128xf32>
    %618 = arith.mulf %585, %617 : vector<1x128xf32>
    %619 = arith.subf %442, %111 : vector<1x128xf32>
    %620 = arith.mulf %586, %619 : vector<1x128xf32>
    %621 = arith.subf %618, %620 : vector<1x128xf32>
    %622 = arith.mulf %172, %621 : vector<1x128xf32>
    %623 = arith.subf %468, %127 : vector<1x128xf32>
    %624 = arith.mulf %585, %623 : vector<1x128xf32>
    %625 = arith.subf %466, %111 : vector<1x128xf32>
    %626 = arith.mulf %586, %625 : vector<1x128xf32>
    %627 = arith.subf %624, %626 : vector<1x128xf32>
    %628 = arith.mulf %172, %627 : vector<1x128xf32>
    %629 = arith.subf %472, %127 : vector<1x128xf32>
    %630 = arith.mulf %585, %629 : vector<1x128xf32>
    %631 = arith.subf %470, %111 : vector<1x128xf32>
    %632 = arith.mulf %586, %631 : vector<1x128xf32>
    %633 = arith.subf %630, %632 : vector<1x128xf32>
    %634 = arith.mulf %172, %633 : vector<1x128xf32>
    %635 = arith.subf %496, %127 : vector<1x128xf32>
    %636 = arith.mulf %585, %635 : vector<1x128xf32>
    %637 = arith.subf %494, %111 : vector<1x128xf32>
    %638 = arith.mulf %586, %637 : vector<1x128xf32>
    %639 = arith.subf %636, %638 : vector<1x128xf32>
    %640 = arith.mulf %172, %639 : vector<1x128xf32>
    %641 = arith.subf %500, %127 : vector<1x128xf32>
    %642 = arith.mulf %585, %641 : vector<1x128xf32>
    %643 = arith.subf %498, %111 : vector<1x128xf32>
    %644 = arith.mulf %586, %643 : vector<1x128xf32>
    %645 = arith.subf %642, %644 : vector<1x128xf32>
    %646 = arith.mulf %172, %645 : vector<1x128xf32>
    %647 = arith.subf %524, %127 : vector<1x128xf32>
    %648 = arith.mulf %585, %647 : vector<1x128xf32>
    %649 = arith.subf %522, %111 : vector<1x128xf32>
    %650 = arith.mulf %586, %649 : vector<1x128xf32>
    %651 = arith.subf %648, %650 : vector<1x128xf32>
    %652 = arith.mulf %172, %651 : vector<1x128xf32>
    %653 = arith.subf %528, %127 : vector<1x128xf32>
    %654 = arith.mulf %585, %653 : vector<1x128xf32>
    %655 = arith.subf %526, %111 : vector<1x128xf32>
    %656 = arith.mulf %586, %655 : vector<1x128xf32>
    %657 = arith.subf %654, %656 : vector<1x128xf32>
    %658 = arith.mulf %172, %657 : vector<1x128xf32>
    %659 = arith.subf %552, %127 : vector<1x128xf32>
    %660 = arith.mulf %585, %659 : vector<1x128xf32>
    %661 = arith.subf %550, %111 : vector<1x128xf32>
    %662 = arith.mulf %586, %661 : vector<1x128xf32>
    %663 = arith.subf %660, %662 : vector<1x128xf32>
    %664 = arith.mulf %172, %663 : vector<1x128xf32>
    %665 = arith.subf %556, %127 : vector<1x128xf32>
    %666 = arith.mulf %585, %665 : vector<1x128xf32>
    %667 = arith.subf %554, %111 : vector<1x128xf32>
    %668 = arith.mulf %586, %667 : vector<1x128xf32>
    %669 = arith.subf %666, %668 : vector<1x128xf32>
    %670 = arith.mulf %172, %669 : vector<1x128xf32>
    %671 = arith.subf %580, %127 : vector<1x128xf32>
    %672 = arith.mulf %585, %671 : vector<1x128xf32>
    %673 = arith.subf %578, %111 : vector<1x128xf32>
    %674 = arith.mulf %586, %673 : vector<1x128xf32>
    %675 = arith.subf %672, %674 : vector<1x128xf32>
    %676 = arith.mulf %172, %675 : vector<1x128xf32>
    %677 = arith.subf %584, %127 : vector<1x128xf32>
    %678 = arith.mulf %585, %677 : vector<1x128xf32>
    %679 = arith.subf %582, %111 : vector<1x128xf32>
    %680 = arith.mulf %586, %679 : vector<1x128xf32>
    %681 = arith.subf %678, %680 : vector<1x128xf32>
    %682 = arith.mulf %172, %681 : vector<1x128xf32>
    %cst_100 = arith.constant 0.000000e+00 : f32
    %683 = vector.broadcast %cst_100 : f32 to vector<1x128xf32>
    %684 = arith.cmpf oge, %592, %683 : vector<1x128xf32>
    %cst_101 = arith.constant 0.000000e+00 : f32
    %685 = vector.broadcast %cst_101 : f32 to vector<1x128xf32>
    %686 = arith.cmpf oge, %598, %685 : vector<1x128xf32>
    %687 = arith.xori %684, %686 : vector<1x128xi1>
    %688 = arith.subf %592, %598 : vector<1x128xf32>
    %cst_102 = arith.constant 0.000000e+00 : f32
    %689 = vector.broadcast %cst_102 : f32 to vector<1x128xf32>
    %690 = arith.cmpf oge, %688, %689 : vector<1x128xf32>
    %cst_103 = arith.constant 9.99999968E-21 : f32
    %691 = vector.broadcast %cst_103 : f32 to vector<1x128xf32>
    %692 = arith.maximumf %688, %691 : vector<1x128xf32>
    %cst_104 = arith.constant -9.99999968E-21 : f32
    %693 = vector.broadcast %cst_104 : f32 to vector<1x128xf32>
    %694 = arith.minimumf %688, %693 : vector<1x128xf32>
    %695 = arith.select %690, %692, %694 : vector<1x128xi1>, vector<1x128xf32>
    %696 = arith.divf %592, %695 : vector<1x128xf32>
    %697 = arith.subf %386, %382 : vector<1x128xf32>
    %698 = arith.mulf %696, %697 : vector<1x128xf32>
    %699 = arith.addf %382, %698 : vector<1x128xf32>
    %700 = arith.subf %388, %384 : vector<1x128xf32>
    %701 = arith.mulf %696, %700 : vector<1x128xf32>
    %702 = arith.addf %384, %701 : vector<1x128xf32>
    %703 = arith.select %684, %386, %111 : vector<1x128xi1>, vector<1x128xf32>
    %704 = arith.select %687, %699, %703 : vector<1x128xi1>, vector<1x128xf32>
    %705 = arith.select %684, %388, %127 : vector<1x128xi1>, vector<1x128xf32>
    %706 = arith.select %687, %702, %705 : vector<1x128xi1>, vector<1x128xf32>
    %707 = arith.select %684, %699, %111 : vector<1x128xi1>, vector<1x128xf32>
    %708 = arith.select %686, %386, %707 : vector<1x128xi1>, vector<1x128xf32>
    %709 = arith.select %684, %702, %127 : vector<1x128xi1>, vector<1x128xf32>
    %710 = arith.select %686, %388, %709 : vector<1x128xi1>, vector<1x128xf32>
    %cst_105 = arith.constant 0.000000e+00 : f32
    %711 = vector.broadcast %cst_105 : f32 to vector<1x128xf32>
    %712 = arith.cmpf oge, %598, %711 : vector<1x128xf32>
    %cst_106 = arith.constant 0.000000e+00 : f32
    %713 = vector.broadcast %cst_106 : f32 to vector<1x128xf32>
    %714 = arith.cmpf oge, %604, %713 : vector<1x128xf32>
    %715 = arith.xori %712, %714 : vector<1x128xi1>
    %716 = arith.subf %598, %604 : vector<1x128xf32>
    %cst_107 = arith.constant 0.000000e+00 : f32
    %717 = vector.broadcast %cst_107 : f32 to vector<1x128xf32>
    %718 = arith.cmpf oge, %716, %717 : vector<1x128xf32>
    %cst_108 = arith.constant 9.99999968E-21 : f32
    %719 = vector.broadcast %cst_108 : f32 to vector<1x128xf32>
    %720 = arith.maximumf %716, %719 : vector<1x128xf32>
    %cst_109 = arith.constant -9.99999968E-21 : f32
    %721 = vector.broadcast %cst_109 : f32 to vector<1x128xf32>
    %722 = arith.minimumf %716, %721 : vector<1x128xf32>
    %723 = arith.select %718, %720, %722 : vector<1x128xi1>, vector<1x128xf32>
    %724 = arith.divf %598, %723 : vector<1x128xf32>
    %725 = arith.subf %410, %386 : vector<1x128xf32>
    %726 = arith.mulf %724, %725 : vector<1x128xf32>
    %727 = arith.addf %386, %726 : vector<1x128xf32>
    %728 = arith.subf %412, %388 : vector<1x128xf32>
    %729 = arith.mulf %724, %728 : vector<1x128xf32>
    %730 = arith.addf %388, %729 : vector<1x128xf32>
    %731 = arith.select %712, %410, %111 : vector<1x128xi1>, vector<1x128xf32>
    %732 = arith.select %715, %727, %731 : vector<1x128xi1>, vector<1x128xf32>
    %733 = arith.select %712, %412, %127 : vector<1x128xi1>, vector<1x128xf32>
    %734 = arith.select %715, %730, %733 : vector<1x128xi1>, vector<1x128xf32>
    %735 = arith.select %712, %727, %111 : vector<1x128xi1>, vector<1x128xf32>
    %736 = arith.select %714, %410, %735 : vector<1x128xi1>, vector<1x128xf32>
    %737 = arith.select %712, %730, %127 : vector<1x128xi1>, vector<1x128xf32>
    %738 = arith.select %714, %412, %737 : vector<1x128xi1>, vector<1x128xf32>
    %cst_110 = arith.constant 0.000000e+00 : f32
    %739 = vector.broadcast %cst_110 : f32 to vector<1x128xf32>
    %740 = arith.cmpf oge, %604, %739 : vector<1x128xf32>
    %cst_111 = arith.constant 0.000000e+00 : f32
    %741 = vector.broadcast %cst_111 : f32 to vector<1x128xf32>
    %742 = arith.cmpf oge, %610, %741 : vector<1x128xf32>
    %743 = arith.xori %740, %742 : vector<1x128xi1>
    %744 = arith.subf %604, %610 : vector<1x128xf32>
    %cst_112 = arith.constant 0.000000e+00 : f32
    %745 = vector.broadcast %cst_112 : f32 to vector<1x128xf32>
    %746 = arith.cmpf oge, %744, %745 : vector<1x128xf32>
    %cst_113 = arith.constant 9.99999968E-21 : f32
    %747 = vector.broadcast %cst_113 : f32 to vector<1x128xf32>
    %748 = arith.maximumf %744, %747 : vector<1x128xf32>
    %cst_114 = arith.constant -9.99999968E-21 : f32
    %749 = vector.broadcast %cst_114 : f32 to vector<1x128xf32>
    %750 = arith.minimumf %744, %749 : vector<1x128xf32>
    %751 = arith.select %746, %748, %750 : vector<1x128xi1>, vector<1x128xf32>
    %752 = arith.divf %604, %751 : vector<1x128xf32>
    %753 = arith.subf %414, %410 : vector<1x128xf32>
    %754 = arith.mulf %752, %753 : vector<1x128xf32>
    %755 = arith.addf %410, %754 : vector<1x128xf32>
    %756 = arith.subf %416, %412 : vector<1x128xf32>
    %757 = arith.mulf %752, %756 : vector<1x128xf32>
    %758 = arith.addf %412, %757 : vector<1x128xf32>
    %759 = arith.select %740, %414, %111 : vector<1x128xi1>, vector<1x128xf32>
    %760 = arith.select %743, %755, %759 : vector<1x128xi1>, vector<1x128xf32>
    %761 = arith.select %740, %416, %127 : vector<1x128xi1>, vector<1x128xf32>
    %762 = arith.select %743, %758, %761 : vector<1x128xi1>, vector<1x128xf32>
    %763 = arith.select %740, %755, %111 : vector<1x128xi1>, vector<1x128xf32>
    %764 = arith.select %742, %414, %763 : vector<1x128xi1>, vector<1x128xf32>
    %765 = arith.select %740, %758, %127 : vector<1x128xi1>, vector<1x128xf32>
    %766 = arith.select %742, %416, %765 : vector<1x128xi1>, vector<1x128xf32>
    %cst_115 = arith.constant 0.000000e+00 : f32
    %767 = vector.broadcast %cst_115 : f32 to vector<1x128xf32>
    %768 = arith.cmpf oge, %610, %767 : vector<1x128xf32>
    %cst_116 = arith.constant 0.000000e+00 : f32
    %769 = vector.broadcast %cst_116 : f32 to vector<1x128xf32>
    %770 = arith.cmpf oge, %616, %769 : vector<1x128xf32>
    %771 = arith.xori %768, %770 : vector<1x128xi1>
    %772 = arith.subf %610, %616 : vector<1x128xf32>
    %cst_117 = arith.constant 0.000000e+00 : f32
    %773 = vector.broadcast %cst_117 : f32 to vector<1x128xf32>
    %774 = arith.cmpf oge, %772, %773 : vector<1x128xf32>
    %cst_118 = arith.constant 9.99999968E-21 : f32
    %775 = vector.broadcast %cst_118 : f32 to vector<1x128xf32>
    %776 = arith.maximumf %772, %775 : vector<1x128xf32>
    %cst_119 = arith.constant -9.99999968E-21 : f32
    %777 = vector.broadcast %cst_119 : f32 to vector<1x128xf32>
    %778 = arith.minimumf %772, %777 : vector<1x128xf32>
    %779 = arith.select %774, %776, %778 : vector<1x128xi1>, vector<1x128xf32>
    %780 = arith.divf %610, %779 : vector<1x128xf32>
    %781 = arith.subf %438, %414 : vector<1x128xf32>
    %782 = arith.mulf %780, %781 : vector<1x128xf32>
    %783 = arith.addf %414, %782 : vector<1x128xf32>
    %784 = arith.subf %440, %416 : vector<1x128xf32>
    %785 = arith.mulf %780, %784 : vector<1x128xf32>
    %786 = arith.addf %416, %785 : vector<1x128xf32>
    %787 = arith.select %768, %438, %111 : vector<1x128xi1>, vector<1x128xf32>
    %788 = arith.select %771, %783, %787 : vector<1x128xi1>, vector<1x128xf32>
    %789 = arith.select %768, %440, %127 : vector<1x128xi1>, vector<1x128xf32>
    %790 = arith.select %771, %786, %789 : vector<1x128xi1>, vector<1x128xf32>
    %791 = arith.select %768, %783, %111 : vector<1x128xi1>, vector<1x128xf32>
    %792 = arith.select %770, %438, %791 : vector<1x128xi1>, vector<1x128xf32>
    %793 = arith.select %768, %786, %127 : vector<1x128xi1>, vector<1x128xf32>
    %794 = arith.select %770, %440, %793 : vector<1x128xi1>, vector<1x128xf32>
    %cst_120 = arith.constant 0.000000e+00 : f32
    %795 = vector.broadcast %cst_120 : f32 to vector<1x128xf32>
    %796 = arith.cmpf oge, %616, %795 : vector<1x128xf32>
    %cst_121 = arith.constant 0.000000e+00 : f32
    %797 = vector.broadcast %cst_121 : f32 to vector<1x128xf32>
    %798 = arith.cmpf oge, %622, %797 : vector<1x128xf32>
    %799 = arith.xori %796, %798 : vector<1x128xi1>
    %800 = arith.subf %616, %622 : vector<1x128xf32>
    %cst_122 = arith.constant 0.000000e+00 : f32
    %801 = vector.broadcast %cst_122 : f32 to vector<1x128xf32>
    %802 = arith.cmpf oge, %800, %801 : vector<1x128xf32>
    %cst_123 = arith.constant 9.99999968E-21 : f32
    %803 = vector.broadcast %cst_123 : f32 to vector<1x128xf32>
    %804 = arith.maximumf %800, %803 : vector<1x128xf32>
    %cst_124 = arith.constant -9.99999968E-21 : f32
    %805 = vector.broadcast %cst_124 : f32 to vector<1x128xf32>
    %806 = arith.minimumf %800, %805 : vector<1x128xf32>
    %807 = arith.select %802, %804, %806 : vector<1x128xi1>, vector<1x128xf32>
    %808 = arith.divf %616, %807 : vector<1x128xf32>
    %809 = arith.subf %442, %438 : vector<1x128xf32>
    %810 = arith.mulf %808, %809 : vector<1x128xf32>
    %811 = arith.addf %438, %810 : vector<1x128xf32>
    %812 = arith.subf %444, %440 : vector<1x128xf32>
    %813 = arith.mulf %808, %812 : vector<1x128xf32>
    %814 = arith.addf %440, %813 : vector<1x128xf32>
    %815 = arith.select %796, %442, %111 : vector<1x128xi1>, vector<1x128xf32>
    %816 = arith.select %799, %811, %815 : vector<1x128xi1>, vector<1x128xf32>
    %817 = arith.select %796, %444, %127 : vector<1x128xi1>, vector<1x128xf32>
    %818 = arith.select %799, %814, %817 : vector<1x128xi1>, vector<1x128xf32>
    %819 = arith.select %796, %811, %111 : vector<1x128xi1>, vector<1x128xf32>
    %820 = arith.select %798, %442, %819 : vector<1x128xi1>, vector<1x128xf32>
    %821 = arith.select %796, %814, %127 : vector<1x128xi1>, vector<1x128xf32>
    %822 = arith.select %798, %444, %821 : vector<1x128xi1>, vector<1x128xf32>
    %cst_125 = arith.constant 0.000000e+00 : f32
    %823 = vector.broadcast %cst_125 : f32 to vector<1x128xf32>
    %824 = arith.cmpf oge, %622, %823 : vector<1x128xf32>
    %cst_126 = arith.constant 0.000000e+00 : f32
    %825 = vector.broadcast %cst_126 : f32 to vector<1x128xf32>
    %826 = arith.cmpf oge, %628, %825 : vector<1x128xf32>
    %827 = arith.xori %824, %826 : vector<1x128xi1>
    %828 = arith.subf %622, %628 : vector<1x128xf32>
    %cst_127 = arith.constant 0.000000e+00 : f32
    %829 = vector.broadcast %cst_127 : f32 to vector<1x128xf32>
    %830 = arith.cmpf oge, %828, %829 : vector<1x128xf32>
    %cst_128 = arith.constant 9.99999968E-21 : f32
    %831 = vector.broadcast %cst_128 : f32 to vector<1x128xf32>
    %832 = arith.maximumf %828, %831 : vector<1x128xf32>
    %cst_129 = arith.constant -9.99999968E-21 : f32
    %833 = vector.broadcast %cst_129 : f32 to vector<1x128xf32>
    %834 = arith.minimumf %828, %833 : vector<1x128xf32>
    %835 = arith.select %830, %832, %834 : vector<1x128xi1>, vector<1x128xf32>
    %836 = arith.divf %622, %835 : vector<1x128xf32>
    %837 = arith.subf %466, %442 : vector<1x128xf32>
    %838 = arith.mulf %836, %837 : vector<1x128xf32>
    %839 = arith.addf %442, %838 : vector<1x128xf32>
    %840 = arith.subf %468, %444 : vector<1x128xf32>
    %841 = arith.mulf %836, %840 : vector<1x128xf32>
    %842 = arith.addf %444, %841 : vector<1x128xf32>
    %843 = arith.select %824, %466, %111 : vector<1x128xi1>, vector<1x128xf32>
    %844 = arith.select %827, %839, %843 : vector<1x128xi1>, vector<1x128xf32>
    %845 = arith.select %824, %468, %127 : vector<1x128xi1>, vector<1x128xf32>
    %846 = arith.select %827, %842, %845 : vector<1x128xi1>, vector<1x128xf32>
    %847 = arith.select %824, %839, %111 : vector<1x128xi1>, vector<1x128xf32>
    %848 = arith.select %826, %466, %847 : vector<1x128xi1>, vector<1x128xf32>
    %849 = arith.select %824, %842, %127 : vector<1x128xi1>, vector<1x128xf32>
    %850 = arith.select %826, %468, %849 : vector<1x128xi1>, vector<1x128xf32>
    %cst_130 = arith.constant 0.000000e+00 : f32
    %851 = vector.broadcast %cst_130 : f32 to vector<1x128xf32>
    %852 = arith.cmpf oge, %628, %851 : vector<1x128xf32>
    %cst_131 = arith.constant 0.000000e+00 : f32
    %853 = vector.broadcast %cst_131 : f32 to vector<1x128xf32>
    %854 = arith.cmpf oge, %634, %853 : vector<1x128xf32>
    %855 = arith.xori %852, %854 : vector<1x128xi1>
    %856 = arith.subf %628, %634 : vector<1x128xf32>
    %cst_132 = arith.constant 0.000000e+00 : f32
    %857 = vector.broadcast %cst_132 : f32 to vector<1x128xf32>
    %858 = arith.cmpf oge, %856, %857 : vector<1x128xf32>
    %cst_133 = arith.constant 9.99999968E-21 : f32
    %859 = vector.broadcast %cst_133 : f32 to vector<1x128xf32>
    %860 = arith.maximumf %856, %859 : vector<1x128xf32>
    %cst_134 = arith.constant -9.99999968E-21 : f32
    %861 = vector.broadcast %cst_134 : f32 to vector<1x128xf32>
    %862 = arith.minimumf %856, %861 : vector<1x128xf32>
    %863 = arith.select %858, %860, %862 : vector<1x128xi1>, vector<1x128xf32>
    %864 = arith.divf %628, %863 : vector<1x128xf32>
    %865 = arith.subf %470, %466 : vector<1x128xf32>
    %866 = arith.mulf %864, %865 : vector<1x128xf32>
    %867 = arith.addf %466, %866 : vector<1x128xf32>
    %868 = arith.subf %472, %468 : vector<1x128xf32>
    %869 = arith.mulf %864, %868 : vector<1x128xf32>
    %870 = arith.addf %468, %869 : vector<1x128xf32>
    %871 = arith.select %852, %470, %111 : vector<1x128xi1>, vector<1x128xf32>
    %872 = arith.select %855, %867, %871 : vector<1x128xi1>, vector<1x128xf32>
    %873 = arith.select %852, %472, %127 : vector<1x128xi1>, vector<1x128xf32>
    %874 = arith.select %855, %870, %873 : vector<1x128xi1>, vector<1x128xf32>
    %875 = arith.select %852, %867, %111 : vector<1x128xi1>, vector<1x128xf32>
    %876 = arith.select %854, %470, %875 : vector<1x128xi1>, vector<1x128xf32>
    %877 = arith.select %852, %870, %127 : vector<1x128xi1>, vector<1x128xf32>
    %878 = arith.select %854, %472, %877 : vector<1x128xi1>, vector<1x128xf32>
    %cst_135 = arith.constant 0.000000e+00 : f32
    %879 = vector.broadcast %cst_135 : f32 to vector<1x128xf32>
    %880 = arith.cmpf oge, %634, %879 : vector<1x128xf32>
    %cst_136 = arith.constant 0.000000e+00 : f32
    %881 = vector.broadcast %cst_136 : f32 to vector<1x128xf32>
    %882 = arith.cmpf oge, %640, %881 : vector<1x128xf32>
    %883 = arith.xori %880, %882 : vector<1x128xi1>
    %884 = arith.subf %634, %640 : vector<1x128xf32>
    %cst_137 = arith.constant 0.000000e+00 : f32
    %885 = vector.broadcast %cst_137 : f32 to vector<1x128xf32>
    %886 = arith.cmpf oge, %884, %885 : vector<1x128xf32>
    %cst_138 = arith.constant 9.99999968E-21 : f32
    %887 = vector.broadcast %cst_138 : f32 to vector<1x128xf32>
    %888 = arith.maximumf %884, %887 : vector<1x128xf32>
    %cst_139 = arith.constant -9.99999968E-21 : f32
    %889 = vector.broadcast %cst_139 : f32 to vector<1x128xf32>
    %890 = arith.minimumf %884, %889 : vector<1x128xf32>
    %891 = arith.select %886, %888, %890 : vector<1x128xi1>, vector<1x128xf32>
    %892 = arith.divf %634, %891 : vector<1x128xf32>
    %893 = arith.subf %494, %470 : vector<1x128xf32>
    %894 = arith.mulf %892, %893 : vector<1x128xf32>
    %895 = arith.addf %470, %894 : vector<1x128xf32>
    %896 = arith.subf %496, %472 : vector<1x128xf32>
    %897 = arith.mulf %892, %896 : vector<1x128xf32>
    %898 = arith.addf %472, %897 : vector<1x128xf32>
    %899 = arith.select %880, %494, %111 : vector<1x128xi1>, vector<1x128xf32>
    %900 = arith.select %883, %895, %899 : vector<1x128xi1>, vector<1x128xf32>
    %901 = arith.select %880, %496, %127 : vector<1x128xi1>, vector<1x128xf32>
    %902 = arith.select %883, %898, %901 : vector<1x128xi1>, vector<1x128xf32>
    %903 = arith.select %880, %895, %111 : vector<1x128xi1>, vector<1x128xf32>
    %904 = arith.select %882, %494, %903 : vector<1x128xi1>, vector<1x128xf32>
    %905 = arith.select %880, %898, %127 : vector<1x128xi1>, vector<1x128xf32>
    %906 = arith.select %882, %496, %905 : vector<1x128xi1>, vector<1x128xf32>
    %cst_140 = arith.constant 0.000000e+00 : f32
    %907 = vector.broadcast %cst_140 : f32 to vector<1x128xf32>
    %908 = arith.cmpf oge, %640, %907 : vector<1x128xf32>
    %cst_141 = arith.constant 0.000000e+00 : f32
    %909 = vector.broadcast %cst_141 : f32 to vector<1x128xf32>
    %910 = arith.cmpf oge, %646, %909 : vector<1x128xf32>
    %911 = arith.xori %908, %910 : vector<1x128xi1>
    %912 = arith.subf %640, %646 : vector<1x128xf32>
    %cst_142 = arith.constant 0.000000e+00 : f32
    %913 = vector.broadcast %cst_142 : f32 to vector<1x128xf32>
    %914 = arith.cmpf oge, %912, %913 : vector<1x128xf32>
    %cst_143 = arith.constant 9.99999968E-21 : f32
    %915 = vector.broadcast %cst_143 : f32 to vector<1x128xf32>
    %916 = arith.maximumf %912, %915 : vector<1x128xf32>
    %cst_144 = arith.constant -9.99999968E-21 : f32
    %917 = vector.broadcast %cst_144 : f32 to vector<1x128xf32>
    %918 = arith.minimumf %912, %917 : vector<1x128xf32>
    %919 = arith.select %914, %916, %918 : vector<1x128xi1>, vector<1x128xf32>
    %920 = arith.divf %640, %919 : vector<1x128xf32>
    %921 = arith.subf %498, %494 : vector<1x128xf32>
    %922 = arith.mulf %920, %921 : vector<1x128xf32>
    %923 = arith.addf %494, %922 : vector<1x128xf32>
    %924 = arith.subf %500, %496 : vector<1x128xf32>
    %925 = arith.mulf %920, %924 : vector<1x128xf32>
    %926 = arith.addf %496, %925 : vector<1x128xf32>
    %927 = arith.select %908, %498, %111 : vector<1x128xi1>, vector<1x128xf32>
    %928 = arith.select %911, %923, %927 : vector<1x128xi1>, vector<1x128xf32>
    %929 = arith.select %908, %500, %127 : vector<1x128xi1>, vector<1x128xf32>
    %930 = arith.select %911, %926, %929 : vector<1x128xi1>, vector<1x128xf32>
    %931 = arith.select %908, %923, %111 : vector<1x128xi1>, vector<1x128xf32>
    %932 = arith.select %910, %498, %931 : vector<1x128xi1>, vector<1x128xf32>
    %933 = arith.select %908, %926, %127 : vector<1x128xi1>, vector<1x128xf32>
    %934 = arith.select %910, %500, %933 : vector<1x128xi1>, vector<1x128xf32>
    %cst_145 = arith.constant 0.000000e+00 : f32
    %935 = vector.broadcast %cst_145 : f32 to vector<1x128xf32>
    %936 = arith.cmpf oge, %646, %935 : vector<1x128xf32>
    %cst_146 = arith.constant 0.000000e+00 : f32
    %937 = vector.broadcast %cst_146 : f32 to vector<1x128xf32>
    %938 = arith.cmpf oge, %652, %937 : vector<1x128xf32>
    %939 = arith.xori %936, %938 : vector<1x128xi1>
    %940 = arith.subf %646, %652 : vector<1x128xf32>
    %cst_147 = arith.constant 0.000000e+00 : f32
    %941 = vector.broadcast %cst_147 : f32 to vector<1x128xf32>
    %942 = arith.cmpf oge, %940, %941 : vector<1x128xf32>
    %cst_148 = arith.constant 9.99999968E-21 : f32
    %943 = vector.broadcast %cst_148 : f32 to vector<1x128xf32>
    %944 = arith.maximumf %940, %943 : vector<1x128xf32>
    %cst_149 = arith.constant -9.99999968E-21 : f32
    %945 = vector.broadcast %cst_149 : f32 to vector<1x128xf32>
    %946 = arith.minimumf %940, %945 : vector<1x128xf32>
    %947 = arith.select %942, %944, %946 : vector<1x128xi1>, vector<1x128xf32>
    %948 = arith.divf %646, %947 : vector<1x128xf32>
    %949 = arith.subf %522, %498 : vector<1x128xf32>
    %950 = arith.mulf %948, %949 : vector<1x128xf32>
    %951 = arith.addf %498, %950 : vector<1x128xf32>
    %952 = arith.subf %524, %500 : vector<1x128xf32>
    %953 = arith.mulf %948, %952 : vector<1x128xf32>
    %954 = arith.addf %500, %953 : vector<1x128xf32>
    %955 = arith.select %936, %522, %111 : vector<1x128xi1>, vector<1x128xf32>
    %956 = arith.select %939, %951, %955 : vector<1x128xi1>, vector<1x128xf32>
    %957 = arith.select %936, %524, %127 : vector<1x128xi1>, vector<1x128xf32>
    %958 = arith.select %939, %954, %957 : vector<1x128xi1>, vector<1x128xf32>
    %959 = arith.select %936, %951, %111 : vector<1x128xi1>, vector<1x128xf32>
    %960 = arith.select %938, %522, %959 : vector<1x128xi1>, vector<1x128xf32>
    %961 = arith.select %936, %954, %127 : vector<1x128xi1>, vector<1x128xf32>
    %962 = arith.select %938, %524, %961 : vector<1x128xi1>, vector<1x128xf32>
    %cst_150 = arith.constant 0.000000e+00 : f32
    %963 = vector.broadcast %cst_150 : f32 to vector<1x128xf32>
    %964 = arith.cmpf oge, %652, %963 : vector<1x128xf32>
    %cst_151 = arith.constant 0.000000e+00 : f32
    %965 = vector.broadcast %cst_151 : f32 to vector<1x128xf32>
    %966 = arith.cmpf oge, %658, %965 : vector<1x128xf32>
    %967 = arith.xori %964, %966 : vector<1x128xi1>
    %968 = arith.subf %652, %658 : vector<1x128xf32>
    %cst_152 = arith.constant 0.000000e+00 : f32
    %969 = vector.broadcast %cst_152 : f32 to vector<1x128xf32>
    %970 = arith.cmpf oge, %968, %969 : vector<1x128xf32>
    %cst_153 = arith.constant 9.99999968E-21 : f32
    %971 = vector.broadcast %cst_153 : f32 to vector<1x128xf32>
    %972 = arith.maximumf %968, %971 : vector<1x128xf32>
    %cst_154 = arith.constant -9.99999968E-21 : f32
    %973 = vector.broadcast %cst_154 : f32 to vector<1x128xf32>
    %974 = arith.minimumf %968, %973 : vector<1x128xf32>
    %975 = arith.select %970, %972, %974 : vector<1x128xi1>, vector<1x128xf32>
    %976 = arith.divf %652, %975 : vector<1x128xf32>
    %977 = arith.subf %526, %522 : vector<1x128xf32>
    %978 = arith.mulf %976, %977 : vector<1x128xf32>
    %979 = arith.addf %522, %978 : vector<1x128xf32>
    %980 = arith.subf %528, %524 : vector<1x128xf32>
    %981 = arith.mulf %976, %980 : vector<1x128xf32>
    %982 = arith.addf %524, %981 : vector<1x128xf32>
    %983 = arith.select %964, %526, %111 : vector<1x128xi1>, vector<1x128xf32>
    %984 = arith.select %967, %979, %983 : vector<1x128xi1>, vector<1x128xf32>
    %985 = arith.select %964, %528, %127 : vector<1x128xi1>, vector<1x128xf32>
    %986 = arith.select %967, %982, %985 : vector<1x128xi1>, vector<1x128xf32>
    %987 = arith.select %964, %979, %111 : vector<1x128xi1>, vector<1x128xf32>
    %988 = arith.select %966, %526, %987 : vector<1x128xi1>, vector<1x128xf32>
    %989 = arith.select %964, %982, %127 : vector<1x128xi1>, vector<1x128xf32>
    %990 = arith.select %966, %528, %989 : vector<1x128xi1>, vector<1x128xf32>
    %cst_155 = arith.constant 0.000000e+00 : f32
    %991 = vector.broadcast %cst_155 : f32 to vector<1x128xf32>
    %992 = arith.cmpf oge, %658, %991 : vector<1x128xf32>
    %cst_156 = arith.constant 0.000000e+00 : f32
    %993 = vector.broadcast %cst_156 : f32 to vector<1x128xf32>
    %994 = arith.cmpf oge, %664, %993 : vector<1x128xf32>
    %995 = arith.xori %992, %994 : vector<1x128xi1>
    %996 = arith.subf %658, %664 : vector<1x128xf32>
    %cst_157 = arith.constant 0.000000e+00 : f32
    %997 = vector.broadcast %cst_157 : f32 to vector<1x128xf32>
    %998 = arith.cmpf oge, %996, %997 : vector<1x128xf32>
    %cst_158 = arith.constant 9.99999968E-21 : f32
    %999 = vector.broadcast %cst_158 : f32 to vector<1x128xf32>
    %1000 = arith.maximumf %996, %999 : vector<1x128xf32>
    %cst_159 = arith.constant -9.99999968E-21 : f32
    %1001 = vector.broadcast %cst_159 : f32 to vector<1x128xf32>
    %1002 = arith.minimumf %996, %1001 : vector<1x128xf32>
    %1003 = arith.select %998, %1000, %1002 : vector<1x128xi1>, vector<1x128xf32>
    %1004 = arith.divf %658, %1003 : vector<1x128xf32>
    %1005 = arith.subf %550, %526 : vector<1x128xf32>
    %1006 = arith.mulf %1004, %1005 : vector<1x128xf32>
    %1007 = arith.addf %526, %1006 : vector<1x128xf32>
    %1008 = arith.subf %552, %528 : vector<1x128xf32>
    %1009 = arith.mulf %1004, %1008 : vector<1x128xf32>
    %1010 = arith.addf %528, %1009 : vector<1x128xf32>
    %1011 = arith.select %992, %550, %111 : vector<1x128xi1>, vector<1x128xf32>
    %1012 = arith.select %995, %1007, %1011 : vector<1x128xi1>, vector<1x128xf32>
    %1013 = arith.select %992, %552, %127 : vector<1x128xi1>, vector<1x128xf32>
    %1014 = arith.select %995, %1010, %1013 : vector<1x128xi1>, vector<1x128xf32>
    %1015 = arith.select %992, %1007, %111 : vector<1x128xi1>, vector<1x128xf32>
    %1016 = arith.select %994, %550, %1015 : vector<1x128xi1>, vector<1x128xf32>
    %1017 = arith.select %992, %1010, %127 : vector<1x128xi1>, vector<1x128xf32>
    %1018 = arith.select %994, %552, %1017 : vector<1x128xi1>, vector<1x128xf32>
    %cst_160 = arith.constant 0.000000e+00 : f32
    %1019 = vector.broadcast %cst_160 : f32 to vector<1x128xf32>
    %1020 = arith.cmpf oge, %664, %1019 : vector<1x128xf32>
    %cst_161 = arith.constant 0.000000e+00 : f32
    %1021 = vector.broadcast %cst_161 : f32 to vector<1x128xf32>
    %1022 = arith.cmpf oge, %670, %1021 : vector<1x128xf32>
    %1023 = arith.xori %1020, %1022 : vector<1x128xi1>
    %1024 = arith.subf %664, %670 : vector<1x128xf32>
    %cst_162 = arith.constant 0.000000e+00 : f32
    %1025 = vector.broadcast %cst_162 : f32 to vector<1x128xf32>
    %1026 = arith.cmpf oge, %1024, %1025 : vector<1x128xf32>
    %cst_163 = arith.constant 9.99999968E-21 : f32
    %1027 = vector.broadcast %cst_163 : f32 to vector<1x128xf32>
    %1028 = arith.maximumf %1024, %1027 : vector<1x128xf32>
    %cst_164 = arith.constant -9.99999968E-21 : f32
    %1029 = vector.broadcast %cst_164 : f32 to vector<1x128xf32>
    %1030 = arith.minimumf %1024, %1029 : vector<1x128xf32>
    %1031 = arith.select %1026, %1028, %1030 : vector<1x128xi1>, vector<1x128xf32>
    %1032 = arith.divf %664, %1031 : vector<1x128xf32>
    %1033 = arith.subf %554, %550 : vector<1x128xf32>
    %1034 = arith.mulf %1032, %1033 : vector<1x128xf32>
    %1035 = arith.addf %550, %1034 : vector<1x128xf32>
    %1036 = arith.subf %556, %552 : vector<1x128xf32>
    %1037 = arith.mulf %1032, %1036 : vector<1x128xf32>
    %1038 = arith.addf %552, %1037 : vector<1x128xf32>
    %1039 = arith.select %1020, %554, %111 : vector<1x128xi1>, vector<1x128xf32>
    %1040 = arith.select %1023, %1035, %1039 : vector<1x128xi1>, vector<1x128xf32>
    %1041 = arith.select %1020, %556, %127 : vector<1x128xi1>, vector<1x128xf32>
    %1042 = arith.select %1023, %1038, %1041 : vector<1x128xi1>, vector<1x128xf32>
    %1043 = arith.select %1020, %1035, %111 : vector<1x128xi1>, vector<1x128xf32>
    %1044 = arith.select %1022, %554, %1043 : vector<1x128xi1>, vector<1x128xf32>
    %1045 = arith.select %1020, %1038, %127 : vector<1x128xi1>, vector<1x128xf32>
    %1046 = arith.select %1022, %556, %1045 : vector<1x128xi1>, vector<1x128xf32>
    %cst_165 = arith.constant 0.000000e+00 : f32
    %1047 = vector.broadcast %cst_165 : f32 to vector<1x128xf32>
    %1048 = arith.cmpf oge, %670, %1047 : vector<1x128xf32>
    %cst_166 = arith.constant 0.000000e+00 : f32
    %1049 = vector.broadcast %cst_166 : f32 to vector<1x128xf32>
    %1050 = arith.cmpf oge, %676, %1049 : vector<1x128xf32>
    %1051 = arith.xori %1048, %1050 : vector<1x128xi1>
    %1052 = arith.subf %670, %676 : vector<1x128xf32>
    %cst_167 = arith.constant 0.000000e+00 : f32
    %1053 = vector.broadcast %cst_167 : f32 to vector<1x128xf32>
    %1054 = arith.cmpf oge, %1052, %1053 : vector<1x128xf32>
    %cst_168 = arith.constant 9.99999968E-21 : f32
    %1055 = vector.broadcast %cst_168 : f32 to vector<1x128xf32>
    %1056 = arith.maximumf %1052, %1055 : vector<1x128xf32>
    %cst_169 = arith.constant -9.99999968E-21 : f32
    %1057 = vector.broadcast %cst_169 : f32 to vector<1x128xf32>
    %1058 = arith.minimumf %1052, %1057 : vector<1x128xf32>
    %1059 = arith.select %1054, %1056, %1058 : vector<1x128xi1>, vector<1x128xf32>
    %1060 = arith.divf %670, %1059 : vector<1x128xf32>
    %1061 = arith.subf %578, %554 : vector<1x128xf32>
    %1062 = arith.mulf %1060, %1061 : vector<1x128xf32>
    %1063 = arith.addf %554, %1062 : vector<1x128xf32>
    %1064 = arith.subf %580, %556 : vector<1x128xf32>
    %1065 = arith.mulf %1060, %1064 : vector<1x128xf32>
    %1066 = arith.addf %556, %1065 : vector<1x128xf32>
    %1067 = arith.select %1048, %578, %111 : vector<1x128xi1>, vector<1x128xf32>
    %1068 = arith.select %1051, %1063, %1067 : vector<1x128xi1>, vector<1x128xf32>
    %1069 = arith.select %1048, %580, %127 : vector<1x128xi1>, vector<1x128xf32>
    %1070 = arith.select %1051, %1066, %1069 : vector<1x128xi1>, vector<1x128xf32>
    %1071 = arith.select %1048, %1063, %111 : vector<1x128xi1>, vector<1x128xf32>
    %1072 = arith.select %1050, %578, %1071 : vector<1x128xi1>, vector<1x128xf32>
    %1073 = arith.select %1048, %1066, %127 : vector<1x128xi1>, vector<1x128xf32>
    %1074 = arith.select %1050, %580, %1073 : vector<1x128xi1>, vector<1x128xf32>
    %cst_170 = arith.constant 0.000000e+00 : f32
    %1075 = vector.broadcast %cst_170 : f32 to vector<1x128xf32>
    %1076 = arith.cmpf oge, %676, %1075 : vector<1x128xf32>
    %cst_171 = arith.constant 0.000000e+00 : f32
    %1077 = vector.broadcast %cst_171 : f32 to vector<1x128xf32>
    %1078 = arith.cmpf oge, %682, %1077 : vector<1x128xf32>
    %1079 = arith.xori %1076, %1078 : vector<1x128xi1>
    %1080 = arith.subf %676, %682 : vector<1x128xf32>
    %cst_172 = arith.constant 0.000000e+00 : f32
    %1081 = vector.broadcast %cst_172 : f32 to vector<1x128xf32>
    %1082 = arith.cmpf oge, %1080, %1081 : vector<1x128xf32>
    %cst_173 = arith.constant 9.99999968E-21 : f32
    %1083 = vector.broadcast %cst_173 : f32 to vector<1x128xf32>
    %1084 = arith.maximumf %1080, %1083 : vector<1x128xf32>
    %cst_174 = arith.constant -9.99999968E-21 : f32
    %1085 = vector.broadcast %cst_174 : f32 to vector<1x128xf32>
    %1086 = arith.minimumf %1080, %1085 : vector<1x128xf32>
    %1087 = arith.select %1082, %1084, %1086 : vector<1x128xi1>, vector<1x128xf32>
    %1088 = arith.divf %676, %1087 : vector<1x128xf32>
    %1089 = arith.subf %582, %578 : vector<1x128xf32>
    %1090 = arith.mulf %1088, %1089 : vector<1x128xf32>
    %1091 = arith.addf %578, %1090 : vector<1x128xf32>
    %1092 = arith.subf %584, %580 : vector<1x128xf32>
    %1093 = arith.mulf %1088, %1092 : vector<1x128xf32>
    %1094 = arith.addf %580, %1093 : vector<1x128xf32>
    %1095 = arith.select %1076, %582, %111 : vector<1x128xi1>, vector<1x128xf32>
    %1096 = arith.select %1079, %1091, %1095 : vector<1x128xi1>, vector<1x128xf32>
    %1097 = arith.select %1076, %584, %127 : vector<1x128xi1>, vector<1x128xf32>
    %1098 = arith.select %1079, %1094, %1097 : vector<1x128xi1>, vector<1x128xf32>
    %1099 = arith.select %1076, %1091, %111 : vector<1x128xi1>, vector<1x128xf32>
    %1100 = arith.select %1078, %582, %1099 : vector<1x128xi1>, vector<1x128xf32>
    %1101 = arith.select %1076, %1094, %127 : vector<1x128xi1>, vector<1x128xf32>
    %1102 = arith.select %1078, %584, %1101 : vector<1x128xi1>, vector<1x128xf32>
    %cst_175 = arith.constant 0.000000e+00 : f32
    %1103 = vector.broadcast %cst_175 : f32 to vector<1x128xf32>
    %1104 = arith.cmpf oge, %682, %1103 : vector<1x128xf32>
    %cst_176 = arith.constant 0.000000e+00 : f32
    %1105 = vector.broadcast %cst_176 : f32 to vector<1x128xf32>
    %1106 = arith.cmpf oge, %592, %1105 : vector<1x128xf32>
    %1107 = arith.xori %1104, %1106 : vector<1x128xi1>
    %1108 = arith.subf %682, %592 : vector<1x128xf32>
    %cst_177 = arith.constant 0.000000e+00 : f32
    %1109 = vector.broadcast %cst_177 : f32 to vector<1x128xf32>
    %1110 = arith.cmpf oge, %1108, %1109 : vector<1x128xf32>
    %cst_178 = arith.constant 9.99999968E-21 : f32
    %1111 = vector.broadcast %cst_178 : f32 to vector<1x128xf32>
    %1112 = arith.maximumf %1108, %1111 : vector<1x128xf32>
    %cst_179 = arith.constant -9.99999968E-21 : f32
    %1113 = vector.broadcast %cst_179 : f32 to vector<1x128xf32>
    %1114 = arith.minimumf %1108, %1113 : vector<1x128xf32>
    %1115 = arith.select %1110, %1112, %1114 : vector<1x128xi1>, vector<1x128xf32>
    %1116 = arith.divf %682, %1115 : vector<1x128xf32>
    %1117 = arith.subf %382, %582 : vector<1x128xf32>
    %1118 = arith.mulf %1116, %1117 : vector<1x128xf32>
    %1119 = arith.addf %582, %1118 : vector<1x128xf32>
    %1120 = arith.subf %384, %584 : vector<1x128xf32>
    %1121 = arith.mulf %1116, %1120 : vector<1x128xf32>
    %1122 = arith.addf %584, %1121 : vector<1x128xf32>
    %1123 = arith.select %1104, %382, %111 : vector<1x128xi1>, vector<1x128xf32>
    %1124 = arith.select %1107, %1119, %1123 : vector<1x128xi1>, vector<1x128xf32>
    %1125 = arith.select %1104, %384, %127 : vector<1x128xi1>, vector<1x128xf32>
    %1126 = arith.select %1107, %1122, %1125 : vector<1x128xi1>, vector<1x128xf32>
    %1127 = arith.select %1104, %1119, %111 : vector<1x128xi1>, vector<1x128xf32>
    %1128 = arith.select %1106, %382, %1127 : vector<1x128xi1>, vector<1x128xf32>
    %1129 = arith.select %1104, %1122, %127 : vector<1x128xi1>, vector<1x128xf32>
    %1130 = arith.select %1106, %384, %1129 : vector<1x128xi1>, vector<1x128xf32>
    %1131 = arith.subf %103, %115 : vector<1x128xf32>
    %1132 = arith.subf %119, %131 : vector<1x128xf32>
    %1133 = arith.subf %706, %131 : vector<1x128xf32>
    %1134 = arith.mulf %1131, %1133 : vector<1x128xf32>
    %1135 = arith.subf %704, %115 : vector<1x128xf32>
    %1136 = arith.mulf %1132, %1135 : vector<1x128xf32>
    %1137 = arith.subf %1134, %1136 : vector<1x128xf32>
    %1138 = arith.mulf %172, %1137 : vector<1x128xf32>
    %1139 = arith.subf %710, %131 : vector<1x128xf32>
    %1140 = arith.mulf %1131, %1139 : vector<1x128xf32>
    %1141 = arith.subf %708, %115 : vector<1x128xf32>
    %1142 = arith.mulf %1132, %1141 : vector<1x128xf32>
    %1143 = arith.subf %1140, %1142 : vector<1x128xf32>
    %1144 = arith.mulf %172, %1143 : vector<1x128xf32>
    %1145 = arith.subf %734, %131 : vector<1x128xf32>
    %1146 = arith.mulf %1131, %1145 : vector<1x128xf32>
    %1147 = arith.subf %732, %115 : vector<1x128xf32>
    %1148 = arith.mulf %1132, %1147 : vector<1x128xf32>
    %1149 = arith.subf %1146, %1148 : vector<1x128xf32>
    %1150 = arith.mulf %172, %1149 : vector<1x128xf32>
    %1151 = arith.subf %738, %131 : vector<1x128xf32>
    %1152 = arith.mulf %1131, %1151 : vector<1x128xf32>
    %1153 = arith.subf %736, %115 : vector<1x128xf32>
    %1154 = arith.mulf %1132, %1153 : vector<1x128xf32>
    %1155 = arith.subf %1152, %1154 : vector<1x128xf32>
    %1156 = arith.mulf %172, %1155 : vector<1x128xf32>
    %1157 = arith.subf %762, %131 : vector<1x128xf32>
    %1158 = arith.mulf %1131, %1157 : vector<1x128xf32>
    %1159 = arith.subf %760, %115 : vector<1x128xf32>
    %1160 = arith.mulf %1132, %1159 : vector<1x128xf32>
    %1161 = arith.subf %1158, %1160 : vector<1x128xf32>
    %1162 = arith.mulf %172, %1161 : vector<1x128xf32>
    %1163 = arith.subf %766, %131 : vector<1x128xf32>
    %1164 = arith.mulf %1131, %1163 : vector<1x128xf32>
    %1165 = arith.subf %764, %115 : vector<1x128xf32>
    %1166 = arith.mulf %1132, %1165 : vector<1x128xf32>
    %1167 = arith.subf %1164, %1166 : vector<1x128xf32>
    %1168 = arith.mulf %172, %1167 : vector<1x128xf32>
    %1169 = arith.subf %790, %131 : vector<1x128xf32>
    %1170 = arith.mulf %1131, %1169 : vector<1x128xf32>
    %1171 = arith.subf %788, %115 : vector<1x128xf32>
    %1172 = arith.mulf %1132, %1171 : vector<1x128xf32>
    %1173 = arith.subf %1170, %1172 : vector<1x128xf32>
    %1174 = arith.mulf %172, %1173 : vector<1x128xf32>
    %1175 = arith.subf %794, %131 : vector<1x128xf32>
    %1176 = arith.mulf %1131, %1175 : vector<1x128xf32>
    %1177 = arith.subf %792, %115 : vector<1x128xf32>
    %1178 = arith.mulf %1132, %1177 : vector<1x128xf32>
    %1179 = arith.subf %1176, %1178 : vector<1x128xf32>
    %1180 = arith.mulf %172, %1179 : vector<1x128xf32>
    %1181 = arith.subf %818, %131 : vector<1x128xf32>
    %1182 = arith.mulf %1131, %1181 : vector<1x128xf32>
    %1183 = arith.subf %816, %115 : vector<1x128xf32>
    %1184 = arith.mulf %1132, %1183 : vector<1x128xf32>
    %1185 = arith.subf %1182, %1184 : vector<1x128xf32>
    %1186 = arith.mulf %172, %1185 : vector<1x128xf32>
    %1187 = arith.subf %822, %131 : vector<1x128xf32>
    %1188 = arith.mulf %1131, %1187 : vector<1x128xf32>
    %1189 = arith.subf %820, %115 : vector<1x128xf32>
    %1190 = arith.mulf %1132, %1189 : vector<1x128xf32>
    %1191 = arith.subf %1188, %1190 : vector<1x128xf32>
    %1192 = arith.mulf %172, %1191 : vector<1x128xf32>
    %1193 = arith.subf %846, %131 : vector<1x128xf32>
    %1194 = arith.mulf %1131, %1193 : vector<1x128xf32>
    %1195 = arith.subf %844, %115 : vector<1x128xf32>
    %1196 = arith.mulf %1132, %1195 : vector<1x128xf32>
    %1197 = arith.subf %1194, %1196 : vector<1x128xf32>
    %1198 = arith.mulf %172, %1197 : vector<1x128xf32>
    %1199 = arith.subf %850, %131 : vector<1x128xf32>
    %1200 = arith.mulf %1131, %1199 : vector<1x128xf32>
    %1201 = arith.subf %848, %115 : vector<1x128xf32>
    %1202 = arith.mulf %1132, %1201 : vector<1x128xf32>
    %1203 = arith.subf %1200, %1202 : vector<1x128xf32>
    %1204 = arith.mulf %172, %1203 : vector<1x128xf32>
    %1205 = arith.subf %874, %131 : vector<1x128xf32>
    %1206 = arith.mulf %1131, %1205 : vector<1x128xf32>
    %1207 = arith.subf %872, %115 : vector<1x128xf32>
    %1208 = arith.mulf %1132, %1207 : vector<1x128xf32>
    %1209 = arith.subf %1206, %1208 : vector<1x128xf32>
    %1210 = arith.mulf %172, %1209 : vector<1x128xf32>
    %1211 = arith.subf %878, %131 : vector<1x128xf32>
    %1212 = arith.mulf %1131, %1211 : vector<1x128xf32>
    %1213 = arith.subf %876, %115 : vector<1x128xf32>
    %1214 = arith.mulf %1132, %1213 : vector<1x128xf32>
    %1215 = arith.subf %1212, %1214 : vector<1x128xf32>
    %1216 = arith.mulf %172, %1215 : vector<1x128xf32>
    %1217 = arith.subf %902, %131 : vector<1x128xf32>
    %1218 = arith.mulf %1131, %1217 : vector<1x128xf32>
    %1219 = arith.subf %900, %115 : vector<1x128xf32>
    %1220 = arith.mulf %1132, %1219 : vector<1x128xf32>
    %1221 = arith.subf %1218, %1220 : vector<1x128xf32>
    %1222 = arith.mulf %172, %1221 : vector<1x128xf32>
    %1223 = arith.subf %906, %131 : vector<1x128xf32>
    %1224 = arith.mulf %1131, %1223 : vector<1x128xf32>
    %1225 = arith.subf %904, %115 : vector<1x128xf32>
    %1226 = arith.mulf %1132, %1225 : vector<1x128xf32>
    %1227 = arith.subf %1224, %1226 : vector<1x128xf32>
    %1228 = arith.mulf %172, %1227 : vector<1x128xf32>
    %1229 = arith.subf %930, %131 : vector<1x128xf32>
    %1230 = arith.mulf %1131, %1229 : vector<1x128xf32>
    %1231 = arith.subf %928, %115 : vector<1x128xf32>
    %1232 = arith.mulf %1132, %1231 : vector<1x128xf32>
    %1233 = arith.subf %1230, %1232 : vector<1x128xf32>
    %1234 = arith.mulf %172, %1233 : vector<1x128xf32>
    %1235 = arith.subf %934, %131 : vector<1x128xf32>
    %1236 = arith.mulf %1131, %1235 : vector<1x128xf32>
    %1237 = arith.subf %932, %115 : vector<1x128xf32>
    %1238 = arith.mulf %1132, %1237 : vector<1x128xf32>
    %1239 = arith.subf %1236, %1238 : vector<1x128xf32>
    %1240 = arith.mulf %172, %1239 : vector<1x128xf32>
    %1241 = arith.subf %958, %131 : vector<1x128xf32>
    %1242 = arith.mulf %1131, %1241 : vector<1x128xf32>
    %1243 = arith.subf %956, %115 : vector<1x128xf32>
    %1244 = arith.mulf %1132, %1243 : vector<1x128xf32>
    %1245 = arith.subf %1242, %1244 : vector<1x128xf32>
    %1246 = arith.mulf %172, %1245 : vector<1x128xf32>
    %1247 = arith.subf %962, %131 : vector<1x128xf32>
    %1248 = arith.mulf %1131, %1247 : vector<1x128xf32>
    %1249 = arith.subf %960, %115 : vector<1x128xf32>
    %1250 = arith.mulf %1132, %1249 : vector<1x128xf32>
    %1251 = arith.subf %1248, %1250 : vector<1x128xf32>
    %1252 = arith.mulf %172, %1251 : vector<1x128xf32>
    %1253 = arith.subf %986, %131 : vector<1x128xf32>
    %1254 = arith.mulf %1131, %1253 : vector<1x128xf32>
    %1255 = arith.subf %984, %115 : vector<1x128xf32>
    %1256 = arith.mulf %1132, %1255 : vector<1x128xf32>
    %1257 = arith.subf %1254, %1256 : vector<1x128xf32>
    %1258 = arith.mulf %172, %1257 : vector<1x128xf32>
    %1259 = arith.subf %990, %131 : vector<1x128xf32>
    %1260 = arith.mulf %1131, %1259 : vector<1x128xf32>
    %1261 = arith.subf %988, %115 : vector<1x128xf32>
    %1262 = arith.mulf %1132, %1261 : vector<1x128xf32>
    %1263 = arith.subf %1260, %1262 : vector<1x128xf32>
    %1264 = arith.mulf %172, %1263 : vector<1x128xf32>
    %1265 = arith.subf %1014, %131 : vector<1x128xf32>
    %1266 = arith.mulf %1131, %1265 : vector<1x128xf32>
    %1267 = arith.subf %1012, %115 : vector<1x128xf32>
    %1268 = arith.mulf %1132, %1267 : vector<1x128xf32>
    %1269 = arith.subf %1266, %1268 : vector<1x128xf32>
    %1270 = arith.mulf %172, %1269 : vector<1x128xf32>
    %1271 = arith.subf %1018, %131 : vector<1x128xf32>
    %1272 = arith.mulf %1131, %1271 : vector<1x128xf32>
    %1273 = arith.subf %1016, %115 : vector<1x128xf32>
    %1274 = arith.mulf %1132, %1273 : vector<1x128xf32>
    %1275 = arith.subf %1272, %1274 : vector<1x128xf32>
    %1276 = arith.mulf %172, %1275 : vector<1x128xf32>
    %1277 = arith.subf %1042, %131 : vector<1x128xf32>
    %1278 = arith.mulf %1131, %1277 : vector<1x128xf32>
    %1279 = arith.subf %1040, %115 : vector<1x128xf32>
    %1280 = arith.mulf %1132, %1279 : vector<1x128xf32>
    %1281 = arith.subf %1278, %1280 : vector<1x128xf32>
    %1282 = arith.mulf %172, %1281 : vector<1x128xf32>
    %1283 = arith.subf %1046, %131 : vector<1x128xf32>
    %1284 = arith.mulf %1131, %1283 : vector<1x128xf32>
    %1285 = arith.subf %1044, %115 : vector<1x128xf32>
    %1286 = arith.mulf %1132, %1285 : vector<1x128xf32>
    %1287 = arith.subf %1284, %1286 : vector<1x128xf32>
    %1288 = arith.mulf %172, %1287 : vector<1x128xf32>
    %1289 = arith.subf %1070, %131 : vector<1x128xf32>
    %1290 = arith.mulf %1131, %1289 : vector<1x128xf32>
    %1291 = arith.subf %1068, %115 : vector<1x128xf32>
    %1292 = arith.mulf %1132, %1291 : vector<1x128xf32>
    %1293 = arith.subf %1290, %1292 : vector<1x128xf32>
    %1294 = arith.mulf %172, %1293 : vector<1x128xf32>
    %1295 = arith.subf %1074, %131 : vector<1x128xf32>
    %1296 = arith.mulf %1131, %1295 : vector<1x128xf32>
    %1297 = arith.subf %1072, %115 : vector<1x128xf32>
    %1298 = arith.mulf %1132, %1297 : vector<1x128xf32>
    %1299 = arith.subf %1296, %1298 : vector<1x128xf32>
    %1300 = arith.mulf %172, %1299 : vector<1x128xf32>
    %1301 = arith.subf %1098, %131 : vector<1x128xf32>
    %1302 = arith.mulf %1131, %1301 : vector<1x128xf32>
    %1303 = arith.subf %1096, %115 : vector<1x128xf32>
    %1304 = arith.mulf %1132, %1303 : vector<1x128xf32>
    %1305 = arith.subf %1302, %1304 : vector<1x128xf32>
    %1306 = arith.mulf %172, %1305 : vector<1x128xf32>
    %1307 = arith.subf %1102, %131 : vector<1x128xf32>
    %1308 = arith.mulf %1131, %1307 : vector<1x128xf32>
    %1309 = arith.subf %1100, %115 : vector<1x128xf32>
    %1310 = arith.mulf %1132, %1309 : vector<1x128xf32>
    %1311 = arith.subf %1308, %1310 : vector<1x128xf32>
    %1312 = arith.mulf %172, %1311 : vector<1x128xf32>
    %1313 = arith.subf %1126, %131 : vector<1x128xf32>
    %1314 = arith.mulf %1131, %1313 : vector<1x128xf32>
    %1315 = arith.subf %1124, %115 : vector<1x128xf32>
    %1316 = arith.mulf %1132, %1315 : vector<1x128xf32>
    %1317 = arith.subf %1314, %1316 : vector<1x128xf32>
    %1318 = arith.mulf %172, %1317 : vector<1x128xf32>
    %1319 = arith.subf %1130, %131 : vector<1x128xf32>
    %1320 = arith.mulf %1131, %1319 : vector<1x128xf32>
    %1321 = arith.subf %1128, %115 : vector<1x128xf32>
    %1322 = arith.mulf %1132, %1321 : vector<1x128xf32>
    %1323 = arith.subf %1320, %1322 : vector<1x128xf32>
    %1324 = arith.mulf %172, %1323 : vector<1x128xf32>
    %cst_180 = arith.constant 0.000000e+00 : f32
    %1325 = vector.broadcast %cst_180 : f32 to vector<1x128xf32>
    %1326 = arith.cmpf oge, %1138, %1325 : vector<1x128xf32>
    %cst_181 = arith.constant 0.000000e+00 : f32
    %1327 = vector.broadcast %cst_181 : f32 to vector<1x128xf32>
    %1328 = arith.cmpf oge, %1144, %1327 : vector<1x128xf32>
    %1329 = arith.xori %1326, %1328 : vector<1x128xi1>
    %1330 = arith.subf %1138, %1144 : vector<1x128xf32>
    %cst_182 = arith.constant 0.000000e+00 : f32
    %1331 = vector.broadcast %cst_182 : f32 to vector<1x128xf32>
    %1332 = arith.cmpf oge, %1330, %1331 : vector<1x128xf32>
    %cst_183 = arith.constant 9.99999968E-21 : f32
    %1333 = vector.broadcast %cst_183 : f32 to vector<1x128xf32>
    %1334 = arith.maximumf %1330, %1333 : vector<1x128xf32>
    %cst_184 = arith.constant -9.99999968E-21 : f32
    %1335 = vector.broadcast %cst_184 : f32 to vector<1x128xf32>
    %1336 = arith.minimumf %1330, %1335 : vector<1x128xf32>
    %1337 = arith.select %1332, %1334, %1336 : vector<1x128xi1>, vector<1x128xf32>
    %1338 = arith.divf %1138, %1337 : vector<1x128xf32>
    %1339 = arith.subf %708, %704 : vector<1x128xf32>
    %1340 = arith.mulf %1338, %1339 : vector<1x128xf32>
    %1341 = arith.addf %704, %1340 : vector<1x128xf32>
    %1342 = arith.subf %710, %706 : vector<1x128xf32>
    %1343 = arith.mulf %1338, %1342 : vector<1x128xf32>
    %1344 = arith.addf %706, %1343 : vector<1x128xf32>
    %1345 = arith.select %1326, %708, %115 : vector<1x128xi1>, vector<1x128xf32>
    %1346 = arith.select %1329, %1341, %1345 : vector<1x128xi1>, vector<1x128xf32>
    %1347 = arith.select %1326, %710, %131 : vector<1x128xi1>, vector<1x128xf32>
    %1348 = arith.select %1329, %1344, %1347 : vector<1x128xi1>, vector<1x128xf32>
    %1349 = arith.select %1326, %1341, %115 : vector<1x128xi1>, vector<1x128xf32>
    %1350 = arith.select %1328, %708, %1349 : vector<1x128xi1>, vector<1x128xf32>
    %1351 = arith.select %1326, %1344, %131 : vector<1x128xi1>, vector<1x128xf32>
    %1352 = arith.select %1328, %710, %1351 : vector<1x128xi1>, vector<1x128xf32>
    %cst_185 = arith.constant 0.000000e+00 : f32
    %1353 = vector.broadcast %cst_185 : f32 to vector<1x128xf32>
    %1354 = arith.cmpf oge, %1144, %1353 : vector<1x128xf32>
    %cst_186 = arith.constant 0.000000e+00 : f32
    %1355 = vector.broadcast %cst_186 : f32 to vector<1x128xf32>
    %1356 = arith.cmpf oge, %1150, %1355 : vector<1x128xf32>
    %1357 = arith.xori %1354, %1356 : vector<1x128xi1>
    %1358 = arith.subf %1144, %1150 : vector<1x128xf32>
    %cst_187 = arith.constant 0.000000e+00 : f32
    %1359 = vector.broadcast %cst_187 : f32 to vector<1x128xf32>
    %1360 = arith.cmpf oge, %1358, %1359 : vector<1x128xf32>
    %cst_188 = arith.constant 9.99999968E-21 : f32
    %1361 = vector.broadcast %cst_188 : f32 to vector<1x128xf32>
    %1362 = arith.maximumf %1358, %1361 : vector<1x128xf32>
    %cst_189 = arith.constant -9.99999968E-21 : f32
    %1363 = vector.broadcast %cst_189 : f32 to vector<1x128xf32>
    %1364 = arith.minimumf %1358, %1363 : vector<1x128xf32>
    %1365 = arith.select %1360, %1362, %1364 : vector<1x128xi1>, vector<1x128xf32>
    %1366 = arith.divf %1144, %1365 : vector<1x128xf32>
    %1367 = arith.subf %732, %708 : vector<1x128xf32>
    %1368 = arith.mulf %1366, %1367 : vector<1x128xf32>
    %1369 = arith.addf %708, %1368 : vector<1x128xf32>
    %1370 = arith.subf %734, %710 : vector<1x128xf32>
    %1371 = arith.mulf %1366, %1370 : vector<1x128xf32>
    %1372 = arith.addf %710, %1371 : vector<1x128xf32>
    %1373 = arith.select %1354, %732, %115 : vector<1x128xi1>, vector<1x128xf32>
    %1374 = arith.select %1357, %1369, %1373 : vector<1x128xi1>, vector<1x128xf32>
    %1375 = arith.select %1354, %734, %131 : vector<1x128xi1>, vector<1x128xf32>
    %1376 = arith.select %1357, %1372, %1375 : vector<1x128xi1>, vector<1x128xf32>
    %1377 = arith.select %1354, %1369, %115 : vector<1x128xi1>, vector<1x128xf32>
    %1378 = arith.select %1356, %732, %1377 : vector<1x128xi1>, vector<1x128xf32>
    %1379 = arith.select %1354, %1372, %131 : vector<1x128xi1>, vector<1x128xf32>
    %1380 = arith.select %1356, %734, %1379 : vector<1x128xi1>, vector<1x128xf32>
    %cst_190 = arith.constant 0.000000e+00 : f32
    %1381 = vector.broadcast %cst_190 : f32 to vector<1x128xf32>
    %1382 = arith.cmpf oge, %1150, %1381 : vector<1x128xf32>
    %cst_191 = arith.constant 0.000000e+00 : f32
    %1383 = vector.broadcast %cst_191 : f32 to vector<1x128xf32>
    %1384 = arith.cmpf oge, %1156, %1383 : vector<1x128xf32>
    %1385 = arith.xori %1382, %1384 : vector<1x128xi1>
    %1386 = arith.subf %1150, %1156 : vector<1x128xf32>
    %cst_192 = arith.constant 0.000000e+00 : f32
    %1387 = vector.broadcast %cst_192 : f32 to vector<1x128xf32>
    %1388 = arith.cmpf oge, %1386, %1387 : vector<1x128xf32>
    %cst_193 = arith.constant 9.99999968E-21 : f32
    %1389 = vector.broadcast %cst_193 : f32 to vector<1x128xf32>
    %1390 = arith.maximumf %1386, %1389 : vector<1x128xf32>
    %cst_194 = arith.constant -9.99999968E-21 : f32
    %1391 = vector.broadcast %cst_194 : f32 to vector<1x128xf32>
    %1392 = arith.minimumf %1386, %1391 : vector<1x128xf32>
    %1393 = arith.select %1388, %1390, %1392 : vector<1x128xi1>, vector<1x128xf32>
    %1394 = arith.divf %1150, %1393 : vector<1x128xf32>
    %1395 = arith.subf %736, %732 : vector<1x128xf32>
    %1396 = arith.mulf %1394, %1395 : vector<1x128xf32>
    %1397 = arith.addf %732, %1396 : vector<1x128xf32>
    %1398 = arith.subf %738, %734 : vector<1x128xf32>
    %1399 = arith.mulf %1394, %1398 : vector<1x128xf32>
    %1400 = arith.addf %734, %1399 : vector<1x128xf32>
    %1401 = arith.select %1382, %736, %115 : vector<1x128xi1>, vector<1x128xf32>
    %1402 = arith.select %1385, %1397, %1401 : vector<1x128xi1>, vector<1x128xf32>
    %1403 = arith.select %1382, %738, %131 : vector<1x128xi1>, vector<1x128xf32>
    %1404 = arith.select %1385, %1400, %1403 : vector<1x128xi1>, vector<1x128xf32>
    %1405 = arith.select %1382, %1397, %115 : vector<1x128xi1>, vector<1x128xf32>
    %1406 = arith.select %1384, %736, %1405 : vector<1x128xi1>, vector<1x128xf32>
    %1407 = arith.select %1382, %1400, %131 : vector<1x128xi1>, vector<1x128xf32>
    %1408 = arith.select %1384, %738, %1407 : vector<1x128xi1>, vector<1x128xf32>
    %cst_195 = arith.constant 0.000000e+00 : f32
    %1409 = vector.broadcast %cst_195 : f32 to vector<1x128xf32>
    %1410 = arith.cmpf oge, %1156, %1409 : vector<1x128xf32>
    %cst_196 = arith.constant 0.000000e+00 : f32
    %1411 = vector.broadcast %cst_196 : f32 to vector<1x128xf32>
    %1412 = arith.cmpf oge, %1162, %1411 : vector<1x128xf32>
    %1413 = arith.xori %1410, %1412 : vector<1x128xi1>
    %1414 = arith.subf %1156, %1162 : vector<1x128xf32>
    %cst_197 = arith.constant 0.000000e+00 : f32
    %1415 = vector.broadcast %cst_197 : f32 to vector<1x128xf32>
    %1416 = arith.cmpf oge, %1414, %1415 : vector<1x128xf32>
    %cst_198 = arith.constant 9.99999968E-21 : f32
    %1417 = vector.broadcast %cst_198 : f32 to vector<1x128xf32>
    %1418 = arith.maximumf %1414, %1417 : vector<1x128xf32>
    %cst_199 = arith.constant -9.99999968E-21 : f32
    %1419 = vector.broadcast %cst_199 : f32 to vector<1x128xf32>
    %1420 = arith.minimumf %1414, %1419 : vector<1x128xf32>
    %1421 = arith.select %1416, %1418, %1420 : vector<1x128xi1>, vector<1x128xf32>
    %1422 = arith.divf %1156, %1421 : vector<1x128xf32>
    %1423 = arith.subf %760, %736 : vector<1x128xf32>
    %1424 = arith.mulf %1422, %1423 : vector<1x128xf32>
    %1425 = arith.addf %736, %1424 : vector<1x128xf32>
    %1426 = arith.subf %762, %738 : vector<1x128xf32>
    %1427 = arith.mulf %1422, %1426 : vector<1x128xf32>
    %1428 = arith.addf %738, %1427 : vector<1x128xf32>
    %1429 = arith.select %1410, %760, %115 : vector<1x128xi1>, vector<1x128xf32>
    %1430 = arith.select %1413, %1425, %1429 : vector<1x128xi1>, vector<1x128xf32>
    %1431 = arith.select %1410, %762, %131 : vector<1x128xi1>, vector<1x128xf32>
    %1432 = arith.select %1413, %1428, %1431 : vector<1x128xi1>, vector<1x128xf32>
    %1433 = arith.select %1410, %1425, %115 : vector<1x128xi1>, vector<1x128xf32>
    %1434 = arith.select %1412, %760, %1433 : vector<1x128xi1>, vector<1x128xf32>
    %1435 = arith.select %1410, %1428, %131 : vector<1x128xi1>, vector<1x128xf32>
    %1436 = arith.select %1412, %762, %1435 : vector<1x128xi1>, vector<1x128xf32>
    %cst_200 = arith.constant 0.000000e+00 : f32
    %1437 = vector.broadcast %cst_200 : f32 to vector<1x128xf32>
    %1438 = arith.cmpf oge, %1162, %1437 : vector<1x128xf32>
    %cst_201 = arith.constant 0.000000e+00 : f32
    %1439 = vector.broadcast %cst_201 : f32 to vector<1x128xf32>
    %1440 = arith.cmpf oge, %1168, %1439 : vector<1x128xf32>
    %1441 = arith.xori %1438, %1440 : vector<1x128xi1>
    %1442 = arith.subf %1162, %1168 : vector<1x128xf32>
    %cst_202 = arith.constant 0.000000e+00 : f32
    %1443 = vector.broadcast %cst_202 : f32 to vector<1x128xf32>
    %1444 = arith.cmpf oge, %1442, %1443 : vector<1x128xf32>
    %cst_203 = arith.constant 9.99999968E-21 : f32
    %1445 = vector.broadcast %cst_203 : f32 to vector<1x128xf32>
    %1446 = arith.maximumf %1442, %1445 : vector<1x128xf32>
    %cst_204 = arith.constant -9.99999968E-21 : f32
    %1447 = vector.broadcast %cst_204 : f32 to vector<1x128xf32>
    %1448 = arith.minimumf %1442, %1447 : vector<1x128xf32>
    %1449 = arith.select %1444, %1446, %1448 : vector<1x128xi1>, vector<1x128xf32>
    %1450 = arith.divf %1162, %1449 : vector<1x128xf32>
    %1451 = arith.subf %764, %760 : vector<1x128xf32>
    %1452 = arith.mulf %1450, %1451 : vector<1x128xf32>
    %1453 = arith.addf %760, %1452 : vector<1x128xf32>
    %1454 = arith.subf %766, %762 : vector<1x128xf32>
    %1455 = arith.mulf %1450, %1454 : vector<1x128xf32>
    %1456 = arith.addf %762, %1455 : vector<1x128xf32>
    %1457 = arith.select %1438, %764, %115 : vector<1x128xi1>, vector<1x128xf32>
    %1458 = arith.select %1441, %1453, %1457 : vector<1x128xi1>, vector<1x128xf32>
    %1459 = arith.select %1438, %766, %131 : vector<1x128xi1>, vector<1x128xf32>
    %1460 = arith.select %1441, %1456, %1459 : vector<1x128xi1>, vector<1x128xf32>
    %1461 = arith.select %1438, %1453, %115 : vector<1x128xi1>, vector<1x128xf32>
    %1462 = arith.select %1440, %764, %1461 : vector<1x128xi1>, vector<1x128xf32>
    %1463 = arith.select %1438, %1456, %131 : vector<1x128xi1>, vector<1x128xf32>
    %1464 = arith.select %1440, %766, %1463 : vector<1x128xi1>, vector<1x128xf32>
    %cst_205 = arith.constant 0.000000e+00 : f32
    %1465 = vector.broadcast %cst_205 : f32 to vector<1x128xf32>
    %1466 = arith.cmpf oge, %1168, %1465 : vector<1x128xf32>
    %cst_206 = arith.constant 0.000000e+00 : f32
    %1467 = vector.broadcast %cst_206 : f32 to vector<1x128xf32>
    %1468 = arith.cmpf oge, %1174, %1467 : vector<1x128xf32>
    %1469 = arith.xori %1466, %1468 : vector<1x128xi1>
    %1470 = arith.subf %1168, %1174 : vector<1x128xf32>
    %cst_207 = arith.constant 0.000000e+00 : f32
    %1471 = vector.broadcast %cst_207 : f32 to vector<1x128xf32>
    %1472 = arith.cmpf oge, %1470, %1471 : vector<1x128xf32>
    %cst_208 = arith.constant 9.99999968E-21 : f32
    %1473 = vector.broadcast %cst_208 : f32 to vector<1x128xf32>
    %1474 = arith.maximumf %1470, %1473 : vector<1x128xf32>
    %cst_209 = arith.constant -9.99999968E-21 : f32
    %1475 = vector.broadcast %cst_209 : f32 to vector<1x128xf32>
    %1476 = arith.minimumf %1470, %1475 : vector<1x128xf32>
    %1477 = arith.select %1472, %1474, %1476 : vector<1x128xi1>, vector<1x128xf32>
    %1478 = arith.divf %1168, %1477 : vector<1x128xf32>
    %1479 = arith.subf %788, %764 : vector<1x128xf32>
    %1480 = arith.mulf %1478, %1479 : vector<1x128xf32>
    %1481 = arith.addf %764, %1480 : vector<1x128xf32>
    %1482 = arith.subf %790, %766 : vector<1x128xf32>
    %1483 = arith.mulf %1478, %1482 : vector<1x128xf32>
    %1484 = arith.addf %766, %1483 : vector<1x128xf32>
    %1485 = arith.select %1466, %788, %115 : vector<1x128xi1>, vector<1x128xf32>
    %1486 = arith.select %1469, %1481, %1485 : vector<1x128xi1>, vector<1x128xf32>
    %1487 = arith.select %1466, %790, %131 : vector<1x128xi1>, vector<1x128xf32>
    %1488 = arith.select %1469, %1484, %1487 : vector<1x128xi1>, vector<1x128xf32>
    %1489 = arith.select %1466, %1481, %115 : vector<1x128xi1>, vector<1x128xf32>
    %1490 = arith.select %1468, %788, %1489 : vector<1x128xi1>, vector<1x128xf32>
    %1491 = arith.select %1466, %1484, %131 : vector<1x128xi1>, vector<1x128xf32>
    %1492 = arith.select %1468, %790, %1491 : vector<1x128xi1>, vector<1x128xf32>
    %cst_210 = arith.constant 0.000000e+00 : f32
    %1493 = vector.broadcast %cst_210 : f32 to vector<1x128xf32>
    %1494 = arith.cmpf oge, %1174, %1493 : vector<1x128xf32>
    %cst_211 = arith.constant 0.000000e+00 : f32
    %1495 = vector.broadcast %cst_211 : f32 to vector<1x128xf32>
    %1496 = arith.cmpf oge, %1180, %1495 : vector<1x128xf32>
    %1497 = arith.xori %1494, %1496 : vector<1x128xi1>
    %1498 = arith.subf %1174, %1180 : vector<1x128xf32>
    %cst_212 = arith.constant 0.000000e+00 : f32
    %1499 = vector.broadcast %cst_212 : f32 to vector<1x128xf32>
    %1500 = arith.cmpf oge, %1498, %1499 : vector<1x128xf32>
    %cst_213 = arith.constant 9.99999968E-21 : f32
    %1501 = vector.broadcast %cst_213 : f32 to vector<1x128xf32>
    %1502 = arith.maximumf %1498, %1501 : vector<1x128xf32>
    %cst_214 = arith.constant -9.99999968E-21 : f32
    %1503 = vector.broadcast %cst_214 : f32 to vector<1x128xf32>
    %1504 = arith.minimumf %1498, %1503 : vector<1x128xf32>
    %1505 = arith.select %1500, %1502, %1504 : vector<1x128xi1>, vector<1x128xf32>
    %1506 = arith.divf %1174, %1505 : vector<1x128xf32>
    %1507 = arith.subf %792, %788 : vector<1x128xf32>
    %1508 = arith.mulf %1506, %1507 : vector<1x128xf32>
    %1509 = arith.addf %788, %1508 : vector<1x128xf32>
    %1510 = arith.subf %794, %790 : vector<1x128xf32>
    %1511 = arith.mulf %1506, %1510 : vector<1x128xf32>
    %1512 = arith.addf %790, %1511 : vector<1x128xf32>
    %1513 = arith.select %1494, %792, %115 : vector<1x128xi1>, vector<1x128xf32>
    %1514 = arith.select %1497, %1509, %1513 : vector<1x128xi1>, vector<1x128xf32>
    %1515 = arith.select %1494, %794, %131 : vector<1x128xi1>, vector<1x128xf32>
    %1516 = arith.select %1497, %1512, %1515 : vector<1x128xi1>, vector<1x128xf32>
    %1517 = arith.select %1494, %1509, %115 : vector<1x128xi1>, vector<1x128xf32>
    %1518 = arith.select %1496, %792, %1517 : vector<1x128xi1>, vector<1x128xf32>
    %1519 = arith.select %1494, %1512, %131 : vector<1x128xi1>, vector<1x128xf32>
    %1520 = arith.select %1496, %794, %1519 : vector<1x128xi1>, vector<1x128xf32>
    %cst_215 = arith.constant 0.000000e+00 : f32
    %1521 = vector.broadcast %cst_215 : f32 to vector<1x128xf32>
    %1522 = arith.cmpf oge, %1180, %1521 : vector<1x128xf32>
    %cst_216 = arith.constant 0.000000e+00 : f32
    %1523 = vector.broadcast %cst_216 : f32 to vector<1x128xf32>
    %1524 = arith.cmpf oge, %1186, %1523 : vector<1x128xf32>
    %1525 = arith.xori %1522, %1524 : vector<1x128xi1>
    %1526 = arith.subf %1180, %1186 : vector<1x128xf32>
    %cst_217 = arith.constant 0.000000e+00 : f32
    %1527 = vector.broadcast %cst_217 : f32 to vector<1x128xf32>
    %1528 = arith.cmpf oge, %1526, %1527 : vector<1x128xf32>
    %cst_218 = arith.constant 9.99999968E-21 : f32
    %1529 = vector.broadcast %cst_218 : f32 to vector<1x128xf32>
    %1530 = arith.maximumf %1526, %1529 : vector<1x128xf32>
    %cst_219 = arith.constant -9.99999968E-21 : f32
    %1531 = vector.broadcast %cst_219 : f32 to vector<1x128xf32>
    %1532 = arith.minimumf %1526, %1531 : vector<1x128xf32>
    %1533 = arith.select %1528, %1530, %1532 : vector<1x128xi1>, vector<1x128xf32>
    %1534 = arith.divf %1180, %1533 : vector<1x128xf32>
    %1535 = arith.subf %816, %792 : vector<1x128xf32>
    %1536 = arith.mulf %1534, %1535 : vector<1x128xf32>
    %1537 = arith.addf %792, %1536 : vector<1x128xf32>
    %1538 = arith.subf %818, %794 : vector<1x128xf32>
    %1539 = arith.mulf %1534, %1538 : vector<1x128xf32>
    %1540 = arith.addf %794, %1539 : vector<1x128xf32>
    %1541 = arith.select %1522, %816, %115 : vector<1x128xi1>, vector<1x128xf32>
    %1542 = arith.select %1525, %1537, %1541 : vector<1x128xi1>, vector<1x128xf32>
    %1543 = arith.select %1522, %818, %131 : vector<1x128xi1>, vector<1x128xf32>
    %1544 = arith.select %1525, %1540, %1543 : vector<1x128xi1>, vector<1x128xf32>
    %1545 = arith.select %1522, %1537, %115 : vector<1x128xi1>, vector<1x128xf32>
    %1546 = arith.select %1524, %816, %1545 : vector<1x128xi1>, vector<1x128xf32>
    %1547 = arith.select %1522, %1540, %131 : vector<1x128xi1>, vector<1x128xf32>
    %1548 = arith.select %1524, %818, %1547 : vector<1x128xi1>, vector<1x128xf32>
    %cst_220 = arith.constant 0.000000e+00 : f32
    %1549 = vector.broadcast %cst_220 : f32 to vector<1x128xf32>
    %1550 = arith.cmpf oge, %1186, %1549 : vector<1x128xf32>
    %cst_221 = arith.constant 0.000000e+00 : f32
    %1551 = vector.broadcast %cst_221 : f32 to vector<1x128xf32>
    %1552 = arith.cmpf oge, %1192, %1551 : vector<1x128xf32>
    %1553 = arith.xori %1550, %1552 : vector<1x128xi1>
    %1554 = arith.subf %1186, %1192 : vector<1x128xf32>
    %cst_222 = arith.constant 0.000000e+00 : f32
    %1555 = vector.broadcast %cst_222 : f32 to vector<1x128xf32>
    %1556 = arith.cmpf oge, %1554, %1555 : vector<1x128xf32>
    %cst_223 = arith.constant 9.99999968E-21 : f32
    %1557 = vector.broadcast %cst_223 : f32 to vector<1x128xf32>
    %1558 = arith.maximumf %1554, %1557 : vector<1x128xf32>
    %cst_224 = arith.constant -9.99999968E-21 : f32
    %1559 = vector.broadcast %cst_224 : f32 to vector<1x128xf32>
    %1560 = arith.minimumf %1554, %1559 : vector<1x128xf32>
    %1561 = arith.select %1556, %1558, %1560 : vector<1x128xi1>, vector<1x128xf32>
    %1562 = arith.divf %1186, %1561 : vector<1x128xf32>
    %1563 = arith.subf %820, %816 : vector<1x128xf32>
    %1564 = arith.mulf %1562, %1563 : vector<1x128xf32>
    %1565 = arith.addf %816, %1564 : vector<1x128xf32>
    %1566 = arith.subf %822, %818 : vector<1x128xf32>
    %1567 = arith.mulf %1562, %1566 : vector<1x128xf32>
    %1568 = arith.addf %818, %1567 : vector<1x128xf32>
    %1569 = arith.select %1550, %820, %115 : vector<1x128xi1>, vector<1x128xf32>
    %1570 = arith.select %1553, %1565, %1569 : vector<1x128xi1>, vector<1x128xf32>
    %1571 = arith.select %1550, %822, %131 : vector<1x128xi1>, vector<1x128xf32>
    %1572 = arith.select %1553, %1568, %1571 : vector<1x128xi1>, vector<1x128xf32>
    %1573 = arith.select %1550, %1565, %115 : vector<1x128xi1>, vector<1x128xf32>
    %1574 = arith.select %1552, %820, %1573 : vector<1x128xi1>, vector<1x128xf32>
    %1575 = arith.select %1550, %1568, %131 : vector<1x128xi1>, vector<1x128xf32>
    %1576 = arith.select %1552, %822, %1575 : vector<1x128xi1>, vector<1x128xf32>
    %cst_225 = arith.constant 0.000000e+00 : f32
    %1577 = vector.broadcast %cst_225 : f32 to vector<1x128xf32>
    %1578 = arith.cmpf oge, %1192, %1577 : vector<1x128xf32>
    %cst_226 = arith.constant 0.000000e+00 : f32
    %1579 = vector.broadcast %cst_226 : f32 to vector<1x128xf32>
    %1580 = arith.cmpf oge, %1198, %1579 : vector<1x128xf32>
    %1581 = arith.xori %1578, %1580 : vector<1x128xi1>
    %1582 = arith.subf %1192, %1198 : vector<1x128xf32>
    %cst_227 = arith.constant 0.000000e+00 : f32
    %1583 = vector.broadcast %cst_227 : f32 to vector<1x128xf32>
    %1584 = arith.cmpf oge, %1582, %1583 : vector<1x128xf32>
    %cst_228 = arith.constant 9.99999968E-21 : f32
    %1585 = vector.broadcast %cst_228 : f32 to vector<1x128xf32>
    %1586 = arith.maximumf %1582, %1585 : vector<1x128xf32>
    %cst_229 = arith.constant -9.99999968E-21 : f32
    %1587 = vector.broadcast %cst_229 : f32 to vector<1x128xf32>
    %1588 = arith.minimumf %1582, %1587 : vector<1x128xf32>
    %1589 = arith.select %1584, %1586, %1588 : vector<1x128xi1>, vector<1x128xf32>
    %1590 = arith.divf %1192, %1589 : vector<1x128xf32>
    %1591 = arith.subf %844, %820 : vector<1x128xf32>
    %1592 = arith.mulf %1590, %1591 : vector<1x128xf32>
    %1593 = arith.addf %820, %1592 : vector<1x128xf32>
    %1594 = arith.subf %846, %822 : vector<1x128xf32>
    %1595 = arith.mulf %1590, %1594 : vector<1x128xf32>
    %1596 = arith.addf %822, %1595 : vector<1x128xf32>
    %1597 = arith.select %1578, %844, %115 : vector<1x128xi1>, vector<1x128xf32>
    %1598 = arith.select %1581, %1593, %1597 : vector<1x128xi1>, vector<1x128xf32>
    %1599 = arith.select %1578, %846, %131 : vector<1x128xi1>, vector<1x128xf32>
    %1600 = arith.select %1581, %1596, %1599 : vector<1x128xi1>, vector<1x128xf32>
    %1601 = arith.select %1578, %1593, %115 : vector<1x128xi1>, vector<1x128xf32>
    %1602 = arith.select %1580, %844, %1601 : vector<1x128xi1>, vector<1x128xf32>
    %1603 = arith.select %1578, %1596, %131 : vector<1x128xi1>, vector<1x128xf32>
    %1604 = arith.select %1580, %846, %1603 : vector<1x128xi1>, vector<1x128xf32>
    %cst_230 = arith.constant 0.000000e+00 : f32
    %1605 = vector.broadcast %cst_230 : f32 to vector<1x128xf32>
    %1606 = arith.cmpf oge, %1198, %1605 : vector<1x128xf32>
    %cst_231 = arith.constant 0.000000e+00 : f32
    %1607 = vector.broadcast %cst_231 : f32 to vector<1x128xf32>
    %1608 = arith.cmpf oge, %1204, %1607 : vector<1x128xf32>
    %1609 = arith.xori %1606, %1608 : vector<1x128xi1>
    %1610 = arith.subf %1198, %1204 : vector<1x128xf32>
    %cst_232 = arith.constant 0.000000e+00 : f32
    %1611 = vector.broadcast %cst_232 : f32 to vector<1x128xf32>
    %1612 = arith.cmpf oge, %1610, %1611 : vector<1x128xf32>
    %cst_233 = arith.constant 9.99999968E-21 : f32
    %1613 = vector.broadcast %cst_233 : f32 to vector<1x128xf32>
    %1614 = arith.maximumf %1610, %1613 : vector<1x128xf32>
    %cst_234 = arith.constant -9.99999968E-21 : f32
    %1615 = vector.broadcast %cst_234 : f32 to vector<1x128xf32>
    %1616 = arith.minimumf %1610, %1615 : vector<1x128xf32>
    %1617 = arith.select %1612, %1614, %1616 : vector<1x128xi1>, vector<1x128xf32>
    %1618 = arith.divf %1198, %1617 : vector<1x128xf32>
    %1619 = arith.subf %848, %844 : vector<1x128xf32>
    %1620 = arith.mulf %1618, %1619 : vector<1x128xf32>
    %1621 = arith.addf %844, %1620 : vector<1x128xf32>
    %1622 = arith.subf %850, %846 : vector<1x128xf32>
    %1623 = arith.mulf %1618, %1622 : vector<1x128xf32>
    %1624 = arith.addf %846, %1623 : vector<1x128xf32>
    %1625 = arith.select %1606, %848, %115 : vector<1x128xi1>, vector<1x128xf32>
    %1626 = arith.select %1609, %1621, %1625 : vector<1x128xi1>, vector<1x128xf32>
    %1627 = arith.select %1606, %850, %131 : vector<1x128xi1>, vector<1x128xf32>
    %1628 = arith.select %1609, %1624, %1627 : vector<1x128xi1>, vector<1x128xf32>
    %1629 = arith.select %1606, %1621, %115 : vector<1x128xi1>, vector<1x128xf32>
    %1630 = arith.select %1608, %848, %1629 : vector<1x128xi1>, vector<1x128xf32>
    %1631 = arith.select %1606, %1624, %131 : vector<1x128xi1>, vector<1x128xf32>
    %1632 = arith.select %1608, %850, %1631 : vector<1x128xi1>, vector<1x128xf32>
    %cst_235 = arith.constant 0.000000e+00 : f32
    %1633 = vector.broadcast %cst_235 : f32 to vector<1x128xf32>
    %1634 = arith.cmpf oge, %1204, %1633 : vector<1x128xf32>
    %cst_236 = arith.constant 0.000000e+00 : f32
    %1635 = vector.broadcast %cst_236 : f32 to vector<1x128xf32>
    %1636 = arith.cmpf oge, %1210, %1635 : vector<1x128xf32>
    %1637 = arith.xori %1634, %1636 : vector<1x128xi1>
    %1638 = arith.subf %1204, %1210 : vector<1x128xf32>
    %cst_237 = arith.constant 0.000000e+00 : f32
    %1639 = vector.broadcast %cst_237 : f32 to vector<1x128xf32>
    %1640 = arith.cmpf oge, %1638, %1639 : vector<1x128xf32>
    %cst_238 = arith.constant 9.99999968E-21 : f32
    %1641 = vector.broadcast %cst_238 : f32 to vector<1x128xf32>
    %1642 = arith.maximumf %1638, %1641 : vector<1x128xf32>
    %cst_239 = arith.constant -9.99999968E-21 : f32
    %1643 = vector.broadcast %cst_239 : f32 to vector<1x128xf32>
    %1644 = arith.minimumf %1638, %1643 : vector<1x128xf32>
    %1645 = arith.select %1640, %1642, %1644 : vector<1x128xi1>, vector<1x128xf32>
    %1646 = arith.divf %1204, %1645 : vector<1x128xf32>
    %1647 = arith.subf %872, %848 : vector<1x128xf32>
    %1648 = arith.mulf %1646, %1647 : vector<1x128xf32>
    %1649 = arith.addf %848, %1648 : vector<1x128xf32>
    %1650 = arith.subf %874, %850 : vector<1x128xf32>
    %1651 = arith.mulf %1646, %1650 : vector<1x128xf32>
    %1652 = arith.addf %850, %1651 : vector<1x128xf32>
    %1653 = arith.select %1634, %872, %115 : vector<1x128xi1>, vector<1x128xf32>
    %1654 = arith.select %1637, %1649, %1653 : vector<1x128xi1>, vector<1x128xf32>
    %1655 = arith.select %1634, %874, %131 : vector<1x128xi1>, vector<1x128xf32>
    %1656 = arith.select %1637, %1652, %1655 : vector<1x128xi1>, vector<1x128xf32>
    %1657 = arith.select %1634, %1649, %115 : vector<1x128xi1>, vector<1x128xf32>
    %1658 = arith.select %1636, %872, %1657 : vector<1x128xi1>, vector<1x128xf32>
    %1659 = arith.select %1634, %1652, %131 : vector<1x128xi1>, vector<1x128xf32>
    %1660 = arith.select %1636, %874, %1659 : vector<1x128xi1>, vector<1x128xf32>
    %cst_240 = arith.constant 0.000000e+00 : f32
    %1661 = vector.broadcast %cst_240 : f32 to vector<1x128xf32>
    %1662 = arith.cmpf oge, %1210, %1661 : vector<1x128xf32>
    %cst_241 = arith.constant 0.000000e+00 : f32
    %1663 = vector.broadcast %cst_241 : f32 to vector<1x128xf32>
    %1664 = arith.cmpf oge, %1216, %1663 : vector<1x128xf32>
    %1665 = arith.xori %1662, %1664 : vector<1x128xi1>
    %1666 = arith.subf %1210, %1216 : vector<1x128xf32>
    %cst_242 = arith.constant 0.000000e+00 : f32
    %1667 = vector.broadcast %cst_242 : f32 to vector<1x128xf32>
    %1668 = arith.cmpf oge, %1666, %1667 : vector<1x128xf32>
    %cst_243 = arith.constant 9.99999968E-21 : f32
    %1669 = vector.broadcast %cst_243 : f32 to vector<1x128xf32>
    %1670 = arith.maximumf %1666, %1669 : vector<1x128xf32>
    %cst_244 = arith.constant -9.99999968E-21 : f32
    %1671 = vector.broadcast %cst_244 : f32 to vector<1x128xf32>
    %1672 = arith.minimumf %1666, %1671 : vector<1x128xf32>
    %1673 = arith.select %1668, %1670, %1672 : vector<1x128xi1>, vector<1x128xf32>
    %1674 = arith.divf %1210, %1673 : vector<1x128xf32>
    %1675 = arith.subf %876, %872 : vector<1x128xf32>
    %1676 = arith.mulf %1674, %1675 : vector<1x128xf32>
    %1677 = arith.addf %872, %1676 : vector<1x128xf32>
    %1678 = arith.subf %878, %874 : vector<1x128xf32>
    %1679 = arith.mulf %1674, %1678 : vector<1x128xf32>
    %1680 = arith.addf %874, %1679 : vector<1x128xf32>
    %1681 = arith.select %1662, %876, %115 : vector<1x128xi1>, vector<1x128xf32>
    %1682 = arith.select %1665, %1677, %1681 : vector<1x128xi1>, vector<1x128xf32>
    %1683 = arith.select %1662, %878, %131 : vector<1x128xi1>, vector<1x128xf32>
    %1684 = arith.select %1665, %1680, %1683 : vector<1x128xi1>, vector<1x128xf32>
    %1685 = arith.select %1662, %1677, %115 : vector<1x128xi1>, vector<1x128xf32>
    %1686 = arith.select %1664, %876, %1685 : vector<1x128xi1>, vector<1x128xf32>
    %1687 = arith.select %1662, %1680, %131 : vector<1x128xi1>, vector<1x128xf32>
    %1688 = arith.select %1664, %878, %1687 : vector<1x128xi1>, vector<1x128xf32>
    %cst_245 = arith.constant 0.000000e+00 : f32
    %1689 = vector.broadcast %cst_245 : f32 to vector<1x128xf32>
    %1690 = arith.cmpf oge, %1216, %1689 : vector<1x128xf32>
    %cst_246 = arith.constant 0.000000e+00 : f32
    %1691 = vector.broadcast %cst_246 : f32 to vector<1x128xf32>
    %1692 = arith.cmpf oge, %1222, %1691 : vector<1x128xf32>
    %1693 = arith.xori %1690, %1692 : vector<1x128xi1>
    %1694 = arith.subf %1216, %1222 : vector<1x128xf32>
    %cst_247 = arith.constant 0.000000e+00 : f32
    %1695 = vector.broadcast %cst_247 : f32 to vector<1x128xf32>
    %1696 = arith.cmpf oge, %1694, %1695 : vector<1x128xf32>
    %cst_248 = arith.constant 9.99999968E-21 : f32
    %1697 = vector.broadcast %cst_248 : f32 to vector<1x128xf32>
    %1698 = arith.maximumf %1694, %1697 : vector<1x128xf32>
    %cst_249 = arith.constant -9.99999968E-21 : f32
    %1699 = vector.broadcast %cst_249 : f32 to vector<1x128xf32>
    %1700 = arith.minimumf %1694, %1699 : vector<1x128xf32>
    %1701 = arith.select %1696, %1698, %1700 : vector<1x128xi1>, vector<1x128xf32>
    %1702 = arith.divf %1216, %1701 : vector<1x128xf32>
    %1703 = arith.subf %900, %876 : vector<1x128xf32>
    %1704 = arith.mulf %1702, %1703 : vector<1x128xf32>
    %1705 = arith.addf %876, %1704 : vector<1x128xf32>
    %1706 = arith.subf %902, %878 : vector<1x128xf32>
    %1707 = arith.mulf %1702, %1706 : vector<1x128xf32>
    %1708 = arith.addf %878, %1707 : vector<1x128xf32>
    %1709 = arith.select %1690, %900, %115 : vector<1x128xi1>, vector<1x128xf32>
    %1710 = arith.select %1693, %1705, %1709 : vector<1x128xi1>, vector<1x128xf32>
    %1711 = arith.select %1690, %902, %131 : vector<1x128xi1>, vector<1x128xf32>
    %1712 = arith.select %1693, %1708, %1711 : vector<1x128xi1>, vector<1x128xf32>
    %1713 = arith.select %1690, %1705, %115 : vector<1x128xi1>, vector<1x128xf32>
    %1714 = arith.select %1692, %900, %1713 : vector<1x128xi1>, vector<1x128xf32>
    %1715 = arith.select %1690, %1708, %131 : vector<1x128xi1>, vector<1x128xf32>
    %1716 = arith.select %1692, %902, %1715 : vector<1x128xi1>, vector<1x128xf32>
    %cst_250 = arith.constant 0.000000e+00 : f32
    %1717 = vector.broadcast %cst_250 : f32 to vector<1x128xf32>
    %1718 = arith.cmpf oge, %1222, %1717 : vector<1x128xf32>
    %cst_251 = arith.constant 0.000000e+00 : f32
    %1719 = vector.broadcast %cst_251 : f32 to vector<1x128xf32>
    %1720 = arith.cmpf oge, %1228, %1719 : vector<1x128xf32>
    %1721 = arith.xori %1718, %1720 : vector<1x128xi1>
    %1722 = arith.subf %1222, %1228 : vector<1x128xf32>
    %cst_252 = arith.constant 0.000000e+00 : f32
    %1723 = vector.broadcast %cst_252 : f32 to vector<1x128xf32>
    %1724 = arith.cmpf oge, %1722, %1723 : vector<1x128xf32>
    %cst_253 = arith.constant 9.99999968E-21 : f32
    %1725 = vector.broadcast %cst_253 : f32 to vector<1x128xf32>
    %1726 = arith.maximumf %1722, %1725 : vector<1x128xf32>
    %cst_254 = arith.constant -9.99999968E-21 : f32
    %1727 = vector.broadcast %cst_254 : f32 to vector<1x128xf32>
    %1728 = arith.minimumf %1722, %1727 : vector<1x128xf32>
    %1729 = arith.select %1724, %1726, %1728 : vector<1x128xi1>, vector<1x128xf32>
    %1730 = arith.divf %1222, %1729 : vector<1x128xf32>
    %1731 = arith.subf %904, %900 : vector<1x128xf32>
    %1732 = arith.mulf %1730, %1731 : vector<1x128xf32>
    %1733 = arith.addf %900, %1732 : vector<1x128xf32>
    %1734 = arith.subf %906, %902 : vector<1x128xf32>
    %1735 = arith.mulf %1730, %1734 : vector<1x128xf32>
    %1736 = arith.addf %902, %1735 : vector<1x128xf32>
    %1737 = arith.select %1718, %904, %115 : vector<1x128xi1>, vector<1x128xf32>
    %1738 = arith.select %1721, %1733, %1737 : vector<1x128xi1>, vector<1x128xf32>
    %1739 = arith.select %1718, %906, %131 : vector<1x128xi1>, vector<1x128xf32>
    %1740 = arith.select %1721, %1736, %1739 : vector<1x128xi1>, vector<1x128xf32>
    %1741 = arith.select %1718, %1733, %115 : vector<1x128xi1>, vector<1x128xf32>
    %1742 = arith.select %1720, %904, %1741 : vector<1x128xi1>, vector<1x128xf32>
    %1743 = arith.select %1718, %1736, %131 : vector<1x128xi1>, vector<1x128xf32>
    %1744 = arith.select %1720, %906, %1743 : vector<1x128xi1>, vector<1x128xf32>
    %cst_255 = arith.constant 0.000000e+00 : f32
    %1745 = vector.broadcast %cst_255 : f32 to vector<1x128xf32>
    %1746 = arith.cmpf oge, %1228, %1745 : vector<1x128xf32>
    %cst_256 = arith.constant 0.000000e+00 : f32
    %1747 = vector.broadcast %cst_256 : f32 to vector<1x128xf32>
    %1748 = arith.cmpf oge, %1234, %1747 : vector<1x128xf32>
    %1749 = arith.xori %1746, %1748 : vector<1x128xi1>
    %1750 = arith.subf %1228, %1234 : vector<1x128xf32>
    %cst_257 = arith.constant 0.000000e+00 : f32
    %1751 = vector.broadcast %cst_257 : f32 to vector<1x128xf32>
    %1752 = arith.cmpf oge, %1750, %1751 : vector<1x128xf32>
    %cst_258 = arith.constant 9.99999968E-21 : f32
    %1753 = vector.broadcast %cst_258 : f32 to vector<1x128xf32>
    %1754 = arith.maximumf %1750, %1753 : vector<1x128xf32>
    %cst_259 = arith.constant -9.99999968E-21 : f32
    %1755 = vector.broadcast %cst_259 : f32 to vector<1x128xf32>
    %1756 = arith.minimumf %1750, %1755 : vector<1x128xf32>
    %1757 = arith.select %1752, %1754, %1756 : vector<1x128xi1>, vector<1x128xf32>
    %1758 = arith.divf %1228, %1757 : vector<1x128xf32>
    %1759 = arith.subf %928, %904 : vector<1x128xf32>
    %1760 = arith.mulf %1758, %1759 : vector<1x128xf32>
    %1761 = arith.addf %904, %1760 : vector<1x128xf32>
    %1762 = arith.subf %930, %906 : vector<1x128xf32>
    %1763 = arith.mulf %1758, %1762 : vector<1x128xf32>
    %1764 = arith.addf %906, %1763 : vector<1x128xf32>
    %1765 = arith.select %1746, %928, %115 : vector<1x128xi1>, vector<1x128xf32>
    %1766 = arith.select %1749, %1761, %1765 : vector<1x128xi1>, vector<1x128xf32>
    %1767 = arith.select %1746, %930, %131 : vector<1x128xi1>, vector<1x128xf32>
    %1768 = arith.select %1749, %1764, %1767 : vector<1x128xi1>, vector<1x128xf32>
    %1769 = arith.select %1746, %1761, %115 : vector<1x128xi1>, vector<1x128xf32>
    %1770 = arith.select %1748, %928, %1769 : vector<1x128xi1>, vector<1x128xf32>
    %1771 = arith.select %1746, %1764, %131 : vector<1x128xi1>, vector<1x128xf32>
    %1772 = arith.select %1748, %930, %1771 : vector<1x128xi1>, vector<1x128xf32>
    %cst_260 = arith.constant 0.000000e+00 : f32
    %1773 = vector.broadcast %cst_260 : f32 to vector<1x128xf32>
    %1774 = arith.cmpf oge, %1234, %1773 : vector<1x128xf32>
    %cst_261 = arith.constant 0.000000e+00 : f32
    %1775 = vector.broadcast %cst_261 : f32 to vector<1x128xf32>
    %1776 = arith.cmpf oge, %1240, %1775 : vector<1x128xf32>
    %1777 = arith.xori %1774, %1776 : vector<1x128xi1>
    %1778 = arith.subf %1234, %1240 : vector<1x128xf32>
    %cst_262 = arith.constant 0.000000e+00 : f32
    %1779 = vector.broadcast %cst_262 : f32 to vector<1x128xf32>
    %1780 = arith.cmpf oge, %1778, %1779 : vector<1x128xf32>
    %cst_263 = arith.constant 9.99999968E-21 : f32
    %1781 = vector.broadcast %cst_263 : f32 to vector<1x128xf32>
    %1782 = arith.maximumf %1778, %1781 : vector<1x128xf32>
    %cst_264 = arith.constant -9.99999968E-21 : f32
    %1783 = vector.broadcast %cst_264 : f32 to vector<1x128xf32>
    %1784 = arith.minimumf %1778, %1783 : vector<1x128xf32>
    %1785 = arith.select %1780, %1782, %1784 : vector<1x128xi1>, vector<1x128xf32>
    %1786 = arith.divf %1234, %1785 : vector<1x128xf32>
    %1787 = arith.subf %932, %928 : vector<1x128xf32>
    %1788 = arith.mulf %1786, %1787 : vector<1x128xf32>
    %1789 = arith.addf %928, %1788 : vector<1x128xf32>
    %1790 = arith.subf %934, %930 : vector<1x128xf32>
    %1791 = arith.mulf %1786, %1790 : vector<1x128xf32>
    %1792 = arith.addf %930, %1791 : vector<1x128xf32>
    %1793 = arith.select %1774, %932, %115 : vector<1x128xi1>, vector<1x128xf32>
    %1794 = arith.select %1777, %1789, %1793 : vector<1x128xi1>, vector<1x128xf32>
    %1795 = arith.select %1774, %934, %131 : vector<1x128xi1>, vector<1x128xf32>
    %1796 = arith.select %1777, %1792, %1795 : vector<1x128xi1>, vector<1x128xf32>
    %1797 = arith.select %1774, %1789, %115 : vector<1x128xi1>, vector<1x128xf32>
    %1798 = arith.select %1776, %932, %1797 : vector<1x128xi1>, vector<1x128xf32>
    %1799 = arith.select %1774, %1792, %131 : vector<1x128xi1>, vector<1x128xf32>
    %1800 = arith.select %1776, %934, %1799 : vector<1x128xi1>, vector<1x128xf32>
    %cst_265 = arith.constant 0.000000e+00 : f32
    %1801 = vector.broadcast %cst_265 : f32 to vector<1x128xf32>
    %1802 = arith.cmpf oge, %1240, %1801 : vector<1x128xf32>
    %cst_266 = arith.constant 0.000000e+00 : f32
    %1803 = vector.broadcast %cst_266 : f32 to vector<1x128xf32>
    %1804 = arith.cmpf oge, %1246, %1803 : vector<1x128xf32>
    %1805 = arith.xori %1802, %1804 : vector<1x128xi1>
    %1806 = arith.subf %1240, %1246 : vector<1x128xf32>
    %cst_267 = arith.constant 0.000000e+00 : f32
    %1807 = vector.broadcast %cst_267 : f32 to vector<1x128xf32>
    %1808 = arith.cmpf oge, %1806, %1807 : vector<1x128xf32>
    %cst_268 = arith.constant 9.99999968E-21 : f32
    %1809 = vector.broadcast %cst_268 : f32 to vector<1x128xf32>
    %1810 = arith.maximumf %1806, %1809 : vector<1x128xf32>
    %cst_269 = arith.constant -9.99999968E-21 : f32
    %1811 = vector.broadcast %cst_269 : f32 to vector<1x128xf32>
    %1812 = arith.minimumf %1806, %1811 : vector<1x128xf32>
    %1813 = arith.select %1808, %1810, %1812 : vector<1x128xi1>, vector<1x128xf32>
    %1814 = arith.divf %1240, %1813 : vector<1x128xf32>
    %1815 = arith.subf %956, %932 : vector<1x128xf32>
    %1816 = arith.mulf %1814, %1815 : vector<1x128xf32>
    %1817 = arith.addf %932, %1816 : vector<1x128xf32>
    %1818 = arith.subf %958, %934 : vector<1x128xf32>
    %1819 = arith.mulf %1814, %1818 : vector<1x128xf32>
    %1820 = arith.addf %934, %1819 : vector<1x128xf32>
    %1821 = arith.select %1802, %956, %115 : vector<1x128xi1>, vector<1x128xf32>
    %1822 = arith.select %1805, %1817, %1821 : vector<1x128xi1>, vector<1x128xf32>
    %1823 = arith.select %1802, %958, %131 : vector<1x128xi1>, vector<1x128xf32>
    %1824 = arith.select %1805, %1820, %1823 : vector<1x128xi1>, vector<1x128xf32>
    %1825 = arith.select %1802, %1817, %115 : vector<1x128xi1>, vector<1x128xf32>
    %1826 = arith.select %1804, %956, %1825 : vector<1x128xi1>, vector<1x128xf32>
    %1827 = arith.select %1802, %1820, %131 : vector<1x128xi1>, vector<1x128xf32>
    %1828 = arith.select %1804, %958, %1827 : vector<1x128xi1>, vector<1x128xf32>
    %cst_270 = arith.constant 0.000000e+00 : f32
    %1829 = vector.broadcast %cst_270 : f32 to vector<1x128xf32>
    %1830 = arith.cmpf oge, %1246, %1829 : vector<1x128xf32>
    %cst_271 = arith.constant 0.000000e+00 : f32
    %1831 = vector.broadcast %cst_271 : f32 to vector<1x128xf32>
    %1832 = arith.cmpf oge, %1252, %1831 : vector<1x128xf32>
    %1833 = arith.xori %1830, %1832 : vector<1x128xi1>
    %1834 = arith.subf %1246, %1252 : vector<1x128xf32>
    %cst_272 = arith.constant 0.000000e+00 : f32
    %1835 = vector.broadcast %cst_272 : f32 to vector<1x128xf32>
    %1836 = arith.cmpf oge, %1834, %1835 : vector<1x128xf32>
    %cst_273 = arith.constant 9.99999968E-21 : f32
    %1837 = vector.broadcast %cst_273 : f32 to vector<1x128xf32>
    %1838 = arith.maximumf %1834, %1837 : vector<1x128xf32>
    %cst_274 = arith.constant -9.99999968E-21 : f32
    %1839 = vector.broadcast %cst_274 : f32 to vector<1x128xf32>
    %1840 = arith.minimumf %1834, %1839 : vector<1x128xf32>
    %1841 = arith.select %1836, %1838, %1840 : vector<1x128xi1>, vector<1x128xf32>
    %1842 = arith.divf %1246, %1841 : vector<1x128xf32>
    %1843 = arith.subf %960, %956 : vector<1x128xf32>
    %1844 = arith.mulf %1842, %1843 : vector<1x128xf32>
    %1845 = arith.addf %956, %1844 : vector<1x128xf32>
    %1846 = arith.subf %962, %958 : vector<1x128xf32>
    %1847 = arith.mulf %1842, %1846 : vector<1x128xf32>
    %1848 = arith.addf %958, %1847 : vector<1x128xf32>
    %1849 = arith.select %1830, %960, %115 : vector<1x128xi1>, vector<1x128xf32>
    %1850 = arith.select %1833, %1845, %1849 : vector<1x128xi1>, vector<1x128xf32>
    %1851 = arith.select %1830, %962, %131 : vector<1x128xi1>, vector<1x128xf32>
    %1852 = arith.select %1833, %1848, %1851 : vector<1x128xi1>, vector<1x128xf32>
    %1853 = arith.select %1830, %1845, %115 : vector<1x128xi1>, vector<1x128xf32>
    %1854 = arith.select %1832, %960, %1853 : vector<1x128xi1>, vector<1x128xf32>
    %1855 = arith.select %1830, %1848, %131 : vector<1x128xi1>, vector<1x128xf32>
    %1856 = arith.select %1832, %962, %1855 : vector<1x128xi1>, vector<1x128xf32>
    %cst_275 = arith.constant 0.000000e+00 : f32
    %1857 = vector.broadcast %cst_275 : f32 to vector<1x128xf32>
    %1858 = arith.cmpf oge, %1252, %1857 : vector<1x128xf32>
    %cst_276 = arith.constant 0.000000e+00 : f32
    %1859 = vector.broadcast %cst_276 : f32 to vector<1x128xf32>
    %1860 = arith.cmpf oge, %1258, %1859 : vector<1x128xf32>
    %1861 = arith.xori %1858, %1860 : vector<1x128xi1>
    %1862 = arith.subf %1252, %1258 : vector<1x128xf32>
    %cst_277 = arith.constant 0.000000e+00 : f32
    %1863 = vector.broadcast %cst_277 : f32 to vector<1x128xf32>
    %1864 = arith.cmpf oge, %1862, %1863 : vector<1x128xf32>
    %cst_278 = arith.constant 9.99999968E-21 : f32
    %1865 = vector.broadcast %cst_278 : f32 to vector<1x128xf32>
    %1866 = arith.maximumf %1862, %1865 : vector<1x128xf32>
    %cst_279 = arith.constant -9.99999968E-21 : f32
    %1867 = vector.broadcast %cst_279 : f32 to vector<1x128xf32>
    %1868 = arith.minimumf %1862, %1867 : vector<1x128xf32>
    %1869 = arith.select %1864, %1866, %1868 : vector<1x128xi1>, vector<1x128xf32>
    %1870 = arith.divf %1252, %1869 : vector<1x128xf32>
    %1871 = arith.subf %984, %960 : vector<1x128xf32>
    %1872 = arith.mulf %1870, %1871 : vector<1x128xf32>
    %1873 = arith.addf %960, %1872 : vector<1x128xf32>
    %1874 = arith.subf %986, %962 : vector<1x128xf32>
    %1875 = arith.mulf %1870, %1874 : vector<1x128xf32>
    %1876 = arith.addf %962, %1875 : vector<1x128xf32>
    %1877 = arith.select %1858, %984, %115 : vector<1x128xi1>, vector<1x128xf32>
    %1878 = arith.select %1861, %1873, %1877 : vector<1x128xi1>, vector<1x128xf32>
    %1879 = arith.select %1858, %986, %131 : vector<1x128xi1>, vector<1x128xf32>
    %1880 = arith.select %1861, %1876, %1879 : vector<1x128xi1>, vector<1x128xf32>
    %1881 = arith.select %1858, %1873, %115 : vector<1x128xi1>, vector<1x128xf32>
    %1882 = arith.select %1860, %984, %1881 : vector<1x128xi1>, vector<1x128xf32>
    %1883 = arith.select %1858, %1876, %131 : vector<1x128xi1>, vector<1x128xf32>
    %1884 = arith.select %1860, %986, %1883 : vector<1x128xi1>, vector<1x128xf32>
    %cst_280 = arith.constant 0.000000e+00 : f32
    %1885 = vector.broadcast %cst_280 : f32 to vector<1x128xf32>
    %1886 = arith.cmpf oge, %1258, %1885 : vector<1x128xf32>
    %cst_281 = arith.constant 0.000000e+00 : f32
    %1887 = vector.broadcast %cst_281 : f32 to vector<1x128xf32>
    %1888 = arith.cmpf oge, %1264, %1887 : vector<1x128xf32>
    %1889 = arith.xori %1886, %1888 : vector<1x128xi1>
    %1890 = arith.subf %1258, %1264 : vector<1x128xf32>
    %cst_282 = arith.constant 0.000000e+00 : f32
    %1891 = vector.broadcast %cst_282 : f32 to vector<1x128xf32>
    %1892 = arith.cmpf oge, %1890, %1891 : vector<1x128xf32>
    %cst_283 = arith.constant 9.99999968E-21 : f32
    %1893 = vector.broadcast %cst_283 : f32 to vector<1x128xf32>
    %1894 = arith.maximumf %1890, %1893 : vector<1x128xf32>
    %cst_284 = arith.constant -9.99999968E-21 : f32
    %1895 = vector.broadcast %cst_284 : f32 to vector<1x128xf32>
    %1896 = arith.minimumf %1890, %1895 : vector<1x128xf32>
    %1897 = arith.select %1892, %1894, %1896 : vector<1x128xi1>, vector<1x128xf32>
    %1898 = arith.divf %1258, %1897 : vector<1x128xf32>
    %1899 = arith.subf %988, %984 : vector<1x128xf32>
    %1900 = arith.mulf %1898, %1899 : vector<1x128xf32>
    %1901 = arith.addf %984, %1900 : vector<1x128xf32>
    %1902 = arith.subf %990, %986 : vector<1x128xf32>
    %1903 = arith.mulf %1898, %1902 : vector<1x128xf32>
    %1904 = arith.addf %986, %1903 : vector<1x128xf32>
    %1905 = arith.select %1886, %988, %115 : vector<1x128xi1>, vector<1x128xf32>
    %1906 = arith.select %1889, %1901, %1905 : vector<1x128xi1>, vector<1x128xf32>
    %1907 = arith.select %1886, %990, %131 : vector<1x128xi1>, vector<1x128xf32>
    %1908 = arith.select %1889, %1904, %1907 : vector<1x128xi1>, vector<1x128xf32>
    %1909 = arith.select %1886, %1901, %115 : vector<1x128xi1>, vector<1x128xf32>
    %1910 = arith.select %1888, %988, %1909 : vector<1x128xi1>, vector<1x128xf32>
    %1911 = arith.select %1886, %1904, %131 : vector<1x128xi1>, vector<1x128xf32>
    %1912 = arith.select %1888, %990, %1911 : vector<1x128xi1>, vector<1x128xf32>
    %cst_285 = arith.constant 0.000000e+00 : f32
    %1913 = vector.broadcast %cst_285 : f32 to vector<1x128xf32>
    %1914 = arith.cmpf oge, %1264, %1913 : vector<1x128xf32>
    %cst_286 = arith.constant 0.000000e+00 : f32
    %1915 = vector.broadcast %cst_286 : f32 to vector<1x128xf32>
    %1916 = arith.cmpf oge, %1270, %1915 : vector<1x128xf32>
    %1917 = arith.xori %1914, %1916 : vector<1x128xi1>
    %1918 = arith.subf %1264, %1270 : vector<1x128xf32>
    %cst_287 = arith.constant 0.000000e+00 : f32
    %1919 = vector.broadcast %cst_287 : f32 to vector<1x128xf32>
    %1920 = arith.cmpf oge, %1918, %1919 : vector<1x128xf32>
    %cst_288 = arith.constant 9.99999968E-21 : f32
    %1921 = vector.broadcast %cst_288 : f32 to vector<1x128xf32>
    %1922 = arith.maximumf %1918, %1921 : vector<1x128xf32>
    %cst_289 = arith.constant -9.99999968E-21 : f32
    %1923 = vector.broadcast %cst_289 : f32 to vector<1x128xf32>
    %1924 = arith.minimumf %1918, %1923 : vector<1x128xf32>
    %1925 = arith.select %1920, %1922, %1924 : vector<1x128xi1>, vector<1x128xf32>
    %1926 = arith.divf %1264, %1925 : vector<1x128xf32>
    %1927 = arith.subf %1012, %988 : vector<1x128xf32>
    %1928 = arith.mulf %1926, %1927 : vector<1x128xf32>
    %1929 = arith.addf %988, %1928 : vector<1x128xf32>
    %1930 = arith.subf %1014, %990 : vector<1x128xf32>
    %1931 = arith.mulf %1926, %1930 : vector<1x128xf32>
    %1932 = arith.addf %990, %1931 : vector<1x128xf32>
    %1933 = arith.select %1914, %1012, %115 : vector<1x128xi1>, vector<1x128xf32>
    %1934 = arith.select %1917, %1929, %1933 : vector<1x128xi1>, vector<1x128xf32>
    %1935 = arith.select %1914, %1014, %131 : vector<1x128xi1>, vector<1x128xf32>
    %1936 = arith.select %1917, %1932, %1935 : vector<1x128xi1>, vector<1x128xf32>
    %1937 = arith.select %1914, %1929, %115 : vector<1x128xi1>, vector<1x128xf32>
    %1938 = arith.select %1916, %1012, %1937 : vector<1x128xi1>, vector<1x128xf32>
    %1939 = arith.select %1914, %1932, %131 : vector<1x128xi1>, vector<1x128xf32>
    %1940 = arith.select %1916, %1014, %1939 : vector<1x128xi1>, vector<1x128xf32>
    %cst_290 = arith.constant 0.000000e+00 : f32
    %1941 = vector.broadcast %cst_290 : f32 to vector<1x128xf32>
    %1942 = arith.cmpf oge, %1270, %1941 : vector<1x128xf32>
    %cst_291 = arith.constant 0.000000e+00 : f32
    %1943 = vector.broadcast %cst_291 : f32 to vector<1x128xf32>
    %1944 = arith.cmpf oge, %1276, %1943 : vector<1x128xf32>
    %1945 = arith.xori %1942, %1944 : vector<1x128xi1>
    %1946 = arith.subf %1270, %1276 : vector<1x128xf32>
    %cst_292 = arith.constant 0.000000e+00 : f32
    %1947 = vector.broadcast %cst_292 : f32 to vector<1x128xf32>
    %1948 = arith.cmpf oge, %1946, %1947 : vector<1x128xf32>
    %cst_293 = arith.constant 9.99999968E-21 : f32
    %1949 = vector.broadcast %cst_293 : f32 to vector<1x128xf32>
    %1950 = arith.maximumf %1946, %1949 : vector<1x128xf32>
    %cst_294 = arith.constant -9.99999968E-21 : f32
    %1951 = vector.broadcast %cst_294 : f32 to vector<1x128xf32>
    %1952 = arith.minimumf %1946, %1951 : vector<1x128xf32>
    %1953 = arith.select %1948, %1950, %1952 : vector<1x128xi1>, vector<1x128xf32>
    %1954 = arith.divf %1270, %1953 : vector<1x128xf32>
    %1955 = arith.subf %1016, %1012 : vector<1x128xf32>
    %1956 = arith.mulf %1954, %1955 : vector<1x128xf32>
    %1957 = arith.addf %1012, %1956 : vector<1x128xf32>
    %1958 = arith.subf %1018, %1014 : vector<1x128xf32>
    %1959 = arith.mulf %1954, %1958 : vector<1x128xf32>
    %1960 = arith.addf %1014, %1959 : vector<1x128xf32>
    %1961 = arith.select %1942, %1016, %115 : vector<1x128xi1>, vector<1x128xf32>
    %1962 = arith.select %1945, %1957, %1961 : vector<1x128xi1>, vector<1x128xf32>
    %1963 = arith.select %1942, %1018, %131 : vector<1x128xi1>, vector<1x128xf32>
    %1964 = arith.select %1945, %1960, %1963 : vector<1x128xi1>, vector<1x128xf32>
    %1965 = arith.select %1942, %1957, %115 : vector<1x128xi1>, vector<1x128xf32>
    %1966 = arith.select %1944, %1016, %1965 : vector<1x128xi1>, vector<1x128xf32>
    %1967 = arith.select %1942, %1960, %131 : vector<1x128xi1>, vector<1x128xf32>
    %1968 = arith.select %1944, %1018, %1967 : vector<1x128xi1>, vector<1x128xf32>
    %cst_295 = arith.constant 0.000000e+00 : f32
    %1969 = vector.broadcast %cst_295 : f32 to vector<1x128xf32>
    %1970 = arith.cmpf oge, %1276, %1969 : vector<1x128xf32>
    %cst_296 = arith.constant 0.000000e+00 : f32
    %1971 = vector.broadcast %cst_296 : f32 to vector<1x128xf32>
    %1972 = arith.cmpf oge, %1282, %1971 : vector<1x128xf32>
    %1973 = arith.xori %1970, %1972 : vector<1x128xi1>
    %1974 = arith.subf %1276, %1282 : vector<1x128xf32>
    %cst_297 = arith.constant 0.000000e+00 : f32
    %1975 = vector.broadcast %cst_297 : f32 to vector<1x128xf32>
    %1976 = arith.cmpf oge, %1974, %1975 : vector<1x128xf32>
    %cst_298 = arith.constant 9.99999968E-21 : f32
    %1977 = vector.broadcast %cst_298 : f32 to vector<1x128xf32>
    %1978 = arith.maximumf %1974, %1977 : vector<1x128xf32>
    %cst_299 = arith.constant -9.99999968E-21 : f32
    %1979 = vector.broadcast %cst_299 : f32 to vector<1x128xf32>
    %1980 = arith.minimumf %1974, %1979 : vector<1x128xf32>
    %1981 = arith.select %1976, %1978, %1980 : vector<1x128xi1>, vector<1x128xf32>
    %1982 = arith.divf %1276, %1981 : vector<1x128xf32>
    %1983 = arith.subf %1040, %1016 : vector<1x128xf32>
    %1984 = arith.mulf %1982, %1983 : vector<1x128xf32>
    %1985 = arith.addf %1016, %1984 : vector<1x128xf32>
    %1986 = arith.subf %1042, %1018 : vector<1x128xf32>
    %1987 = arith.mulf %1982, %1986 : vector<1x128xf32>
    %1988 = arith.addf %1018, %1987 : vector<1x128xf32>
    %1989 = arith.select %1970, %1040, %115 : vector<1x128xi1>, vector<1x128xf32>
    %1990 = arith.select %1973, %1985, %1989 : vector<1x128xi1>, vector<1x128xf32>
    %1991 = arith.select %1970, %1042, %131 : vector<1x128xi1>, vector<1x128xf32>
    %1992 = arith.select %1973, %1988, %1991 : vector<1x128xi1>, vector<1x128xf32>
    %1993 = arith.select %1970, %1985, %115 : vector<1x128xi1>, vector<1x128xf32>
    %1994 = arith.select %1972, %1040, %1993 : vector<1x128xi1>, vector<1x128xf32>
    %1995 = arith.select %1970, %1988, %131 : vector<1x128xi1>, vector<1x128xf32>
    %1996 = arith.select %1972, %1042, %1995 : vector<1x128xi1>, vector<1x128xf32>
    %cst_300 = arith.constant 0.000000e+00 : f32
    %1997 = vector.broadcast %cst_300 : f32 to vector<1x128xf32>
    %1998 = arith.cmpf oge, %1282, %1997 : vector<1x128xf32>
    %cst_301 = arith.constant 0.000000e+00 : f32
    %1999 = vector.broadcast %cst_301 : f32 to vector<1x128xf32>
    %2000 = arith.cmpf oge, %1288, %1999 : vector<1x128xf32>
    %2001 = arith.xori %1998, %2000 : vector<1x128xi1>
    %2002 = arith.subf %1282, %1288 : vector<1x128xf32>
    %cst_302 = arith.constant 0.000000e+00 : f32
    %2003 = vector.broadcast %cst_302 : f32 to vector<1x128xf32>
    %2004 = arith.cmpf oge, %2002, %2003 : vector<1x128xf32>
    %cst_303 = arith.constant 9.99999968E-21 : f32
    %2005 = vector.broadcast %cst_303 : f32 to vector<1x128xf32>
    %2006 = arith.maximumf %2002, %2005 : vector<1x128xf32>
    %cst_304 = arith.constant -9.99999968E-21 : f32
    %2007 = vector.broadcast %cst_304 : f32 to vector<1x128xf32>
    %2008 = arith.minimumf %2002, %2007 : vector<1x128xf32>
    %2009 = arith.select %2004, %2006, %2008 : vector<1x128xi1>, vector<1x128xf32>
    %2010 = arith.divf %1282, %2009 : vector<1x128xf32>
    %2011 = arith.subf %1044, %1040 : vector<1x128xf32>
    %2012 = arith.mulf %2010, %2011 : vector<1x128xf32>
    %2013 = arith.addf %1040, %2012 : vector<1x128xf32>
    %2014 = arith.subf %1046, %1042 : vector<1x128xf32>
    %2015 = arith.mulf %2010, %2014 : vector<1x128xf32>
    %2016 = arith.addf %1042, %2015 : vector<1x128xf32>
    %2017 = arith.select %1998, %1044, %115 : vector<1x128xi1>, vector<1x128xf32>
    %2018 = arith.select %2001, %2013, %2017 : vector<1x128xi1>, vector<1x128xf32>
    %2019 = arith.select %1998, %1046, %131 : vector<1x128xi1>, vector<1x128xf32>
    %2020 = arith.select %2001, %2016, %2019 : vector<1x128xi1>, vector<1x128xf32>
    %2021 = arith.select %1998, %2013, %115 : vector<1x128xi1>, vector<1x128xf32>
    %2022 = arith.select %2000, %1044, %2021 : vector<1x128xi1>, vector<1x128xf32>
    %2023 = arith.select %1998, %2016, %131 : vector<1x128xi1>, vector<1x128xf32>
    %2024 = arith.select %2000, %1046, %2023 : vector<1x128xi1>, vector<1x128xf32>
    %cst_305 = arith.constant 0.000000e+00 : f32
    %2025 = vector.broadcast %cst_305 : f32 to vector<1x128xf32>
    %2026 = arith.cmpf oge, %1288, %2025 : vector<1x128xf32>
    %cst_306 = arith.constant 0.000000e+00 : f32
    %2027 = vector.broadcast %cst_306 : f32 to vector<1x128xf32>
    %2028 = arith.cmpf oge, %1294, %2027 : vector<1x128xf32>
    %2029 = arith.xori %2026, %2028 : vector<1x128xi1>
    %2030 = arith.subf %1288, %1294 : vector<1x128xf32>
    %cst_307 = arith.constant 0.000000e+00 : f32
    %2031 = vector.broadcast %cst_307 : f32 to vector<1x128xf32>
    %2032 = arith.cmpf oge, %2030, %2031 : vector<1x128xf32>
    %cst_308 = arith.constant 9.99999968E-21 : f32
    %2033 = vector.broadcast %cst_308 : f32 to vector<1x128xf32>
    %2034 = arith.maximumf %2030, %2033 : vector<1x128xf32>
    %cst_309 = arith.constant -9.99999968E-21 : f32
    %2035 = vector.broadcast %cst_309 : f32 to vector<1x128xf32>
    %2036 = arith.minimumf %2030, %2035 : vector<1x128xf32>
    %2037 = arith.select %2032, %2034, %2036 : vector<1x128xi1>, vector<1x128xf32>
    %2038 = arith.divf %1288, %2037 : vector<1x128xf32>
    %2039 = arith.subf %1068, %1044 : vector<1x128xf32>
    %2040 = arith.mulf %2038, %2039 : vector<1x128xf32>
    %2041 = arith.addf %1044, %2040 : vector<1x128xf32>
    %2042 = arith.subf %1070, %1046 : vector<1x128xf32>
    %2043 = arith.mulf %2038, %2042 : vector<1x128xf32>
    %2044 = arith.addf %1046, %2043 : vector<1x128xf32>
    %2045 = arith.select %2026, %1068, %115 : vector<1x128xi1>, vector<1x128xf32>
    %2046 = arith.select %2029, %2041, %2045 : vector<1x128xi1>, vector<1x128xf32>
    %2047 = arith.select %2026, %1070, %131 : vector<1x128xi1>, vector<1x128xf32>
    %2048 = arith.select %2029, %2044, %2047 : vector<1x128xi1>, vector<1x128xf32>
    %2049 = arith.select %2026, %2041, %115 : vector<1x128xi1>, vector<1x128xf32>
    %2050 = arith.select %2028, %1068, %2049 : vector<1x128xi1>, vector<1x128xf32>
    %2051 = arith.select %2026, %2044, %131 : vector<1x128xi1>, vector<1x128xf32>
    %2052 = arith.select %2028, %1070, %2051 : vector<1x128xi1>, vector<1x128xf32>
    %cst_310 = arith.constant 0.000000e+00 : f32
    %2053 = vector.broadcast %cst_310 : f32 to vector<1x128xf32>
    %2054 = arith.cmpf oge, %1294, %2053 : vector<1x128xf32>
    %cst_311 = arith.constant 0.000000e+00 : f32
    %2055 = vector.broadcast %cst_311 : f32 to vector<1x128xf32>
    %2056 = arith.cmpf oge, %1300, %2055 : vector<1x128xf32>
    %2057 = arith.xori %2054, %2056 : vector<1x128xi1>
    %2058 = arith.subf %1294, %1300 : vector<1x128xf32>
    %cst_312 = arith.constant 0.000000e+00 : f32
    %2059 = vector.broadcast %cst_312 : f32 to vector<1x128xf32>
    %2060 = arith.cmpf oge, %2058, %2059 : vector<1x128xf32>
    %cst_313 = arith.constant 9.99999968E-21 : f32
    %2061 = vector.broadcast %cst_313 : f32 to vector<1x128xf32>
    %2062 = arith.maximumf %2058, %2061 : vector<1x128xf32>
    %cst_314 = arith.constant -9.99999968E-21 : f32
    %2063 = vector.broadcast %cst_314 : f32 to vector<1x128xf32>
    %2064 = arith.minimumf %2058, %2063 : vector<1x128xf32>
    %2065 = arith.select %2060, %2062, %2064 : vector<1x128xi1>, vector<1x128xf32>
    %2066 = arith.divf %1294, %2065 : vector<1x128xf32>
    %2067 = arith.subf %1072, %1068 : vector<1x128xf32>
    %2068 = arith.mulf %2066, %2067 : vector<1x128xf32>
    %2069 = arith.addf %1068, %2068 : vector<1x128xf32>
    %2070 = arith.subf %1074, %1070 : vector<1x128xf32>
    %2071 = arith.mulf %2066, %2070 : vector<1x128xf32>
    %2072 = arith.addf %1070, %2071 : vector<1x128xf32>
    %2073 = arith.select %2054, %1072, %115 : vector<1x128xi1>, vector<1x128xf32>
    %2074 = arith.select %2057, %2069, %2073 : vector<1x128xi1>, vector<1x128xf32>
    %2075 = arith.select %2054, %1074, %131 : vector<1x128xi1>, vector<1x128xf32>
    %2076 = arith.select %2057, %2072, %2075 : vector<1x128xi1>, vector<1x128xf32>
    %2077 = arith.select %2054, %2069, %115 : vector<1x128xi1>, vector<1x128xf32>
    %2078 = arith.select %2056, %1072, %2077 : vector<1x128xi1>, vector<1x128xf32>
    %2079 = arith.select %2054, %2072, %131 : vector<1x128xi1>, vector<1x128xf32>
    %2080 = arith.select %2056, %1074, %2079 : vector<1x128xi1>, vector<1x128xf32>
    %cst_315 = arith.constant 0.000000e+00 : f32
    %2081 = vector.broadcast %cst_315 : f32 to vector<1x128xf32>
    %2082 = arith.cmpf oge, %1300, %2081 : vector<1x128xf32>
    %cst_316 = arith.constant 0.000000e+00 : f32
    %2083 = vector.broadcast %cst_316 : f32 to vector<1x128xf32>
    %2084 = arith.cmpf oge, %1306, %2083 : vector<1x128xf32>
    %2085 = arith.xori %2082, %2084 : vector<1x128xi1>
    %2086 = arith.subf %1300, %1306 : vector<1x128xf32>
    %cst_317 = arith.constant 0.000000e+00 : f32
    %2087 = vector.broadcast %cst_317 : f32 to vector<1x128xf32>
    %2088 = arith.cmpf oge, %2086, %2087 : vector<1x128xf32>
    %cst_318 = arith.constant 9.99999968E-21 : f32
    %2089 = vector.broadcast %cst_318 : f32 to vector<1x128xf32>
    %2090 = arith.maximumf %2086, %2089 : vector<1x128xf32>
    %cst_319 = arith.constant -9.99999968E-21 : f32
    %2091 = vector.broadcast %cst_319 : f32 to vector<1x128xf32>
    %2092 = arith.minimumf %2086, %2091 : vector<1x128xf32>
    %2093 = arith.select %2088, %2090, %2092 : vector<1x128xi1>, vector<1x128xf32>
    %2094 = arith.divf %1300, %2093 : vector<1x128xf32>
    %2095 = arith.subf %1096, %1072 : vector<1x128xf32>
    %2096 = arith.mulf %2094, %2095 : vector<1x128xf32>
    %2097 = arith.addf %1072, %2096 : vector<1x128xf32>
    %2098 = arith.subf %1098, %1074 : vector<1x128xf32>
    %2099 = arith.mulf %2094, %2098 : vector<1x128xf32>
    %2100 = arith.addf %1074, %2099 : vector<1x128xf32>
    %2101 = arith.select %2082, %1096, %115 : vector<1x128xi1>, vector<1x128xf32>
    %2102 = arith.select %2085, %2097, %2101 : vector<1x128xi1>, vector<1x128xf32>
    %2103 = arith.select %2082, %1098, %131 : vector<1x128xi1>, vector<1x128xf32>
    %2104 = arith.select %2085, %2100, %2103 : vector<1x128xi1>, vector<1x128xf32>
    %2105 = arith.select %2082, %2097, %115 : vector<1x128xi1>, vector<1x128xf32>
    %2106 = arith.select %2084, %1096, %2105 : vector<1x128xi1>, vector<1x128xf32>
    %2107 = arith.select %2082, %2100, %131 : vector<1x128xi1>, vector<1x128xf32>
    %2108 = arith.select %2084, %1098, %2107 : vector<1x128xi1>, vector<1x128xf32>
    %cst_320 = arith.constant 0.000000e+00 : f32
    %2109 = vector.broadcast %cst_320 : f32 to vector<1x128xf32>
    %2110 = arith.cmpf oge, %1306, %2109 : vector<1x128xf32>
    %cst_321 = arith.constant 0.000000e+00 : f32
    %2111 = vector.broadcast %cst_321 : f32 to vector<1x128xf32>
    %2112 = arith.cmpf oge, %1312, %2111 : vector<1x128xf32>
    %2113 = arith.xori %2110, %2112 : vector<1x128xi1>
    %2114 = arith.subf %1306, %1312 : vector<1x128xf32>
    %cst_322 = arith.constant 0.000000e+00 : f32
    %2115 = vector.broadcast %cst_322 : f32 to vector<1x128xf32>
    %2116 = arith.cmpf oge, %2114, %2115 : vector<1x128xf32>
    %cst_323 = arith.constant 9.99999968E-21 : f32
    %2117 = vector.broadcast %cst_323 : f32 to vector<1x128xf32>
    %2118 = arith.maximumf %2114, %2117 : vector<1x128xf32>
    %cst_324 = arith.constant -9.99999968E-21 : f32
    %2119 = vector.broadcast %cst_324 : f32 to vector<1x128xf32>
    %2120 = arith.minimumf %2114, %2119 : vector<1x128xf32>
    %2121 = arith.select %2116, %2118, %2120 : vector<1x128xi1>, vector<1x128xf32>
    %2122 = arith.divf %1306, %2121 : vector<1x128xf32>
    %2123 = arith.subf %1100, %1096 : vector<1x128xf32>
    %2124 = arith.mulf %2122, %2123 : vector<1x128xf32>
    %2125 = arith.addf %1096, %2124 : vector<1x128xf32>
    %2126 = arith.subf %1102, %1098 : vector<1x128xf32>
    %2127 = arith.mulf %2122, %2126 : vector<1x128xf32>
    %2128 = arith.addf %1098, %2127 : vector<1x128xf32>
    %2129 = arith.select %2110, %1100, %115 : vector<1x128xi1>, vector<1x128xf32>
    %2130 = arith.select %2113, %2125, %2129 : vector<1x128xi1>, vector<1x128xf32>
    %2131 = arith.select %2110, %1102, %131 : vector<1x128xi1>, vector<1x128xf32>
    %2132 = arith.select %2113, %2128, %2131 : vector<1x128xi1>, vector<1x128xf32>
    %2133 = arith.select %2110, %2125, %115 : vector<1x128xi1>, vector<1x128xf32>
    %2134 = arith.select %2112, %1100, %2133 : vector<1x128xi1>, vector<1x128xf32>
    %2135 = arith.select %2110, %2128, %131 : vector<1x128xi1>, vector<1x128xf32>
    %2136 = arith.select %2112, %1102, %2135 : vector<1x128xi1>, vector<1x128xf32>
    %cst_325 = arith.constant 0.000000e+00 : f32
    %2137 = vector.broadcast %cst_325 : f32 to vector<1x128xf32>
    %2138 = arith.cmpf oge, %1312, %2137 : vector<1x128xf32>
    %cst_326 = arith.constant 0.000000e+00 : f32
    %2139 = vector.broadcast %cst_326 : f32 to vector<1x128xf32>
    %2140 = arith.cmpf oge, %1318, %2139 : vector<1x128xf32>
    %2141 = arith.xori %2138, %2140 : vector<1x128xi1>
    %2142 = arith.subf %1312, %1318 : vector<1x128xf32>
    %cst_327 = arith.constant 0.000000e+00 : f32
    %2143 = vector.broadcast %cst_327 : f32 to vector<1x128xf32>
    %2144 = arith.cmpf oge, %2142, %2143 : vector<1x128xf32>
    %cst_328 = arith.constant 9.99999968E-21 : f32
    %2145 = vector.broadcast %cst_328 : f32 to vector<1x128xf32>
    %2146 = arith.maximumf %2142, %2145 : vector<1x128xf32>
    %cst_329 = arith.constant -9.99999968E-21 : f32
    %2147 = vector.broadcast %cst_329 : f32 to vector<1x128xf32>
    %2148 = arith.minimumf %2142, %2147 : vector<1x128xf32>
    %2149 = arith.select %2144, %2146, %2148 : vector<1x128xi1>, vector<1x128xf32>
    %2150 = arith.divf %1312, %2149 : vector<1x128xf32>
    %2151 = arith.subf %1124, %1100 : vector<1x128xf32>
    %2152 = arith.mulf %2150, %2151 : vector<1x128xf32>
    %2153 = arith.addf %1100, %2152 : vector<1x128xf32>
    %2154 = arith.subf %1126, %1102 : vector<1x128xf32>
    %2155 = arith.mulf %2150, %2154 : vector<1x128xf32>
    %2156 = arith.addf %1102, %2155 : vector<1x128xf32>
    %2157 = arith.select %2138, %1124, %115 : vector<1x128xi1>, vector<1x128xf32>
    %2158 = arith.select %2141, %2153, %2157 : vector<1x128xi1>, vector<1x128xf32>
    %2159 = arith.select %2138, %1126, %131 : vector<1x128xi1>, vector<1x128xf32>
    %2160 = arith.select %2141, %2156, %2159 : vector<1x128xi1>, vector<1x128xf32>
    %2161 = arith.select %2138, %2153, %115 : vector<1x128xi1>, vector<1x128xf32>
    %2162 = arith.select %2140, %1124, %2161 : vector<1x128xi1>, vector<1x128xf32>
    %2163 = arith.select %2138, %2156, %131 : vector<1x128xi1>, vector<1x128xf32>
    %2164 = arith.select %2140, %1126, %2163 : vector<1x128xi1>, vector<1x128xf32>
    %cst_330 = arith.constant 0.000000e+00 : f32
    %2165 = vector.broadcast %cst_330 : f32 to vector<1x128xf32>
    %2166 = arith.cmpf oge, %1318, %2165 : vector<1x128xf32>
    %cst_331 = arith.constant 0.000000e+00 : f32
    %2167 = vector.broadcast %cst_331 : f32 to vector<1x128xf32>
    %2168 = arith.cmpf oge, %1324, %2167 : vector<1x128xf32>
    %2169 = arith.xori %2166, %2168 : vector<1x128xi1>
    %2170 = arith.subf %1318, %1324 : vector<1x128xf32>
    %cst_332 = arith.constant 0.000000e+00 : f32
    %2171 = vector.broadcast %cst_332 : f32 to vector<1x128xf32>
    %2172 = arith.cmpf oge, %2170, %2171 : vector<1x128xf32>
    %cst_333 = arith.constant 9.99999968E-21 : f32
    %2173 = vector.broadcast %cst_333 : f32 to vector<1x128xf32>
    %2174 = arith.maximumf %2170, %2173 : vector<1x128xf32>
    %cst_334 = arith.constant -9.99999968E-21 : f32
    %2175 = vector.broadcast %cst_334 : f32 to vector<1x128xf32>
    %2176 = arith.minimumf %2170, %2175 : vector<1x128xf32>
    %2177 = arith.select %2172, %2174, %2176 : vector<1x128xi1>, vector<1x128xf32>
    %2178 = arith.divf %1318, %2177 : vector<1x128xf32>
    %2179 = arith.subf %1128, %1124 : vector<1x128xf32>
    %2180 = arith.mulf %2178, %2179 : vector<1x128xf32>
    %2181 = arith.addf %1124, %2180 : vector<1x128xf32>
    %2182 = arith.subf %1130, %1126 : vector<1x128xf32>
    %2183 = arith.mulf %2178, %2182 : vector<1x128xf32>
    %2184 = arith.addf %1126, %2183 : vector<1x128xf32>
    %2185 = arith.select %2166, %1128, %115 : vector<1x128xi1>, vector<1x128xf32>
    %2186 = arith.select %2169, %2181, %2185 : vector<1x128xi1>, vector<1x128xf32>
    %2187 = arith.select %2166, %1130, %131 : vector<1x128xi1>, vector<1x128xf32>
    %2188 = arith.select %2169, %2184, %2187 : vector<1x128xi1>, vector<1x128xf32>
    %2189 = arith.select %2166, %2181, %115 : vector<1x128xi1>, vector<1x128xf32>
    %2190 = arith.select %2168, %1128, %2189 : vector<1x128xi1>, vector<1x128xf32>
    %2191 = arith.select %2166, %2184, %131 : vector<1x128xi1>, vector<1x128xf32>
    %2192 = arith.select %2168, %1130, %2191 : vector<1x128xi1>, vector<1x128xf32>
    %cst_335 = arith.constant 0.000000e+00 : f32
    %2193 = vector.broadcast %cst_335 : f32 to vector<1x128xf32>
    %2194 = arith.cmpf oge, %1324, %2193 : vector<1x128xf32>
    %cst_336 = arith.constant 0.000000e+00 : f32
    %2195 = vector.broadcast %cst_336 : f32 to vector<1x128xf32>
    %2196 = arith.cmpf oge, %1138, %2195 : vector<1x128xf32>
    %2197 = arith.xori %2194, %2196 : vector<1x128xi1>
    %2198 = arith.subf %1324, %1138 : vector<1x128xf32>
    %cst_337 = arith.constant 0.000000e+00 : f32
    %2199 = vector.broadcast %cst_337 : f32 to vector<1x128xf32>
    %2200 = arith.cmpf oge, %2198, %2199 : vector<1x128xf32>
    %cst_338 = arith.constant 9.99999968E-21 : f32
    %2201 = vector.broadcast %cst_338 : f32 to vector<1x128xf32>
    %2202 = arith.maximumf %2198, %2201 : vector<1x128xf32>
    %cst_339 = arith.constant -9.99999968E-21 : f32
    %2203 = vector.broadcast %cst_339 : f32 to vector<1x128xf32>
    %2204 = arith.minimumf %2198, %2203 : vector<1x128xf32>
    %2205 = arith.select %2200, %2202, %2204 : vector<1x128xi1>, vector<1x128xf32>
    %2206 = arith.divf %1324, %2205 : vector<1x128xf32>
    %2207 = arith.subf %704, %1128 : vector<1x128xf32>
    %2208 = arith.mulf %2206, %2207 : vector<1x128xf32>
    %2209 = arith.addf %1128, %2208 : vector<1x128xf32>
    %2210 = arith.subf %706, %1130 : vector<1x128xf32>
    %2211 = arith.mulf %2206, %2210 : vector<1x128xf32>
    %2212 = arith.addf %1130, %2211 : vector<1x128xf32>
    %2213 = arith.select %2194, %704, %115 : vector<1x128xi1>, vector<1x128xf32>
    %2214 = arith.select %2197, %2209, %2213 : vector<1x128xi1>, vector<1x128xf32>
    %2215 = arith.select %2194, %706, %131 : vector<1x128xi1>, vector<1x128xf32>
    %2216 = arith.select %2197, %2212, %2215 : vector<1x128xi1>, vector<1x128xf32>
    %2217 = arith.select %2194, %2209, %115 : vector<1x128xi1>, vector<1x128xf32>
    %2218 = arith.select %2196, %704, %2217 : vector<1x128xi1>, vector<1x128xf32>
    %2219 = arith.select %2194, %2212, %131 : vector<1x128xi1>, vector<1x128xf32>
    %2220 = arith.select %2196, %706, %2219 : vector<1x128xi1>, vector<1x128xf32>
    %2221 = arith.mulf %2218, %1348 : vector<1x128xf32>
    %2222 = arith.mulf %1346, %2220 : vector<1x128xf32>
    %2223 = arith.subf %2221, %2222 : vector<1x128xf32>
    %2224 = arith.mulf %1346, %1352 : vector<1x128xf32>
    %2225 = arith.addf %2223, %2224 : vector<1x128xf32>
    %2226 = arith.mulf %1350, %1348 : vector<1x128xf32>
    %2227 = arith.subf %2225, %2226 : vector<1x128xf32>
    %2228 = arith.mulf %1350, %1376 : vector<1x128xf32>
    %2229 = arith.addf %2227, %2228 : vector<1x128xf32>
    %2230 = arith.mulf %1374, %1352 : vector<1x128xf32>
    %2231 = arith.subf %2229, %2230 : vector<1x128xf32>
    %2232 = arith.mulf %1374, %1380 : vector<1x128xf32>
    %2233 = arith.addf %2231, %2232 : vector<1x128xf32>
    %2234 = arith.mulf %1378, %1376 : vector<1x128xf32>
    %2235 = arith.subf %2233, %2234 : vector<1x128xf32>
    %2236 = arith.mulf %1378, %1404 : vector<1x128xf32>
    %2237 = arith.addf %2235, %2236 : vector<1x128xf32>
    %2238 = arith.mulf %1402, %1380 : vector<1x128xf32>
    %2239 = arith.subf %2237, %2238 : vector<1x128xf32>
    %2240 = arith.mulf %1402, %1408 : vector<1x128xf32>
    %2241 = arith.addf %2239, %2240 : vector<1x128xf32>
    %2242 = arith.mulf %1406, %1404 : vector<1x128xf32>
    %2243 = arith.subf %2241, %2242 : vector<1x128xf32>
    %2244 = arith.mulf %1406, %1432 : vector<1x128xf32>
    %2245 = arith.addf %2243, %2244 : vector<1x128xf32>
    %2246 = arith.mulf %1430, %1408 : vector<1x128xf32>
    %2247 = arith.subf %2245, %2246 : vector<1x128xf32>
    %2248 = arith.mulf %1430, %1436 : vector<1x128xf32>
    %2249 = arith.addf %2247, %2248 : vector<1x128xf32>
    %2250 = arith.mulf %1434, %1432 : vector<1x128xf32>
    %2251 = arith.subf %2249, %2250 : vector<1x128xf32>
    %2252 = arith.mulf %1434, %1460 : vector<1x128xf32>
    %2253 = arith.addf %2251, %2252 : vector<1x128xf32>
    %2254 = arith.mulf %1458, %1436 : vector<1x128xf32>
    %2255 = arith.subf %2253, %2254 : vector<1x128xf32>
    %2256 = arith.mulf %1458, %1464 : vector<1x128xf32>
    %2257 = arith.addf %2255, %2256 : vector<1x128xf32>
    %2258 = arith.mulf %1462, %1460 : vector<1x128xf32>
    %2259 = arith.subf %2257, %2258 : vector<1x128xf32>
    %2260 = arith.mulf %1462, %1488 : vector<1x128xf32>
    %2261 = arith.addf %2259, %2260 : vector<1x128xf32>
    %2262 = arith.mulf %1486, %1464 : vector<1x128xf32>
    %2263 = arith.subf %2261, %2262 : vector<1x128xf32>
    %2264 = arith.mulf %1486, %1492 : vector<1x128xf32>
    %2265 = arith.addf %2263, %2264 : vector<1x128xf32>
    %2266 = arith.mulf %1490, %1488 : vector<1x128xf32>
    %2267 = arith.subf %2265, %2266 : vector<1x128xf32>
    %2268 = arith.mulf %1490, %1516 : vector<1x128xf32>
    %2269 = arith.addf %2267, %2268 : vector<1x128xf32>
    %2270 = arith.mulf %1514, %1492 : vector<1x128xf32>
    %2271 = arith.subf %2269, %2270 : vector<1x128xf32>
    %2272 = arith.mulf %1514, %1520 : vector<1x128xf32>
    %2273 = arith.addf %2271, %2272 : vector<1x128xf32>
    %2274 = arith.mulf %1518, %1516 : vector<1x128xf32>
    %2275 = arith.subf %2273, %2274 : vector<1x128xf32>
    %2276 = arith.mulf %1518, %1544 : vector<1x128xf32>
    %2277 = arith.addf %2275, %2276 : vector<1x128xf32>
    %2278 = arith.mulf %1542, %1520 : vector<1x128xf32>
    %2279 = arith.subf %2277, %2278 : vector<1x128xf32>
    %2280 = arith.mulf %1542, %1548 : vector<1x128xf32>
    %2281 = arith.addf %2279, %2280 : vector<1x128xf32>
    %2282 = arith.mulf %1546, %1544 : vector<1x128xf32>
    %2283 = arith.subf %2281, %2282 : vector<1x128xf32>
    %2284 = arith.mulf %1546, %1572 : vector<1x128xf32>
    %2285 = arith.addf %2283, %2284 : vector<1x128xf32>
    %2286 = arith.mulf %1570, %1548 : vector<1x128xf32>
    %2287 = arith.subf %2285, %2286 : vector<1x128xf32>
    %2288 = arith.mulf %1570, %1576 : vector<1x128xf32>
    %2289 = arith.addf %2287, %2288 : vector<1x128xf32>
    %2290 = arith.mulf %1574, %1572 : vector<1x128xf32>
    %2291 = arith.subf %2289, %2290 : vector<1x128xf32>
    %2292 = arith.mulf %1574, %1600 : vector<1x128xf32>
    %2293 = arith.addf %2291, %2292 : vector<1x128xf32>
    %2294 = arith.mulf %1598, %1576 : vector<1x128xf32>
    %2295 = arith.subf %2293, %2294 : vector<1x128xf32>
    %2296 = arith.mulf %1598, %1604 : vector<1x128xf32>
    %2297 = arith.addf %2295, %2296 : vector<1x128xf32>
    %2298 = arith.mulf %1602, %1600 : vector<1x128xf32>
    %2299 = arith.subf %2297, %2298 : vector<1x128xf32>
    %2300 = arith.mulf %1602, %1628 : vector<1x128xf32>
    %2301 = arith.addf %2299, %2300 : vector<1x128xf32>
    %2302 = arith.mulf %1626, %1604 : vector<1x128xf32>
    %2303 = arith.subf %2301, %2302 : vector<1x128xf32>
    %2304 = arith.mulf %1626, %1632 : vector<1x128xf32>
    %2305 = arith.addf %2303, %2304 : vector<1x128xf32>
    %2306 = arith.mulf %1630, %1628 : vector<1x128xf32>
    %2307 = arith.subf %2305, %2306 : vector<1x128xf32>
    %2308 = arith.mulf %1630, %1656 : vector<1x128xf32>
    %2309 = arith.addf %2307, %2308 : vector<1x128xf32>
    %2310 = arith.mulf %1654, %1632 : vector<1x128xf32>
    %2311 = arith.subf %2309, %2310 : vector<1x128xf32>
    %2312 = arith.mulf %1654, %1660 : vector<1x128xf32>
    %2313 = arith.addf %2311, %2312 : vector<1x128xf32>
    %2314 = arith.mulf %1658, %1656 : vector<1x128xf32>
    %2315 = arith.subf %2313, %2314 : vector<1x128xf32>
    %2316 = arith.mulf %1658, %1684 : vector<1x128xf32>
    %2317 = arith.addf %2315, %2316 : vector<1x128xf32>
    %2318 = arith.mulf %1682, %1660 : vector<1x128xf32>
    %2319 = arith.subf %2317, %2318 : vector<1x128xf32>
    %2320 = arith.mulf %1682, %1688 : vector<1x128xf32>
    %2321 = arith.addf %2319, %2320 : vector<1x128xf32>
    %2322 = arith.mulf %1686, %1684 : vector<1x128xf32>
    %2323 = arith.subf %2321, %2322 : vector<1x128xf32>
    %2324 = arith.mulf %1686, %1712 : vector<1x128xf32>
    %2325 = arith.addf %2323, %2324 : vector<1x128xf32>
    %2326 = arith.mulf %1710, %1688 : vector<1x128xf32>
    %2327 = arith.subf %2325, %2326 : vector<1x128xf32>
    %2328 = arith.mulf %1710, %1716 : vector<1x128xf32>
    %2329 = arith.addf %2327, %2328 : vector<1x128xf32>
    %2330 = arith.mulf %1714, %1712 : vector<1x128xf32>
    %2331 = arith.subf %2329, %2330 : vector<1x128xf32>
    %2332 = arith.mulf %1714, %1740 : vector<1x128xf32>
    %2333 = arith.addf %2331, %2332 : vector<1x128xf32>
    %2334 = arith.mulf %1738, %1716 : vector<1x128xf32>
    %2335 = arith.subf %2333, %2334 : vector<1x128xf32>
    %2336 = arith.mulf %1738, %1744 : vector<1x128xf32>
    %2337 = arith.addf %2335, %2336 : vector<1x128xf32>
    %2338 = arith.mulf %1742, %1740 : vector<1x128xf32>
    %2339 = arith.subf %2337, %2338 : vector<1x128xf32>
    %2340 = arith.mulf %1742, %1768 : vector<1x128xf32>
    %2341 = arith.addf %2339, %2340 : vector<1x128xf32>
    %2342 = arith.mulf %1766, %1744 : vector<1x128xf32>
    %2343 = arith.subf %2341, %2342 : vector<1x128xf32>
    %2344 = arith.mulf %1766, %1772 : vector<1x128xf32>
    %2345 = arith.addf %2343, %2344 : vector<1x128xf32>
    %2346 = arith.mulf %1770, %1768 : vector<1x128xf32>
    %2347 = arith.subf %2345, %2346 : vector<1x128xf32>
    %2348 = arith.mulf %1770, %1796 : vector<1x128xf32>
    %2349 = arith.addf %2347, %2348 : vector<1x128xf32>
    %2350 = arith.mulf %1794, %1772 : vector<1x128xf32>
    %2351 = arith.subf %2349, %2350 : vector<1x128xf32>
    %2352 = arith.mulf %1794, %1800 : vector<1x128xf32>
    %2353 = arith.addf %2351, %2352 : vector<1x128xf32>
    %2354 = arith.mulf %1798, %1796 : vector<1x128xf32>
    %2355 = arith.subf %2353, %2354 : vector<1x128xf32>
    %2356 = arith.mulf %1798, %1824 : vector<1x128xf32>
    %2357 = arith.addf %2355, %2356 : vector<1x128xf32>
    %2358 = arith.mulf %1822, %1800 : vector<1x128xf32>
    %2359 = arith.subf %2357, %2358 : vector<1x128xf32>
    %2360 = arith.mulf %1822, %1828 : vector<1x128xf32>
    %2361 = arith.addf %2359, %2360 : vector<1x128xf32>
    %2362 = arith.mulf %1826, %1824 : vector<1x128xf32>
    %2363 = arith.subf %2361, %2362 : vector<1x128xf32>
    %2364 = arith.mulf %1826, %1852 : vector<1x128xf32>
    %2365 = arith.addf %2363, %2364 : vector<1x128xf32>
    %2366 = arith.mulf %1850, %1828 : vector<1x128xf32>
    %2367 = arith.subf %2365, %2366 : vector<1x128xf32>
    %2368 = arith.mulf %1850, %1856 : vector<1x128xf32>
    %2369 = arith.addf %2367, %2368 : vector<1x128xf32>
    %2370 = arith.mulf %1854, %1852 : vector<1x128xf32>
    %2371 = arith.subf %2369, %2370 : vector<1x128xf32>
    %2372 = arith.mulf %1854, %1880 : vector<1x128xf32>
    %2373 = arith.addf %2371, %2372 : vector<1x128xf32>
    %2374 = arith.mulf %1878, %1856 : vector<1x128xf32>
    %2375 = arith.subf %2373, %2374 : vector<1x128xf32>
    %2376 = arith.mulf %1878, %1884 : vector<1x128xf32>
    %2377 = arith.addf %2375, %2376 : vector<1x128xf32>
    %2378 = arith.mulf %1882, %1880 : vector<1x128xf32>
    %2379 = arith.subf %2377, %2378 : vector<1x128xf32>
    %2380 = arith.mulf %1882, %1908 : vector<1x128xf32>
    %2381 = arith.addf %2379, %2380 : vector<1x128xf32>
    %2382 = arith.mulf %1906, %1884 : vector<1x128xf32>
    %2383 = arith.subf %2381, %2382 : vector<1x128xf32>
    %2384 = arith.mulf %1906, %1912 : vector<1x128xf32>
    %2385 = arith.addf %2383, %2384 : vector<1x128xf32>
    %2386 = arith.mulf %1910, %1908 : vector<1x128xf32>
    %2387 = arith.subf %2385, %2386 : vector<1x128xf32>
    %2388 = arith.mulf %1910, %1936 : vector<1x128xf32>
    %2389 = arith.addf %2387, %2388 : vector<1x128xf32>
    %2390 = arith.mulf %1934, %1912 : vector<1x128xf32>
    %2391 = arith.subf %2389, %2390 : vector<1x128xf32>
    %2392 = arith.mulf %1934, %1940 : vector<1x128xf32>
    %2393 = arith.addf %2391, %2392 : vector<1x128xf32>
    %2394 = arith.mulf %1938, %1936 : vector<1x128xf32>
    %2395 = arith.subf %2393, %2394 : vector<1x128xf32>
    %2396 = arith.mulf %1938, %1964 : vector<1x128xf32>
    %2397 = arith.addf %2395, %2396 : vector<1x128xf32>
    %2398 = arith.mulf %1962, %1940 : vector<1x128xf32>
    %2399 = arith.subf %2397, %2398 : vector<1x128xf32>
    %2400 = arith.mulf %1962, %1968 : vector<1x128xf32>
    %2401 = arith.addf %2399, %2400 : vector<1x128xf32>
    %2402 = arith.mulf %1966, %1964 : vector<1x128xf32>
    %2403 = arith.subf %2401, %2402 : vector<1x128xf32>
    %2404 = arith.mulf %1966, %1992 : vector<1x128xf32>
    %2405 = arith.addf %2403, %2404 : vector<1x128xf32>
    %2406 = arith.mulf %1990, %1968 : vector<1x128xf32>
    %2407 = arith.subf %2405, %2406 : vector<1x128xf32>
    %2408 = arith.mulf %1990, %1996 : vector<1x128xf32>
    %2409 = arith.addf %2407, %2408 : vector<1x128xf32>
    %2410 = arith.mulf %1994, %1992 : vector<1x128xf32>
    %2411 = arith.subf %2409, %2410 : vector<1x128xf32>
    %2412 = arith.mulf %1994, %2020 : vector<1x128xf32>
    %2413 = arith.addf %2411, %2412 : vector<1x128xf32>
    %2414 = arith.mulf %2018, %1996 : vector<1x128xf32>
    %2415 = arith.subf %2413, %2414 : vector<1x128xf32>
    %2416 = arith.mulf %2018, %2024 : vector<1x128xf32>
    %2417 = arith.addf %2415, %2416 : vector<1x128xf32>
    %2418 = arith.mulf %2022, %2020 : vector<1x128xf32>
    %2419 = arith.subf %2417, %2418 : vector<1x128xf32>
    %2420 = arith.mulf %2022, %2048 : vector<1x128xf32>
    %2421 = arith.addf %2419, %2420 : vector<1x128xf32>
    %2422 = arith.mulf %2046, %2024 : vector<1x128xf32>
    %2423 = arith.subf %2421, %2422 : vector<1x128xf32>
    %2424 = arith.mulf %2046, %2052 : vector<1x128xf32>
    %2425 = arith.addf %2423, %2424 : vector<1x128xf32>
    %2426 = arith.mulf %2050, %2048 : vector<1x128xf32>
    %2427 = arith.subf %2425, %2426 : vector<1x128xf32>
    %2428 = arith.mulf %2050, %2076 : vector<1x128xf32>
    %2429 = arith.addf %2427, %2428 : vector<1x128xf32>
    %2430 = arith.mulf %2074, %2052 : vector<1x128xf32>
    %2431 = arith.subf %2429, %2430 : vector<1x128xf32>
    %2432 = arith.mulf %2074, %2080 : vector<1x128xf32>
    %2433 = arith.addf %2431, %2432 : vector<1x128xf32>
    %2434 = arith.mulf %2078, %2076 : vector<1x128xf32>
    %2435 = arith.subf %2433, %2434 : vector<1x128xf32>
    %2436 = arith.mulf %2078, %2104 : vector<1x128xf32>
    %2437 = arith.addf %2435, %2436 : vector<1x128xf32>
    %2438 = arith.mulf %2102, %2080 : vector<1x128xf32>
    %2439 = arith.subf %2437, %2438 : vector<1x128xf32>
    %2440 = arith.mulf %2102, %2108 : vector<1x128xf32>
    %2441 = arith.addf %2439, %2440 : vector<1x128xf32>
    %2442 = arith.mulf %2106, %2104 : vector<1x128xf32>
    %2443 = arith.subf %2441, %2442 : vector<1x128xf32>
    %2444 = arith.mulf %2106, %2132 : vector<1x128xf32>
    %2445 = arith.addf %2443, %2444 : vector<1x128xf32>
    %2446 = arith.mulf %2130, %2108 : vector<1x128xf32>
    %2447 = arith.subf %2445, %2446 : vector<1x128xf32>
    %2448 = arith.mulf %2130, %2136 : vector<1x128xf32>
    %2449 = arith.addf %2447, %2448 : vector<1x128xf32>
    %2450 = arith.mulf %2134, %2132 : vector<1x128xf32>
    %2451 = arith.subf %2449, %2450 : vector<1x128xf32>
    %2452 = arith.mulf %2134, %2160 : vector<1x128xf32>
    %2453 = arith.addf %2451, %2452 : vector<1x128xf32>
    %2454 = arith.mulf %2158, %2136 : vector<1x128xf32>
    %2455 = arith.subf %2453, %2454 : vector<1x128xf32>
    %2456 = arith.mulf %2158, %2164 : vector<1x128xf32>
    %2457 = arith.addf %2455, %2456 : vector<1x128xf32>
    %2458 = arith.mulf %2162, %2160 : vector<1x128xf32>
    %2459 = arith.subf %2457, %2458 : vector<1x128xf32>
    %2460 = arith.mulf %2162, %2188 : vector<1x128xf32>
    %2461 = arith.addf %2459, %2460 : vector<1x128xf32>
    %2462 = arith.mulf %2186, %2164 : vector<1x128xf32>
    %2463 = arith.subf %2461, %2462 : vector<1x128xf32>
    %2464 = arith.mulf %2186, %2192 : vector<1x128xf32>
    %2465 = arith.addf %2463, %2464 : vector<1x128xf32>
    %2466 = arith.mulf %2190, %2188 : vector<1x128xf32>
    %2467 = arith.subf %2465, %2466 : vector<1x128xf32>
    %2468 = arith.mulf %2190, %2216 : vector<1x128xf32>
    %2469 = arith.addf %2467, %2468 : vector<1x128xf32>
    %2470 = arith.mulf %2214, %2192 : vector<1x128xf32>
    %2471 = arith.subf %2469, %2470 : vector<1x128xf32>
    %2472 = arith.mulf %2214, %2220 : vector<1x128xf32>
    %2473 = arith.addf %2471, %2472 : vector<1x128xf32>
    %2474 = arith.mulf %2218, %2216 : vector<1x128xf32>
    %2475 = arith.subf %2473, %2474 : vector<1x128xf32>
    %cst_340 = arith.constant 5.000000e-01 : f32
    %2476 = vector.broadcast %cst_340 : f32 to vector<1x128xf32>
    %2477 = arith.mulf %2476, %2475 : vector<1x128xf32>
    %2478 = math.absf %2477 : vector<1x128xf32>
    %2479 = arith.addf %149, %167 : vector<1x128xf32>
    %2480 = arith.subf %2479, %2478 : vector<1x128xf32>
    %cst_341 = arith.constant 9.99999996E-13 : f32
    %2481 = vector.broadcast %cst_341 : f32 to vector<1x128xf32>
    %2482 = arith.maximumf %2480, %2481 : vector<1x128xf32>
    %2483 = tpu.reciprocal %2482 {approx = true} : vector<1x128xf32> -> vector<1x128xf32>
    %2484 = arith.mulf %2478, %2483 : vector<1x128xf32>
    %c0_342 = arith.constant 0 : index
    %c0_343 = arith.constant 0 : index
    %2485 = vector.load %arg4[%c0_342, %c0_343] : memref<1x128xf32, #tpu.memory_space<vmem>>, vector<1x128xf32>
    tpu.vector_store %arg4[%c0_342, %c0_343], %2484 {strides = array<i32>} : memref<1x128xf32, #tpu.memory_space<vmem>>, vector<1x128xf32>,
    return
  }
  func.func @transform_0(%arg0: i32) -> (i32, i32) {
    %c0_i32 = arith.constant 0 : i32
    %c0_i32_0 = arith.constant 0 : i32
    return %c0_i32, %arg0 : i32, i32
  }
  func.func @transform_1(%arg0: i32) -> (i32, i32) {
    %c0_i32 = arith.constant 0 : i32
    %c0_i32_0 = arith.constant 0 : i32
    return %c0_i32, %arg0 : i32, i32
  }
  func.func @transform_2(%arg0: i32) -> (i32, i32) {
    %c0_i32 = arith.constant 0 : i32
    %c0_i32_0 = arith.constant 0 : i32
    return %c0_i32, %arg0 : i32, i32
  }
  func.func @transform_3(%arg0: i32) -> (i32, i32) {
    %c0_i32 = arith.constant 0 : i32
    %c0_i32_0 = arith.constant 0 : i32
    return %c0_i32, %arg0 : i32, i32
  }
}

</mosaic_0001>

<llo_original>
// kernel: iou_training.1
$region0: #{iou_training.1}
  #allocation0 [shape = 'u32[]', space=smem, size = 0x4, offset = 0x4, fixed_abs, tag = 'smem constant byte address 0x4 - core index']
  #allocation1 [shape = 'u32[144,128]{1,0:T(1,128)}', space=vmem, size = 0x12000, scoped, tag = 'internal scratch']
  %s0 = inlined_call_operand.vmem [shape: f32[4,128], index: 0, kind: input, shape index: {}]
  %s1 = inlined_call_operand.vmem [shape: f32[6,128], index: 1, kind: input, shape index: {}]
  %s2 = inlined_call_operand.vmem [shape: f32[1,128], index: 2, kind: output, shape index: {0}]
  %s3 = inlined_call_operand.vmem [shape: f32[1,128], index: 3, kind: output, shape index: {1}]
  %4 = xla_tuple %s2, %s3
  %s5 = sld [smem:[#allocation0]]
  $region26: #{iou_training.1} parent=0
    _
  %s7 = ssub.s32 1, %s5
  %s8 = scalar_select 0, %s7, %s5
  // Predicated region
  $region2: #{iou_training.1} parent=0 // pred_check
    _
  $region3: #{iou_training.1} parent=0 // pred_check_branch
    %10 = sbr.rel (0) target = $region5
  $region4: #{iou_training.1} parent=0 // pred_region
    _
  $region5: #{iou_training.1} parent=0 // pred_fallthru
    _
  // Predicated region
  $region6: #{iou_training.1} parent=0 // pred_check
    _
  $region7: #{iou_training.1} parent=0 // pred_check_branch
    %12 = sbr.rel (0) target = $region9
  $region8: #{iou_training.1} parent=0 // pred_region
    _
  $region9: #{iou_training.1} parent=0 // pred_fallthru
    _
  %v13 = vld [vmem:[%s0] sm:$0x1]
  %v14 = vmul.f32 %v13, 500.0
  %v15 = vadd.f32 %v14, 500.0
  %v16 = vld [vmem:[%s0 + $0x1] sm:$0x1]
  %v17 = vmul.f32 %v16, 500.0
  %v18 = vadd.f32 %v17, 500.0
  %v19 = vld [vmem:[%s0 + $0x2] sm:$0x1]
  %v20 = vmul.f32 %v19, 50.0
  %v21 = vadd.f32 %v20, 50.0
  %v22 = vld [vmem:[%s0 + $0x3] sm:$0x1]
  %v23 = vmul.f32 %v22, 3.1415927
  %v24 = vadd.f32 %v23, 3.1415927
  %v25 = vand.u32 2147483647, %v24
  %vm26 = vcmp.le.f32.partialorder %v25, 0.7853982
  %vm27 = vcmp.lt.s32.totalorder %v24, 0
  %v28 = vand.u32 %v24, 2139095040
  %v29 = vshrl.u32 %v28, 23
  %v30 = vsub.s32 %v29, 127
  %v31 = vand.u32 2147483647, %v24
  %v32 = vand.u32 %v31, 8388607
  %v33 = vor.u32 %v32, 8388608
  %v34 = vsub.s32 0, %v33
  %v35 = vadd.s32 %v30, 1
  %vm36 = vcmp.gt.s32.totalorder %v35, 0
  %v37 = vsel %vm36, %v35, 0
  %v38 = vshrl.u32 %v37, 5
  %v39 = vand.u32 %v37, 31
  %v40 = vsub.s32 32, %v39
  %v41 = vshrl.u32 683565275, %v40
  %v42 = vshll.u32 683565275, %v39
  %v43 = vshrl.u32 2475754826, %v40
  %v44 = vor.u32 %v42, %v43
  %v45 = vshll.u32 2475754826, %v39
  %v46 = vshrl.u32 2131351028, %v40
  %v47 = vor.u32 %v45, %v46
  %v48 = vshll.u32 2131351028, %v39
  %v49 = vshrl.u32 2102212464, %v40
  %v50 = vor.u32 %v48, %v49
  %v51 = vshll.u32 2102212464, %v39
  %v52 = vshrl.u32 920167782, %v40
  %v53 = vor.u32 %v51, %v52
  %v54 = vshll.u32 920167782, %v39
  %v55 = vshrl.u32 1326507024, %v40
  %v56 = vor.u32 %v54, %v55
  %vm57 = vcmp.lt.s32.totalorder %v38, 1
  %vm58 = vcmp.lt.s32.totalorder %v38, 2
  %vm59 = vcmp.lt.s32.totalorder %v38, 3
  %vm60 = vcmp.lt.s32.totalorder %v38, 4
  %v61 = vsel %vm57, %v41, %v44
  %v62 = vsel %vm60, %v50, 2102212464
  %v63 = vsel %vm59, %v47, %v62
  %v64 = vsel %vm58, %v61, %v63
  %v65 = vsel %vm57, %v44, %v47
  %v66 = vsel %vm60, %v53, 920167782
  %v67 = vsel %vm59, %v50, %v66
  %v68 = vsel %vm58, %v65, %v67
  %v69 = vsel %vm57, %v47, %v50
  %v70 = vsel %vm60, %v56, 1326507024
  %v71 = vsel %vm59, %v53, %v70
  %v72 = vsel %vm58, %v69, %v71
  %v73 = vshll.u32 %v33, 8
  %v74 = vmul.u32.u64.compose %v73, %v72
  %v75 = vextract.low.u32 %v74
  %v76 = vextract.high.u32 %v74
  %v77 = vmul.u32.u64.compose %v73, %v68
  %v78 = vextract.low.u32 %v77
  %v79 = vextract.high.u32 %v77
  %v80 = vmul.u32 %v73, %v64
  %v81 = vadd.s32 %v76, %v78
  %vm82 = vc.u32 %v76, %v78
  %v83 = vadd.s32 %v79, 1
  %v84 = vsel %vm82, %v83, %v79
  %v85 = vadd.s32 %v80, %v84
  %v86 = vadd.s32 %v85, 536870912
  %v87 = vshrl.u32 %v86, 30
  %v88 = vshll.u32 %v87, 30
  %v89 = vsub.s32 %v85, %v88
  %vm90 = vcmp.lt.s32.totalorder %v89, 0
  %v91 = vsub.s32 0, %v89
  %v92 = vsel %vm90, %v91, %v89
  %v93 = vclz %v92
  %v94 = vsub.s32 %v93, 2
  %vm95 = vcmp.gt.s32.totalorder 0, %v94
  %v96 = vsel %vm95, 0, %v94
  %v97 = vsub.s32 32, %v96
  %v98 = vshll.u32 %v89, %v96
  %v99 = vshrl.u32 %v81, %v97
  %v100 = vor.u32 %v98, %v99
  %v101 = vsub.s32 4294967266, %v96
  %v102 = vadd.s32 %v101, 127
  %v103 = vshll.u32 %v102, 23
  %v104 = vor.u32 4788187, %v103
  %v105 = vand.u32 2147483647, %v104
  %v107 = vcvt.s32.f32 %v100
  %v108 = vmul.f32 %v107, %v105
  %v109 = vxor.u32 %v108, 2147483648
  %v110 = vsel %vm27, %v109, %v108
  %v111 = vsub.s32 4, %v87
  %v112 = vsel %vm27, %v111, %v87
  %v113 = vsel %vm26, %v24, %v110
  %v114 = vsel %vm26, 0, %v112
  %v115 = vcosq.f32.pop %v113
  %v116 = vsinq.f32.pop %v113
  %vm117 = vweird.f32 %v24
  %v118 = vadd.s32 %v114, 3
  %v119 = vand.u32 %v118, 3
  %vm120 = vcmp.lt.s32.totalorder %v119, 2
  %vm121 = vcmp.eq.s32.totalorder %v119, 0
  %v122 = vxor.u32 %v116, 2147483648
  %v123 = vsel %vm121, %v115, %v122
  %vm124 = vcmp.eq.s32.totalorder %v119, 2
  %v125 = vxor.u32 %v115, 2147483648
  %v126 = vsel %vm124, %v125, %v116
  %v127 = vsel %vm120, %v123, %v126
  %v128 = vsel %vm117, nan, %v127
  %v129 = vand.u32 2147483647, %v24
  %vm130 = vcmp.le.f32.partialorder %v129, 0.7853982
  %vm131 = vcmp.lt.s32.totalorder %v24, 0
  %v132 = vand.u32 %v24, 2139095040
  %v133 = vshrl.u32 %v132, 23
  %v134 = vsub.s32 %v133, 127
  %v135 = vand.u32 2147483647, %v24
  %v136 = vand.u32 %v135, 8388607
  %v137 = vor.u32 %v136, 8388608
  %v138 = vsub.s32 0, %v137
  %v139 = vadd.s32 %v134, 1
  %vm140 = vcmp.gt.s32.totalorder %v139, 0
  %v141 = vsel %vm140, %v139, 0
  %v142 = vshrl.u32 %v141, 5
  %v143 = vand.u32 %v141, 31
  %v144 = vsub.s32 32, %v143
  %v145 = vshrl.u32 683565275, %v144
  %v146 = vshll.u32 683565275, %v143
  %v147 = vshrl.u32 2475754826, %v144
  %v148 = vor.u32 %v146, %v147
  %v149 = vshll.u32 2475754826, %v143
  %v150 = vshrl.u32 2131351028, %v144
  %v151 = vor.u32 %v149, %v150
  %v152 = vshll.u32 2131351028, %v143
  %v153 = vshrl.u32 2102212464, %v144
  %v154 = vor.u32 %v152, %v153
  %v155 = vshll.u32 2102212464, %v143
  %v156 = vshrl.u32 920167782, %v144
  %v157 = vor.u32 %v155, %v156
  %v158 = vshll.u32 920167782, %v143
  %v159 = vshrl.u32 1326507024, %v144
  %v160 = vor.u32 %v158, %v159
  %vm161 = vcmp.lt.s32.totalorder %v142, 1
  %vm162 = vcmp.lt.s32.totalorder %v142, 2
  %vm163 = vcmp.lt.s32.totalorder %v142, 3
  %vm164 = vcmp.lt.s32.totalorder %v142, 4
  %v165 = vsel %vm161, %v145, %v148
  %v166 = vsel %vm164, %v154, 2102212464
  %v167 = vsel %vm163, %v151, %v166
  %v168 = vsel %vm162, %v165, %v167
  %v169 = vsel %vm161, %v148, %v151
  %v170 = vsel %vm164, %v157, 920167782
  %v171 = vsel %vm163, %v154, %v170
  %v172 = vsel %vm162, %v169, %v171
  %v173 = vsel %vm161, %v151, %v154
  %v174 = vsel %vm164, %v160, 1326507024
  %v175 = vsel %vm163, %v157, %v174
  %v176 = vsel %vm162, %v173, %v175
  %v177 = vshll.u32 %v137, 8
  %v178 = vmul.u32.u64.compose %v177, %v176
  %v179 = vextract.low.u32 %v178
  %v180 = vextract.high.u32 %v178
  %v181 = vmul.u32.u64.compose %v177, %v172
  %v182 = vextract.low.u32 %v181
  %v183 = vextract.high.u32 %v181
  %v184 = vmul.u32 %v177, %v168
  %v185 = vadd.s32 %v180, %v182
  %vm186 = vc.u32 %v180, %v182
  %v187 = vadd.s32 %v183, 1
  %v188 = vsel %vm186, %v187, %v183
  %v189 = vadd.s32 %v184, %v188
  %v190 = vadd.s32 %v189, 536870912
  %v191 = vshrl.u32 %v190, 30
  %v192 = vshll.u32 %v191, 30
  %v193 = vsub.s32 %v189, %v192
  %vm194 = vcmp.lt.s32.totalorder %v193, 0
  %v195 = vsub.s32 0, %v193
  %v196 = vsel %vm194, %v195, %v193
  %v197 = vclz %v196
  %v198 = vsub.s32 %v197, 2
  %vm199 = vcmp.gt.s32.totalorder 0, %v198
  %v200 = vsel %vm199, 0, %v198
  %v201 = vsub.s32 32, %v200
  %v202 = vshll.u32 %v193, %v200
  %v203 = vshrl.u32 %v185, %v201
  %v204 = vor.u32 %v202, %v203
  %v205 = vsub.s32 4294967266, %v200
  %v206 = vadd.s32 %v205, 127
  %v207 = vshll.u32 %v206, 23
  %v208 = vor.u32 4788187, %v207
  %v209 = vand.u32 2147483647, %v208
  %v211 = vcvt.s32.f32 %v204
  %v212 = vmul.f32 %v211, %v209
  %v213 = vxor.u32 %v212, 2147483648
  %v214 = vsel %vm131, %v213, %v212
  %v215 = vsub.s32 4, %v191
  %v216 = vsel %vm131, %v215, %v191
  %v217 = vsel %vm130, %v24, %v214
  %v218 = vsel %vm130, 0, %v216
  %v219 = vcosq.f32.pop %v217
  %v220 = vsinq.f32.pop %v217
  %vm221 = vweird.f32 %v24
  %v222 = vand.u32 %v218, 3
  %vm223 = vcmp.lt.s32.totalorder %v222, 2
  %vm224 = vcmp.eq.s32.totalorder %v222, 0
  %v225 = vxor.u32 %v220, 2147483648
  %v226 = vsel %vm224, %v219, %v225
  %vm227 = vcmp.eq.s32.totalorder %v222, 2
  %v228 = vxor.u32 %v219, 2147483648
  %v229 = vsel %vm227, %v228, %v220
  %v230 = vsel %vm223, %v226, %v229
  %v231 = vsel %vm221, nan, %v230
  %v232 = vld [vmem:[%s1] sm:$0x1]
  %v233 = vld [vmem:[%s1 + $0x1] sm:$0x1]
  %v234 = vld [vmem:[%s1 + $0x2] sm:$0x1]
  %v235 = vld [vmem:[%s1 + $0x3] sm:$0x1]
  %v236 = vld [vmem:[%s1 + $0x4] sm:$0x1]
  %v237 = vld [vmem:[%s1 + $0x5] sm:$0x1]
  %v238 = vsub.f32 %v15, %v232
  %v239 = vsub.f32 %v18, %v233
  %v240 = vsub.f32 %v21, %v235
  %v241 = vsub.f32 %v128, %v236
  %v242 = vsub.f32 %v231, %v237
  %v243 = vmul.f32 %v238, %v238
  %v244 = vmul.f32 %v239, %v239
  %v245 = vadd.f32 %v243, %v244
  %v246 = vmul.f32 %v240, %v240
  %v247 = vadd.f32 %v245, %v246
  %v248 = vmul.f32 %v241, %v241
  %v249 = vadd.f32 %v247, %v248
  %v250 = vmul.f32 %v242, %v242
  %v251 = vadd.f32 %v249, %v250
  %v252 = vrsqrt.pop %v251
  %v253 = vmul.f32 %v251, %v252
  %vm254 = vcmp.eq.f32.partialorder %v251, inf
  %v255 = vsel %vm254, %v251, %v253
  %vm256 = vcmp.eq.f32.partialorder %v251, 0.0
  %v257 = vand.u32 %v251, 2147483648
  %v258 = vsel %vm256, %v257, %v255
  %259 = vst [vmem:[%s2] sm:$0x1] %v258
  %v260 = vmul.f32 %v21, 0.5
  %v261 = vmul.f32 %v234, 0.5
  %v262 = vsub.f32 0.0, %v260
  %v263 = vsub.f32 0.0, %v261
  %v264 = vmul.f32 %v231, %v262
  %v265 = vmul.f32 %v128, %v263
  %v266 = vsub.f32 %v264, %v265
  %v267 = vadd.f32 %v266, %v15
  %v268 = vmul.f32 %v231, %v260
  %v269 = vsub.f32 %v268, %v265
  %v270 = vadd.f32 %v269, %v15
  %v271 = vmul.f32 %v128, %v261
  %v272 = vsub.f32 %v268, %v271
  %v273 = vadd.f32 %v272, %v15
  %v274 = vsub.f32 %v264, %v271
  %v275 = vadd.f32 %v274, %v15
  %v276 = vmul.f32 %v128, %v262
  %v277 = vmul.f32 %v231, %v263
  %v278 = vadd.f32 %v276, %v277
  %v279 = vadd.f32 %v278, %v18
  %v280 = vmul.f32 %v128, %v260
  %v281 = vadd.f32 %v280, %v277
  %v282 = vadd.f32 %v281, %v18
  %v283 = vmul.f32 %v231, %v261
  %v284 = vadd.f32 %v280, %v283
  %v285 = vadd.f32 %v284, %v18
  %v286 = vadd.f32 %v276, %v283
  %v287 = vadd.f32 %v286, %v18
  %v288 = vmul.f32 %v235, 0.5
  %v289 = vsub.f32 0.0, %v288
  %v290 = vmul.f32 %v237, %v289
  %v291 = vmul.f32 %v236, %v263
  %v292 = vsub.f32 %v290, %v291
  %v293 = vadd.f32 %v292, %v232
  %v294 = vmul.f32 %v237, %v288
  %v295 = vsub.f32 %v294, %v291
  %v296 = vadd.f32 %v295, %v232
  %v297 = vmul.f32 %v236, %v261
  %v298 = vsub.f32 %v294, %v297
  %v299 = vadd.f32 %v298, %v232
  %v300 = vsub.f32 %v290, %v297
  %v301 = vadd.f32 %v300, %v232
  %v302 = vmul.f32 %v236, %v289
  %v303 = vmul.f32 %v237, %v263
  %v304 = vadd.f32 %v302, %v303
  %v305 = vadd.f32 %v304, %v233
  %v306 = vmul.f32 %v236, %v288
  %v307 = vadd.f32 %v306, %v303
  %v308 = vadd.f32 %v307, %v233
  %v309 = vmul.f32 %v237, %v261
  %v310 = vadd.f32 %v306, %v309
  %v311 = vadd.f32 %v310, %v233
  %v312 = vadd.f32 %v302, %v309
  %v313 = vadd.f32 %v312, %v233
  %v314 = vmul.f32 %v275, %v279
  %v315 = vmul.f32 %v267, %v287
  %v316 = vsub.f32 %v314, %v315
  %v317 = vmul.f32 %v267, %v282
  %v318 = vadd.f32 %v316, %v317
  %v319 = vmul.f32 %v270, %v279
  %v320 = vsub.f32 %v318, %v319
  %v321 = vmul.f32 %v270, %v285
  %v322 = vadd.f32 %v320, %v321
  %v323 = vmul.f32 %v273, %v282
  %v324 = vsub.f32 %v322, %v323
  %v325 = vmul.f32 %v273, %v287
  %v326 = vadd.f32 %v324, %v325
  %v327 = vmul.f32 %v275, %v285
  %v328 = vsub.f32 %v326, %v327
  %v329 = vmul.f32 %v328, 0.5
  %v330 = vand.u32 2147483647, %v329
  %v331 = vmul.f32 %v301, %v305
  %v332 = vmul.f32 %v293, %v313
  %v333 = vsub.f32 %v331, %v332
  %v334 = vmul.f32 %v293, %v308
  %v335 = vadd.f32 %v333, %v334
  %v336 = vmul.f32 %v296, %v305
  %v337 = vsub.f32 %v335, %v336
  %v338 = vmul.f32 %v296, %v311
  %v339 = vadd.f32 %v337, %v338
  %v340 = vmul.f32 %v299, %v308
  %v341 = vsub.f32 %v339, %v340
  %v342 = vmul.f32 %v299, %v313
  %v343 = vadd.f32 %v341, %v342
  %v344 = vmul.f32 %v301, %v311
  %v345 = vsub.f32 %v343, %v344
  %v346 = vmul.f32 %v345, 0.5
  %v347 = vand.u32 2147483647, %v346
  %vm348 = vcmp.ge.f32.partialorder %v346, 0.0
  %v349 = vsel %vm348, 1.0, -1.0
  %v350 = vsub.f32 %v296, %v293
  %v351 = vsub.f32 %v308, %v305
  %v352 = vsub.f32 %v279, %v305
  %v353 = vmul.f32 %v350, %v352
  %v354 = vsub.f32 %v267, %v293
  %v355 = vmul.f32 %v351, %v354
  %v356 = vsub.f32 %v353, %v355
  %v357 = vmul.f32 %v349, %v356
  %v358 = vsub.f32 %v282, %v305
  %v359 = vmul.f32 %v350, %v358
  %v360 = vsub.f32 %v270, %v293
  %v361 = vmul.f32 %v351, %v360
  %v362 = vsub.f32 %v359, %v361
  %v363 = vmul.f32 %v349, %v362
  %v364 = vsub.f32 %v285, %v305
  %v365 = vmul.f32 %v350, %v364
  %v366 = vsub.f32 %v273, %v293
  %v367 = vmul.f32 %v351, %v366
  %v368 = vsub.f32 %v365, %v367
  %v369 = vmul.f32 %v349, %v368
  %v370 = vsub.f32 %v287, %v305
  %v371 = vmul.f32 %v350, %v370
  %v372 = vsub.f32 %v275, %v293
  %v373 = vmul.f32 %v351, %v372
  %v374 = vsub.f32 %v371, %v373
  %v375 = vmul.f32 %v349, %v374
  %vm376 = vcmp.ge.f32.partialorder %v357, 0.0
  %vm377 = vcmp.ge.f32.partialorder %v363, 0.0
  %vm378 = vmxor %vm376, %vm377
  %v379 = vsub.f32 %v357, %v363
  %vm380 = vcmp.ge.f32.partialorder %v379, 0.0
  %v381 = vmax.f32 %v379, 1e-20
  %v382 = vmin.f32 %v379, -1e-20
  %v383 = vsel %vm380, %v381, %v382
  %v384 = vrcp.pop %v383
  %v385 = vmul.f32 %v357, %v384
  %v386 = vsub.f32 %v270, %v267
  %v387 = vmul.f32 %v385, %v386
  %v388 = vadd.f32 %v267, %v387
  %v389 = vsub.f32 %v282, %v279
  %v390 = vmul.f32 %v385, %v389
  %v391 = vadd.f32 %v279, %v390
  %v392 = vsel %vm376, %v270, %v293
  %v393 = vsel %vm378, %v388, %v392
  %v394 = vsel %vm376, %v282, %v305
  %v395 = vsel %vm378, %v391, %v394
  %v396 = vsel %vm376, %v388, %v293
  %v397 = vsel %vm377, %v270, %v396
  %v398 = vsel %vm376, %v391, %v305
  %v399 = vsel %vm377, %v282, %v398
  %vm400 = vcmp.ge.f32.partialorder %v369, 0.0
  %vm401 = vmxor %vm377, %vm400
  %v402 = vsub.f32 %v363, %v369
  %vm403 = vcmp.ge.f32.partialorder %v402, 0.0
  %v404 = vmax.f32 %v402, 1e-20
  %v405 = vmin.f32 %v402, -1e-20
  %v406 = vsel %vm403, %v404, %v405
  %v407 = vrcp.pop %v406
  %v408 = vmul.f32 %v363, %v407
  %v409 = vsub.f32 %v273, %v270
  %v410 = vmul.f32 %v408, %v409
  %v411 = vadd.f32 %v270, %v410
  %v412 = vsub.f32 %v285, %v282
  %v413 = vmul.f32 %v408, %v412
  %v414 = vadd.f32 %v282, %v413
  %v415 = vsel %vm377, %v273, %v293
  %v416 = vsel %vm401, %v411, %v415
  %v417 = vsel %vm377, %v285, %v305
  %v418 = vsel %vm401, %v414, %v417
  %v419 = vsel %vm377, %v411, %v293
  %v420 = vsel %vm400, %v273, %v419
  %v421 = vsel %vm377, %v414, %v305
  %v422 = vsel %vm400, %v285, %v421
  %vm423 = vcmp.ge.f32.partialorder %v375, 0.0
  %vm424 = vmxor %vm400, %vm423
  %v425 = vsub.f32 %v369, %v375
  %vm426 = vcmp.ge.f32.partialorder %v425, 0.0
  %v427 = vmax.f32 %v425, 1e-20
  %v428 = vmin.f32 %v425, -1e-20
  %v429 = vsel %vm426, %v427, %v428
  %v430 = vrcp.pop %v429
  %v431 = vmul.f32 %v369, %v430
  %v432 = vsub.f32 %v275, %v273
  %v433 = vmul.f32 %v431, %v432
  %v434 = vadd.f32 %v273, %v433
  %v435 = vsub.f32 %v287, %v285
  %v436 = vmul.f32 %v431, %v435
  %v437 = vadd.f32 %v285, %v436
  %v438 = vsel %vm400, %v275, %v293
  %v439 = vsel %vm424, %v434, %v438
  %v440 = vsel %vm400, %v287, %v305
  %v441 = vsel %vm424, %v437, %v440
  %v442 = vsel %vm400, %v434, %v293
  %v443 = vsel %vm423, %v275, %v442
  %v444 = vsel %vm400, %v437, %v305
  %v445 = vsel %vm423, %v287, %v444
  %vm446 = vmxor %vm423, %vm376
  %v447 = vsub.f32 %v375, %v357
  %vm448 = vcmp.ge.f32.partialorder %v447, 0.0
  %v449 = vmax.f32 %v447, 1e-20
  %v450 = vmin.f32 %v447, -1e-20
  %v451 = vsel %vm448, %v449, %v450
  %v452 = vrcp.pop %v451
  %v453 = vmul.f32 %v375, %v452
  %v454 = vsub.f32 %v267, %v275
  %v455 = vmul.f32 %v453, %v454
  %v456 = vadd.f32 %v275, %v455
  %v457 = vsub.f32 %v279, %v287
  %v458 = vmul.f32 %v453, %v457
  %v459 = vadd.f32 %v287, %v458
  %v460 = vsel %vm423, %v267, %v293
  %v461 = vsel %vm446, %v456, %v460
  %v462 = vsel %vm423, %v279, %v305
  %v463 = vsel %vm446, %v459, %v462
  %v464 = vsel %vm423, %v456, %v293
  %v465 = vsel %vm376, %v267, %v464
  %v466 = vsel %vm423, %v459, %v305
  %v467 = vsel %vm376, %v279, %v466
  %v468 = vsub.f32 %v299, %v296
  %v469 = vsub.f32 %v311, %v308
  %v470 = vsub.f32 %v395, %v308
  %v471 = vmul.f32 %v468, %v470
  %v472 = vsub.f32 %v393, %v296
  %v473 = vmul.f32 %v469, %v472
  %v474 = vsub.f32 %v471, %v473
  %v475 = vmul.f32 %v349, %v474
  %v476 = vsub.f32 %v399, %v308
  %v477 = vmul.f32 %v468, %v476
  %v478 = vsub.f32 %v397, %v296
  %v479 = vmul.f32 %v469, %v478
  %v480 = vsub.f32 %v477, %v479
  %v481 = vmul.f32 %v349, %v480
  %v482 = vsub.f32 %v418, %v308
  %v483 = vmul.f32 %v468, %v482
  %v484 = vsub.f32 %v416, %v296
  %v485 = vmul.f32 %v469, %v484
  %v486 = vsub.f32 %v483, %v485
  %v487 = vmul.f32 %v349, %v486
  %v488 = vsub.f32 %v422, %v308
  %v489 = vmul.f32 %v468, %v488
  %v490 = vsub.f32 %v420, %v296
  %v491 = vmul.f32 %v469, %v490
  %v492 = vsub.f32 %v489, %v491
  %v493 = vmul.f32 %v349, %v492
  %v494 = vsub.f32 %v441, %v308
  %v495 = vmul.f32 %v468, %v494
  %v496 = vsub.f32 %v439, %v296
  %v497 = vmul.f32 %v469, %v496
  %v498 = vsub.f32 %v495, %v497
  %v499 = vmul.f32 %v349, %v498
  %v500 = vsub.f32 %v445, %v308
  %v501 = vmul.f32 %v468, %v500
  %v502 = vsub.f32 %v443, %v296
  %v503 = vmul.f32 %v469, %v502
  %v504 = vsub.f32 %v501, %v503
  %v505 = vmul.f32 %v349, %v504
  %v506 = vsub.f32 %v463, %v308
  %v507 = vmul.f32 %v468, %v506
  %v508 = vsub.f32 %v461, %v296
  %v509 = vmul.f32 %v469, %v508
  %v510 = vsub.f32 %v507, %v509
  %v511 = vmul.f32 %v349, %v510
  %v512 = vsub.f32 %v467, %v308
  %v513 = vmul.f32 %v468, %v512
  %v514 = vsub.f32 %v465, %v296
  %v515 = vmul.f32 %v469, %v514
  %v516 = vsub.f32 %v513, %v515
  %v517 = vmul.f32 %v349, %v516
  %vm518 = vcmp.ge.f32.partialorder %v475, 0.0
  %vm519 = vcmp.ge.f32.partialorder %v481, 0.0
  %vm520 = vmxor %vm518, %vm519
  %v521 = vsub.f32 %v475, %v481
  %vm522 = vcmp.ge.f32.partialorder %v521, 0.0
  %v523 = vmax.f32 %v521, 1e-20
  %v524 = vmin.f32 %v521, -1e-20
  %v525 = vsel %vm522, %v523, %v524
  %v526 = vrcp.pop %v525
  %v527 = vmul.f32 %v475, %v526
  %v528 = vsub.f32 %v397, %v393
  %v529 = vmul.f32 %v527, %v528
  %v530 = vadd.f32 %v393, %v529
  %v531 = vsub.f32 %v399, %v395
  %v532 = vmul.f32 %v527, %v531
  %v533 = vadd.f32 %v395, %v532
  %v534 = vsel %vm518, %v397, %v296
  %v535 = vsel %vm520, %v530, %v534
  %v536 = vsel %vm518, %v399, %v308
  %v537 = vsel %vm520, %v533, %v536
  %v538 = vsel %vm518, %v530, %v296
  %v539 = vsel %vm519, %v397, %v538
  %v540 = vsel %vm518, %v533, %v308
  %v541 = vsel %vm519, %v399, %v540
  %vm542 = vcmp.ge.f32.partialorder %v487, 0.0
  %vm543 = vmxor %vm519, %vm542
  %v544 = vsub.f32 %v481, %v487
  %vm545 = vcmp.ge.f32.partialorder %v544, 0.0
  %v546 = vmax.f32 %v544, 1e-20
  %v547 = vmin.f32 %v544, -1e-20
  %v548 = vsel %vm545, %v546, %v547
  %v549 = vrcp.pop %v548
  %v550 = vmul.f32 %v481, %v549
  %v551 = vsub.f32 %v416, %v397
  %v552 = vmul.f32 %v550, %v551
  %v553 = vadd.f32 %v397, %v552
  %v554 = vsub.f32 %v418, %v399
  %v555 = vmul.f32 %v550, %v554
  %v556 = vadd.f32 %v399, %v555
  %v557 = vsel %vm519, %v416, %v296
  %v558 = vsel %vm543, %v553, %v557
  %v559 = vsel %vm519, %v418, %v308
  %v560 = vsel %vm543, %v556, %v559
  %v561 = vsel %vm519, %v553, %v296
  %v562 = vsel %vm542, %v416, %v561
  %v563 = vsel %vm519, %v556, %v308
  %v564 = vsel %vm542, %v418, %v563
  %vm565 = vcmp.ge.f32.partialorder %v493, 0.0
  %vm566 = vmxor %vm542, %vm565
  %v567 = vsub.f32 %v487, %v493
  %vm568 = vcmp.ge.f32.partialorder %v567, 0.0
  %v569 = vmax.f32 %v567, 1e-20
  %v570 = vmin.f32 %v567, -1e-20
  %v571 = vsel %vm568, %v569, %v570
  %v572 = vrcp.pop %v571
  %v573 = vmul.f32 %v487, %v572
  %v574 = vsub.f32 %v420, %v416
  %v575 = vmul.f32 %v573, %v574
  %v576 = vadd.f32 %v416, %v575
  %v577 = vsub.f32 %v422, %v418
  %v578 = vmul.f32 %v573, %v577
  %v579 = vadd.f32 %v418, %v578
  %v580 = vsel %vm542, %v420, %v296
  %v581 = vsel %vm566, %v576, %v580
  %v582 = vsel %vm542, %v422, %v308
  %v583 = vsel %vm566, %v579, %v582
  %v584 = vsel %vm542, %v576, %v296
  %v585 = vsel %vm565, %v420, %v584
  %v586 = vsel %vm542, %v579, %v308
  %v587 = vsel %vm565, %v422, %v586
  %vm588 = vcmp.ge.f32.partialorder %v499, 0.0
  %vm589 = vmxor %vm565, %vm588
  %v590 = vsub.f32 %v493, %v499
  %vm591 = vcmp.ge.f32.partialorder %v590, 0.0
  %v592 = vmax.f32 %v590, 1e-20
  %v593 = vmin.f32 %v590, -1e-20
  %v594 = vsel %vm591, %v592, %v593
  %v595 = vrcp.pop %v594
  %v596 = vmul.f32 %v493, %v595
  %v597 = vsub.f32 %v439, %v420
  %v598 = vmul.f32 %v596, %v597
  %v599 = vadd.f32 %v420, %v598
  %v600 = vsub.f32 %v441, %v422
  %v601 = vmul.f32 %v596, %v600
  %v602 = vadd.f32 %v422, %v601
  %v603 = vsel %vm565, %v439, %v296
  %v604 = vsel %vm589, %v599, %v603
  %v605 = vsel %vm565, %v441, %v308
  %v606 = vsel %vm589, %v602, %v605
  %v607 = vsel %vm565, %v599, %v296
  %v608 = vsel %vm588, %v439, %v607
  %v609 = vsel %vm565, %v602, %v308
  %v610 = vsel %vm588, %v441, %v609
  %vm611 = vcmp.ge.f32.partialorder %v505, 0.0
  %vm612 = vmxor %vm588, %vm611
  %v613 = vsub.f32 %v499, %v505
  %vm614 = vcmp.ge.f32.partialorder %v613, 0.0
  %v615 = vmax.f32 %v613, 1e-20
  %v616 = vmin.f32 %v613, -1e-20
  %v617 = vsel %vm614, %v615, %v616
  %v618 = vrcp.pop %v617
  %v619 = vmul.f32 %v499, %v618
  %v620 = vsub.f32 %v443, %v439
  %v621 = vmul.f32 %v619, %v620
  %v622 = vadd.f32 %v439, %v621
  %v623 = vsub.f32 %v445, %v441
  %v624 = vmul.f32 %v619, %v623
  %v625 = vadd.f32 %v441, %v624
  %v626 = vsel %vm588, %v443, %v296
  %v627 = vsel %vm612, %v622, %v626
  %v628 = vsel %vm588, %v445, %v308
  %v629 = vsel %vm612, %v625, %v628
  %v630 = vsel %vm588, %v622, %v296
  %v631 = vsel %vm611, %v443, %v630
  %v632 = vsel %vm588, %v625, %v308
  %v633 = vsel %vm611, %v445, %v632
  %vm634 = vcmp.ge.f32.partialorder %v511, 0.0
  %vm635 = vmxor %vm611, %vm634
  %v636 = vsub.f32 %v505, %v511
  %vm637 = vcmp.ge.f32.partialorder %v636, 0.0
  %v638 = vmax.f32 %v636, 1e-20
  %v639 = vmin.f32 %v636, -1e-20
  %v640 = vsel %vm637, %v638, %v639
  %v641 = vrcp.pop %v640
  %v642 = vmul.f32 %v505, %v641
  %v643 = vsub.f32 %v461, %v443
  %v644 = vmul.f32 %v642, %v643
  %v645 = vadd.f32 %v443, %v644
  %v646 = vsub.f32 %v463, %v445
  %v647 = vmul.f32 %v642, %v646
  %v648 = vadd.f32 %v445, %v647
  %v649 = vsel %vm611, %v461, %v296
  %v650 = vsel %vm635, %v645, %v649
  %v651 = vsel %vm611, %v463, %v308
  %v652 = vsel %vm635, %v648, %v651
  %v653 = vsel %vm611, %v645, %v296
  %v654 = vsel %vm634, %v461, %v653
  %v655 = vsel %vm611, %v648, %v308
  %v656 = vsel %vm634, %v463, %v655
  %vm657 = vcmp.ge.f32.partialorder %v517, 0.0
  %vm658 = vmxor %vm634, %vm657
  %v659 = vsub.f32 %v511, %v517
  %vm660 = vcmp.ge.f32.partialorder %v659, 0.0
  %v661 = vmax.f32 %v659, 1e-20
  %v662 = vmin.f32 %v659, -1e-20
  %v663 = vsel %vm660, %v661, %v662
  %v664 = vrcp.pop %v663
  %v665 = vmul.f32 %v511, %v664
  %v666 = vsub.f32 %v465, %v461
  %v667 = vmul.f32 %v665, %v666
  %v668 = vadd.f32 %v461, %v667
  %v669 = vsub.f32 %v467, %v463
  %v670 = vmul.f32 %v665, %v669
  %v671 = vadd.f32 %v463, %v670
  %v672 = vsel %vm634, %v465, %v296
  %v673 = vsel %vm658, %v668, %v672
  %v674 = vsel %vm634, %v467, %v308
  %v675 = vsel %vm658, %v671, %v674
  %v676 = vsel %vm634, %v668, %v296
  %v677 = vsel %vm657, %v465, %v676
  %v678 = vsel %vm634, %v671, %v308
  %v679 = vsel %vm657, %v467, %v678
  %vm680 = vmxor %vm657, %vm518
  %v681 = vsub.f32 %v517, %v475
  %vm682 = vcmp.ge.f32.partialorder %v681, 0.0
  %v683 = vmax.f32 %v681, 1e-20
  %v684 = vmin.f32 %v681, -1e-20
  %v685 = vsel %vm682, %v683, %v684
  %v686 = vrcp.pop %v685
  %v687 = vmul.f32 %v517, %v686
  %v688 = vsub.f32 %v393, %v465
  %v689 = vmul.f32 %v687, %v688
  %v690 = vadd.f32 %v465, %v689
  %v691 = vsub.f32 %v395, %v467
  %v692 = vmul.f32 %v687, %v691
  %v693 = vadd.f32 %v467, %v692
  %v694 = vsel %vm657, %v393, %v296
  %v695 = vsel %vm680, %v690, %v694
  %v696 = vsel %vm657, %v395, %v308
  %v697 = vsel %vm680, %v693, %v696
  %v698 = vsel %vm657, %v690, %v296
  %v699 = vsel %vm518, %v393, %v698
  %v700 = vsel %vm657, %v693, %v308
  %v701 = vsel %vm518, %v395, %v700
  %v702 = vsub.f32 %v301, %v299
  %v703 = vsub.f32 %v313, %v311
  %v704 = vsub.f32 %v537, %v311
  %v705 = vmul.f32 %v702, %v704
  %v706 = vsub.f32 %v535, %v299
  %v707 = vmul.f32 %v703, %v706
  %v708 = vsub.f32 %v705, %v707
  %v709 = vmul.f32 %v349, %v708
  %v710 = vsub.f32 %v541, %v311
  %v711 = vmul.f32 %v702, %v710
  %v712 = vsub.f32 %v539, %v299
  %v713 = vmul.f32 %v703, %v712
  %v714 = vsub.f32 %v711, %v713
  %v715 = vmul.f32 %v349, %v714
  %v716 = vsub.f32 %v560, %v311
  %v717 = vmul.f32 %v702, %v716
  %v718 = vsub.f32 %v558, %v299
  %v719 = vmul.f32 %v703, %v718
  %v720 = vsub.f32 %v717, %v719
  %v721 = vmul.f32 %v349, %v720
  %v722 = vsub.f32 %v564, %v311
  %v723 = vmul.f32 %v702, %v722
  %v724 = vsub.f32 %v562, %v299
  %v725 = vmul.f32 %v703, %v724
  %v726 = vsub.f32 %v723, %v725
  %v727 = vmul.f32 %v349, %v726
  %v728 = vsub.f32 %v583, %v311
  %v729 = vmul.f32 %v702, %v728
  %v730 = vsub.f32 %v581, %v299
  %v731 = vmul.f32 %v703, %v730
  %v732 = vsub.f32 %v729, %v731
  %v733 = vmul.f32 %v349, %v732
  %v734 = vsub.f32 %v587, %v311
  %v735 = vmul.f32 %v702, %v734
  %v736 = vsub.f32 %v585, %v299
  %v737 = vmul.f32 %v703, %v736
  %v738 = vsub.f32 %v735, %v737
  %v739 = vmul.f32 %v349, %v738
  %v740 = vsub.f32 %v606, %v311
  %v741 = vmul.f32 %v702, %v740
  %v742 = vsub.f32 %v604, %v299
  %v743 = vmul.f32 %v703, %v742
  %v744 = vsub.f32 %v741, %v743
  %v745 = vmul.f32 %v349, %v744
  %v746 = vsub.f32 %v610, %v311
  %v747 = vmul.f32 %v702, %v746
  %v748 = vsub.f32 %v608, %v299
  %v749 = vmul.f32 %v703, %v748
  %v750 = vsub.f32 %v747, %v749
  %v751 = vmul.f32 %v349, %v750
  %v752 = vsub.f32 %v629, %v311
  %v753 = vmul.f32 %v702, %v752
  %v754 = vsub.f32 %v627, %v299
  %v755 = vmul.f32 %v703, %v754
  %v756 = vsub.f32 %v753, %v755
  %v757 = vmul.f32 %v349, %v756
  %v758 = vsub.f32 %v633, %v311
  %v759 = vmul.f32 %v702, %v758
  %v760 = vsub.f32 %v631, %v299
  %v761 = vmul.f32 %v703, %v760
  %v762 = vsub.f32 %v759, %v761
  %v763 = vmul.f32 %v349, %v762
  %v764 = vsub.f32 %v652, %v311
  %v765 = vmul.f32 %v702, %v764
  %v766 = vsub.f32 %v650, %v299
  %v767 = vmul.f32 %v703, %v766
  %v768 = vsub.f32 %v765, %v767
  %v769 = vmul.f32 %v349, %v768
  %v770 = vsub.f32 %v656, %v311
  %v771 = vmul.f32 %v702, %v770
  %v772 = vsub.f32 %v654, %v299
  %v773 = vmul.f32 %v703, %v772
  %v774 = vsub.f32 %v771, %v773
  %v775 = vmul.f32 %v349, %v774
  %v776 = vsub.f32 %v675, %v311
  %v777 = vmul.f32 %v702, %v776
  %v778 = vsub.f32 %v673, %v299
  %v779 = vmul.f32 %v703, %v778
  %v780 = vsub.f32 %v777, %v779
  %v781 = vmul.f32 %v349, %v780
  %v782 = vsub.f32 %v679, %v311
  %v783 = vmul.f32 %v702, %v782
  %v784 = vsub.f32 %v677, %v299
  %v785 = vmul.f32 %v703, %v784
  %v786 = vsub.f32 %v783, %v785
  %v787 = vmul.f32 %v349, %v786
  %v788 = vsub.f32 %v697, %v311
  %v789 = vmul.f32 %v702, %v788
  %v790 = vsub.f32 %v695, %v299
  %v791 = vmul.f32 %v703, %v790
  %v792 = vsub.f32 %v789, %v791
  %v793 = vmul.f32 %v349, %v792
  %v794 = vsub.f32 %v701, %v311
  %v795 = vmul.f32 %v702, %v794
  %v796 = vsub.f32 %v699, %v299
  %v797 = vmul.f32 %v703, %v796
  %v798 = vsub.f32 %v795, %v797
  %v799 = vmul.f32 %v349, %v798
  %vm800 = vcmp.ge.f32.partialorder %v709, 0.0
  %vm801 = vcmp.ge.f32.partialorder %v715, 0.0
  %vm802 = vmxor %vm800, %vm801
  %v803 = vsub.f32 %v709, %v715
  %vm804 = vcmp.ge.f32.partialorder %v803, 0.0
  %v805 = vmax.f32 %v803, 1e-20
  %v806 = vmin.f32 %v803, -1e-20
  %v807 = vsel %vm804, %v805, %v806
  %v808 = vrcp.pop %v807
  %v809 = vmul.f32 %v709, %v808
  %v810 = vsub.f32 %v539, %v535
  %v811 = vmul.f32 %v809, %v810
  %v812 = vadd.f32 %v535, %v811
  %v813 = vsub.f32 %v541, %v537
  %v814 = vmul.f32 %v809, %v813
  %v815 = vadd.f32 %v537, %v814
  %v816 = vsel %vm800, %v539, %v299
  %v817 = vsel %vm802, %v812, %v816
  %v818 = vsel %vm800, %v541, %v311
  %v819 = vsel %vm802, %v815, %v818
  %v820 = vsel %vm800, %v812, %v299
  %v821 = vsel %vm801, %v539, %v820
  %v822 = vsel %vm800, %v815, %v311
  %v823 = vsel %vm801, %v541, %v822
  %vm824 = vcmp.ge.f32.partialorder %v721, 0.0
  %vm825 = vmxor %vm801, %vm824
  %v826 = vsub.f32 %v715, %v721
  %vm827 = vcmp.ge.f32.partialorder %v826, 0.0
  %v828 = vmax.f32 %v826, 1e-20
  %v829 = vmin.f32 %v826, -1e-20
  %v830 = vsel %vm827, %v828, %v829
  %v831 = vrcp.pop %v830
  %v832 = vmul.f32 %v715, %v831
  %v833 = vsub.f32 %v558, %v539
  %v834 = vmul.f32 %v832, %v833
  %v835 = vadd.f32 %v539, %v834
  %v836 = vsub.f32 %v560, %v541
  %v837 = vmul.f32 %v832, %v836
  %v838 = vadd.f32 %v541, %v837
  %v839 = vsel %vm801, %v558, %v299
  %v840 = vsel %vm825, %v835, %v839
  %v841 = vsel %vm801, %v560, %v311
  %v842 = vsel %vm825, %v838, %v841
  %v843 = vsel %vm801, %v835, %v299
  %v844 = vsel %vm824, %v558, %v843
  %v845 = vsel %vm801, %v838, %v311
  %v846 = vsel %vm824, %v560, %v845
  %vm847 = vcmp.ge.f32.partialorder %v727, 0.0
  %vm848 = vmxor %vm824, %vm847
  %v849 = vsub.f32 %v721, %v727
  %vm850 = vcmp.ge.f32.partialorder %v849, 0.0
  %v851 = vmax.f32 %v849, 1e-20
  %v852 = vmin.f32 %v849, -1e-20
  %v853 = vsel %vm850, %v851, %v852
  %v854 = vrcp.pop %v853
  %v855 = vmul.f32 %v721, %v854
  %v856 = vsub.f32 %v562, %v558
  %v857 = vmul.f32 %v855, %v856
  %v858 = vadd.f32 %v558, %v857
  %v859 = vsub.f32 %v564, %v560
  %v860 = vmul.f32 %v855, %v859
  %v861 = vadd.f32 %v560, %v860
  %v862 = vsel %vm824, %v562, %v299
  %v863 = vsel %vm848, %v858, %v862
  %v864 = vsel %vm824, %v564, %v311
  %v865 = vsel %vm848, %v861, %v864
  %v866 = vsel %vm824, %v858, %v299
  %v867 = vsel %vm847, %v562, %v866
  %v868 = vsel %vm824, %v861, %v311
  %v869 = vsel %vm847, %v564, %v868
  %vm870 = vcmp.ge.f32.partialorder %v733, 0.0
  %vm871 = vmxor %vm847, %vm870
  %v872 = vsub.f32 %v727, %v733
  %vm873 = vcmp.ge.f32.partialorder %v872, 0.0
  %v874 = vmax.f32 %v872, 1e-20
  %v875 = vmin.f32 %v872, -1e-20
  %v876 = vsel %vm873, %v874, %v875
  %v877 = vrcp.pop %v876
  %v878 = vmul.f32 %v727, %v877
  %v879 = vsub.f32 %v581, %v562
  %v880 = vmul.f32 %v878, %v879
  %v881 = vadd.f32 %v562, %v880
  %v882 = vsub.f32 %v583, %v564
  %v883 = vmul.f32 %v878, %v882
  %v884 = vadd.f32 %v564, %v883
  %v885 = vsel %vm847, %v581, %v299
  %v886 = vsel %vm871, %v881, %v885
  %v887 = vsel %vm847, %v583, %v311
  %v888 = vsel %vm871, %v884, %v887
  %v889 = vsel %vm847, %v881, %v299
  %v890 = vsel %vm870, %v581, %v889
  %v891 = vsel %vm847, %v884, %v311
  %v892 = vsel %vm870, %v583, %v891
  %vm893 = vcmp.ge.f32.partialorder %v739, 0.0
  %vm894 = vmxor %vm870, %vm893
  %v895 = vsub.f32 %v733, %v739
  %vm896 = vcmp.ge.f32.partialorder %v895, 0.0
  %v897 = vmax.f32 %v895, 1e-20
  %v898 = vmin.f32 %v895, -1e-20
  %v899 = vsel %vm896, %v897, %v898
  %v900 = vrcp.pop %v899
  %v901 = vmul.f32 %v733, %v900
  %v902 = vsub.f32 %v585, %v581
  %v903 = vmul.f32 %v901, %v902
  %v904 = vadd.f32 %v581, %v903
  %v905 = vsub.f32 %v587, %v583
  %v906 = vmul.f32 %v901, %v905
  %v907 = vadd.f32 %v583, %v906
  %v908 = vsel %vm870, %v585, %v299
  %v909 = vsel %vm894, %v904, %v908
  %v910 = vsel %vm870, %v587, %v311
  %v911 = vsel %vm894, %v907, %v910
  %v912 = vsel %vm870, %v904, %v299
  %v913 = vsel %vm893, %v585, %v912
  %v914 = vsel %vm870, %v907, %v311
  %v915 = vsel %vm893, %v587, %v914
  %vm916 = vcmp.ge.f32.partialorder %v745, 0.0
  %vm917 = vmxor %vm893, %vm916
  %v918 = vsub.f32 %v739, %v745
  %vm919 = vcmp.ge.f32.partialorder %v918, 0.0
  %v920 = vmax.f32 %v918, 1e-20
  %v921 = vmin.f32 %v918, -1e-20
  %v922 = vsel %vm919, %v920, %v921
  %v923 = vrcp.pop %v922
  %v924 = vmul.f32 %v739, %v923
  %v925 = vsub.f32 %v604, %v585
  %v926 = vmul.f32 %v924, %v925
  %v927 = vadd.f32 %v585, %v926
  %v928 = vsub.f32 %v606, %v587
  %v929 = vmul.f32 %v924, %v928
  %v930 = vadd.f32 %v587, %v929
  %v931 = vsel %vm893, %v604, %v299
  %v932 = vsel %vm917, %v927, %v931
  %v933 = vsel %vm893, %v606, %v311
  %v934 = vsel %vm917, %v930, %v933
  %v935 = vsel %vm893, %v927, %v299
  %v936 = vsel %vm916, %v604, %v935
  %v937 = vsel %vm893, %v930, %v311
  %v938 = vsel %vm916, %v606, %v937
  %vm939 = vcmp.ge.f32.partialorder %v751, 0.0
  %vm940 = vmxor %vm916, %vm939
  %v941 = vsub.f32 %v745, %v751
  %vm942 = vcmp.ge.f32.partialorder %v941, 0.0
  %v943 = vmax.f32 %v941, 1e-20
  %v944 = vmin.f32 %v941, -1e-20
  %v945 = vsel %vm942, %v943, %v944
  %v946 = vrcp.pop %v945
  %v947 = vmul.f32 %v745, %v946
  %v948 = vsub.f32 %v608, %v604
  %v949 = vmul.f32 %v947, %v948
  %v950 = vadd.f32 %v604, %v949
  %v951 = vsub.f32 %v610, %v606
  %v952 = vmul.f32 %v947, %v951
  %v953 = vadd.f32 %v606, %v952
  %v954 = vsel %vm916, %v608, %v299
  %v955 = vsel %vm940, %v950, %v954
  %v956 = vsel %vm916, %v610, %v311
  %v957 = vsel %vm940, %v953, %v956
  %v958 = vsel %vm916, %v950, %v299
  %v959 = vsel %vm939, %v608, %v958
  %v960 = vsel %vm916, %v953, %v311
  %v961 = vsel %vm939, %v610, %v960
  %vm962 = vcmp.ge.f32.partialorder %v757, 0.0
  %vm963 = vmxor %vm939, %vm962
  %v964 = vsub.f32 %v751, %v757
  %vm965 = vcmp.ge.f32.partialorder %v964, 0.0
  %v966 = vmax.f32 %v964, 1e-20
  %v967 = vmin.f32 %v964, -1e-20
  %v968 = vsel %vm965, %v966, %v967
  %v969 = vrcp.pop %v968
  %v970 = vmul.f32 %v751, %v969
  %v971 = vsub.f32 %v627, %v608
  %v972 = vmul.f32 %v970, %v971
  %v973 = vadd.f32 %v608, %v972
  %v974 = vsub.f32 %v629, %v610
  %v975 = vmul.f32 %v970, %v974
  %v976 = vadd.f32 %v610, %v975
  %v977 = vsel %vm939, %v627, %v299
  %v978 = vsel %vm963, %v973, %v977
  %v979 = vsel %vm939, %v629, %v311
  %v980 = vsel %vm963, %v976, %v979
  %v981 = vsel %vm939, %v973, %v299
  %v982 = vsel %vm962, %v627, %v981
  %v983 = vsel %vm939, %v976, %v311
  %v984 = vsel %vm962, %v629, %v983
  %vm985 = vcmp.ge.f32.partialorder %v763, 0.0
  %vm986 = vmxor %vm962, %vm985
  %v987 = vsub.f32 %v757, %v763
  %vm988 = vcmp.ge.f32.partialorder %v987, 0.0
  %v989 = vmax.f32 %v987, 1e-20
  %v990 = vmin.f32 %v987, -1e-20
  %v991 = vsel %vm988, %v989, %v990
  %v992 = vrcp.pop %v991
  %v993 = vmul.f32 %v757, %v992
  %v994 = vsub.f32 %v631, %v627
  %v995 = vmul.f32 %v993, %v994
  %v996 = vadd.f32 %v627, %v995
  %v997 = vsub.f32 %v633, %v629
  %v998 = vmul.f32 %v993, %v997
  %v999 = vadd.f32 %v629, %v998
  %v1000 = vsel %vm962, %v631, %v299
  %v1001 = vsel %vm986, %v996, %v1000
  %v1002 = vsel %vm962, %v633, %v311
  %v1003 = vsel %vm986, %v999, %v1002
  %v1004 = vsel %vm962, %v996, %v299
  %v1005 = vsel %vm985, %v631, %v1004
  %v1006 = vsel %vm962, %v999, %v311
  %v1007 = vsel %vm985, %v633, %v1006
  %vm1008 = vcmp.ge.f32.partialorder %v769, 0.0
  %vm1009 = vmxor %vm985, %vm1008
  %v1010 = vsub.f32 %v763, %v769
  %vm1011 = vcmp.ge.f32.partialorder %v1010, 0.0
  %v1012 = vmax.f32 %v1010, 1e-20
  %v1013 = vmin.f32 %v1010, -1e-20
  %v1014 = vsel %vm1011, %v1012, %v1013
  %v1015 = vrcp.pop %v1014
  %v1016 = vmul.f32 %v763, %v1015
  %v1017 = vsub.f32 %v650, %v631
  %v1018 = vmul.f32 %v1016, %v1017
  %v1019 = vadd.f32 %v631, %v1018
  %v1020 = vsub.f32 %v652, %v633
  %v1021 = vmul.f32 %v1016, %v1020
  %v1022 = vadd.f32 %v633, %v1021
  %v1023 = vsel %vm985, %v650, %v299
  %v1024 = vsel %vm1009, %v1019, %v1023
  %v1025 = vsel %vm985, %v652, %v311
  %v1026 = vsel %vm1009, %v1022, %v1025
  %v1027 = vsel %vm985, %v1019, %v299
  %v1028 = vsel %vm1008, %v650, %v1027
  %v1029 = vsel %vm985, %v1022, %v311
  %v1030 = vsel %vm1008, %v652, %v1029
  %vm1031 = vcmp.ge.f32.partialorder %v775, 0.0
  %vm1032 = vmxor %vm1008, %vm1031
  %v1033 = vsub.f32 %v769, %v775
  %vm1034 = vcmp.ge.f32.partialorder %v1033, 0.0
  %v1035 = vmax.f32 %v1033, 1e-20
  %v1036 = vmin.f32 %v1033, -1e-20
  %v1037 = vsel %vm1034, %v1035, %v1036
  %v1038 = vrcp.pop %v1037
  %v1039 = vmul.f32 %v769, %v1038
  %v1040 = vsub.f32 %v654, %v650
  %v1041 = vmul.f32 %v1039, %v1040
  %v1042 = vadd.f32 %v650, %v1041
  %v1043 = vsub.f32 %v656, %v652
  %v1044 = vmul.f32 %v1039, %v1043
  %v1045 = vadd.f32 %v652, %v1044
  %v1046 = vsel %vm1008, %v654, %v299
  %v1047 = vsel %vm1032, %v1042, %v1046
  %v1048 = vsel %vm1008, %v656, %v311
  %v1049 = vsel %vm1032, %v1045, %v1048
  %v1050 = vsel %vm1008, %v1042, %v299
  %v1051 = vsel %vm1031, %v654, %v1050
  %v1052 = vsel %vm1008, %v1045, %v311
  %v1053 = vsel %vm1031, %v656, %v1052
  %vm1054 = vcmp.ge.f32.partialorder %v781, 0.0
  %vm1055 = vmxor %vm1031, %vm1054
  %v1056 = vsub.f32 %v775, %v781
  %vm1057 = vcmp.ge.f32.partialorder %v1056, 0.0
  %v1058 = vmax.f32 %v1056, 1e-20
  %v1059 = vmin.f32 %v1056, -1e-20
  %v1060 = vsel %vm1057, %v1058, %v1059
  %v1061 = vrcp.pop %v1060
  %v1062 = vmul.f32 %v775, %v1061
  %v1063 = vsub.f32 %v673, %v654
  %v1064 = vmul.f32 %v1062, %v1063
  %v1065 = vadd.f32 %v654, %v1064
  %v1066 = vsub.f32 %v675, %v656
  %v1067 = vmul.f32 %v1062, %v1066
  %v1068 = vadd.f32 %v656, %v1067
  %v1069 = vsel %vm1031, %v673, %v299
  %v1070 = vsel %vm1055, %v1065, %v1069
  %v1071 = vsel %vm1031, %v675, %v311
  %v1072 = vsel %vm1055, %v1068, %v1071
  %v1073 = vsel %vm1031, %v1065, %v299
  %v1074 = vsel %vm1054, %v673, %v1073
  %v1075 = vsel %vm1031, %v1068, %v311
  %v1076 = vsel %vm1054, %v675, %v1075
  %vm1077 = vcmp.ge.f32.partialorder %v787, 0.0
  %vm1078 = vmxor %vm1054, %vm1077
  %v1079 = vsub.f32 %v781, %v787
  %vm1080 = vcmp.ge.f32.partialorder %v1079, 0.0
  %v1081 = vmax.f32 %v1079, 1e-20
  %v1082 = vmin.f32 %v1079, -1e-20
  %v1083 = vsel %vm1080, %v1081, %v1082
  %v1084 = vrcp.pop %v1083
  %v1085 = vmul.f32 %v781, %v1084
  %v1086 = vsub.f32 %v677, %v673
  %v1087 = vmul.f32 %v1085, %v1086
  %v1088 = vadd.f32 %v673, %v1087
  %v1089 = vsub.f32 %v679, %v675
  %v1090 = vmul.f32 %v1085, %v1089
  %v1091 = vadd.f32 %v675, %v1090
  %v1092 = vsel %vm1054, %v677, %v299
  %v1093 = vsel %vm1078, %v1088, %v1092
  %v1094 = vsel %vm1054, %v679, %v311
  %v1095 = vsel %vm1078, %v1091, %v1094
  %v1096 = vsel %vm1054, %v1088, %v299
  %v1097 = vsel %vm1077, %v677, %v1096
  %v1098 = vsel %vm1054, %v1091, %v311
  %v1099 = vsel %vm1077, %v679, %v1098
  %vm1100 = vcmp.ge.f32.partialorder %v793, 0.0
  %vm1101 = vmxor %vm1077, %vm1100
  %v1102 = vsub.f32 %v787, %v793
  %vm1103 = vcmp.ge.f32.partialorder %v1102, 0.0
  %v1104 = vmax.f32 %v1102, 1e-20
  %v1105 = vmin.f32 %v1102, -1e-20
  %v1106 = vsel %vm1103, %v1104, %v1105
  %v1107 = vrcp.pop %v1106
  %v1108 = vmul.f32 %v787, %v1107
  %v1109 = vsub.f32 %v695, %v677
  %v1110 = vmul.f32 %v1108, %v1109
  %v1111 = vadd.f32 %v677, %v1110
  %v1112 = vsub.f32 %v697, %v679
  %v1113 = vmul.f32 %v1108, %v1112
  %v1114 = vadd.f32 %v679, %v1113
  %v1115 = vsel %vm1077, %v695, %v299
  %v1116 = vsel %vm1101, %v1111, %v1115
  %v1117 = vsel %vm1077, %v697, %v311
  %v1118 = vsel %vm1101, %v1114, %v1117
  %v1119 = vsel %vm1077, %v1111, %v299
  %v1120 = vsel %vm1100, %v695, %v1119
  %v1121 = vsel %vm1077, %v1114, %v311
  %v1122 = vsel %vm1100, %v697, %v1121
  %vm1123 = vcmp.ge.f32.partialorder %v799, 0.0
  %vm1124 = vmxor %vm1100, %vm1123
  %v1125 = vsub.f32 %v793, %v799
  %vm1126 = vcmp.ge.f32.partialorder %v1125, 0.0
  %v1127 = vmax.f32 %v1125, 1e-20
  %v1128 = vmin.f32 %v1125, -1e-20
  %v1129 = vsel %vm1126, %v1127, %v1128
  %v1130 = vrcp.pop %v1129
  %v1131 = vmul.f32 %v793, %v1130
  %v1132 = vsub.f32 %v699, %v695
  %v1133 = vmul.f32 %v1131, %v1132
  %v1134 = vadd.f32 %v695, %v1133
  %v1135 = vsub.f32 %v701, %v697
  %v1136 = vmul.f32 %v1131, %v1135
  %v1137 = vadd.f32 %v697, %v1136
  %v1138 = vsel %vm1100, %v699, %v299
  %v1139 = vsel %vm1124, %v1134, %v1138
  %v1140 = vsel %vm1100, %v701, %v311
  %v1141 = vsel %vm1124, %v1137, %v1140
  %v1142 = vsel %vm1100, %v1134, %v299
  %v1143 = vsel %vm1123, %v699, %v1142
  %v1144 = vsel %vm1100, %v1137, %v311
  %v1145 = vsel %vm1123, %v701, %v1144
  %vm1146 = vmxor %vm1123, %vm800
  %v1147 = vsub.f32 %v799, %v709
  %vm1148 = vcmp.ge.f32.partialorder %v1147, 0.0
  %v1149 = vmax.f32 %v1147, 1e-20
  %v1150 = vmin.f32 %v1147, -1e-20
  %v1151 = vsel %vm1148, %v1149, %v1150
  %v1152 = vrcp.pop %v1151
  %v1153 = vmul.f32 %v799, %v1152
  %v1154 = vsub.f32 %v535, %v699
  %v1155 = vmul.f32 %v1153, %v1154
  %v1156 = vadd.f32 %v699, %v1155
  %v1157 = vsub.f32 %v537, %v701
  %v1158 = vmul.f32 %v1153, %v1157
  %v1159 = vadd.f32 %v701, %v1158
  %v1160 = vsel %vm1123, %v535, %v299
  %v1161 = vsel %vm1146, %v1156, %v1160
  %v1162 = vsel %vm1123, %v537, %v311
  %v1163 = vsel %vm1146, %v1159, %v1162
  %v1164 = vsel %vm1123, %v1156, %v299
  %v1165 = vsel %vm800, %v535, %v1164
  %v1166 = vsel %vm1123, %v1159, %v311
  %v1167 = vsel %vm800, %v537, %v1166
  %v1168 = vsub.f32 %v293, %v301
  %v1169 = vsub.f32 %v305, %v313
  %v1170 = vsub.f32 %v819, %v313
  %v1171 = vmul.f32 %v1168, %v1170
  %v1172 = vsub.f32 %v817, %v301
  %v1173 = vmul.f32 %v1169, %v1172
  %v1174 = vsub.f32 %v1171, %v1173
  %v1175 = vmul.f32 %v349, %v1174
  %v1176 = vsub.f32 %v823, %v313
  %v1177 = vmul.f32 %v1168, %v1176
  %v1178 = vsub.f32 %v821, %v301
  %v1179 = vmul.f32 %v1169, %v1178
  %v1180 = vsub.f32 %v1177, %v1179
  %v1181 = vmul.f32 %v349, %v1180
  %v1182 = vsub.f32 %v842, %v313
  %v1183 = vmul.f32 %v1168, %v1182
  %v1184 = vsub.f32 %v840, %v301
  %v1185 = vmul.f32 %v1169, %v1184
  %v1186 = vsub.f32 %v1183, %v1185
  %v1187 = vmul.f32 %v349, %v1186
  %v1188 = vsub.f32 %v846, %v313
  %v1189 = vmul.f32 %v1168, %v1188
  %v1190 = vsub.f32 %v844, %v301
  %v1191 = vmul.f32 %v1169, %v1190
  %v1192 = vsub.f32 %v1189, %v1191
  %v1193 = vmul.f32 %v349, %v1192
  %v1194 = vsub.f32 %v865, %v313
  %v1195 = vmul.f32 %v1168, %v1194
  %v1196 = vsub.f32 %v863, %v301
  %v1197 = vmul.f32 %v1169, %v1196
  %v1198 = vsub.f32 %v1195, %v1197
  %v1199 = vmul.f32 %v349, %v1198
  %v1200 = vsub.f32 %v869, %v313
  %v1201 = vmul.f32 %v1168, %v1200
  %v1202 = vsub.f32 %v867, %v301
  %v1203 = vmul.f32 %v1169, %v1202
  %v1204 = vsub.f32 %v1201, %v1203
  %v1205 = vmul.f32 %v349, %v1204
  %v1206 = vsub.f32 %v888, %v313
  %v1207 = vmul.f32 %v1168, %v1206
  %v1208 = vsub.f32 %v886, %v301
  %v1209 = vmul.f32 %v1169, %v1208
  %v1210 = vsub.f32 %v1207, %v1209
  %v1211 = vmul.f32 %v349, %v1210
  %v1212 = vsub.f32 %v892, %v313
  %v1213 = vmul.f32 %v1168, %v1212
  %v1214 = vsub.f32 %v890, %v301
  %v1215 = vmul.f32 %v1169, %v1214
  %v1216 = vsub.f32 %v1213, %v1215
  %v1217 = vmul.f32 %v349, %v1216
  %v1218 = vsub.f32 %v911, %v313
  %v1219 = vmul.f32 %v1168, %v1218
  %v1220 = vsub.f32 %v909, %v301
  %v1221 = vmul.f32 %v1169, %v1220
  %v1222 = vsub.f32 %v1219, %v1221
  %v1223 = vmul.f32 %v349, %v1222
  %v1224 = vsub.f32 %v915, %v313
  %v1225 = vmul.f32 %v1168, %v1224
  %v1226 = vsub.f32 %v913, %v301
  %v1227 = vmul.f32 %v1169, %v1226
  %v1228 = vsub.f32 %v1225, %v1227
  %v1229 = vmul.f32 %v349, %v1228
  %v1230 = vsub.f32 %v934, %v313
  %v1231 = vmul.f32 %v1168, %v1230
  %v1232 = vsub.f32 %v932, %v301
  %v1233 = vmul.f32 %v1169, %v1232
  %v1234 = vsub.f32 %v1231, %v1233
  %v1235 = vmul.f32 %v349, %v1234
  %v1236 = vsub.f32 %v938, %v313
  %v1237 = vmul.f32 %v1168, %v1236
  %v1238 = vsub.f32 %v936, %v301
  %v1239 = vmul.f32 %v1169, %v1238
  %v1240 = vsub.f32 %v1237, %v1239
  %v1241 = vmul.f32 %v349, %v1240
  %v1242 = vsub.f32 %v957, %v313
  %v1243 = vmul.f32 %v1168, %v1242
  %v1244 = vsub.f32 %v955, %v301
  %v1245 = vmul.f32 %v1169, %v1244
  %v1246 = vsub.f32 %v1243, %v1245
  %v1247 = vmul.f32 %v349, %v1246
  %v1248 = vsub.f32 %v961, %v313
  %v1249 = vmul.f32 %v1168, %v1248
  %v1250 = vsub.f32 %v959, %v301
  %v1251 = vmul.f32 %v1169, %v1250
  %v1252 = vsub.f32 %v1249, %v1251
  %v1253 = vmul.f32 %v349, %v1252
  %v1254 = vsub.f32 %v980, %v313
  %v1255 = vmul.f32 %v1168, %v1254
  %v1256 = vsub.f32 %v978, %v301
  %v1257 = vmul.f32 %v1169, %v1256
  %v1258 = vsub.f32 %v1255, %v1257
  %v1259 = vmul.f32 %v349, %v1258
  %v1260 = vsub.f32 %v984, %v313
  %v1261 = vmul.f32 %v1168, %v1260
  %v1262 = vsub.f32 %v982, %v301
  %v1263 = vmul.f32 %v1169, %v1262
  %v1264 = vsub.f32 %v1261, %v1263
  %v1265 = vmul.f32 %v349, %v1264
  %v1266 = vsub.f32 %v1003, %v313
  %v1267 = vmul.f32 %v1168, %v1266
  %v1268 = vsub.f32 %v1001, %v301
  %v1269 = vmul.f32 %v1169, %v1268
  %v1270 = vsub.f32 %v1267, %v1269
  %v1271 = vmul.f32 %v349, %v1270
  %v1272 = vsub.f32 %v1007, %v313
  %v1273 = vmul.f32 %v1168, %v1272
  %v1274 = vsub.f32 %v1005, %v301
  %v1275 = vmul.f32 %v1169, %v1274
  %v1276 = vsub.f32 %v1273, %v1275
  %v1277 = vmul.f32 %v349, %v1276
  %v1278 = vsub.f32 %v1026, %v313
  %v1279 = vmul.f32 %v1168, %v1278
  %v1280 = vsub.f32 %v1024, %v301
  %v1281 = vmul.f32 %v1169, %v1280
  %v1282 = vsub.f32 %v1279, %v1281
  %v1283 = vmul.f32 %v349, %v1282
  %v1284 = vsub.f32 %v1030, %v313
  %v1285 = vmul.f32 %v1168, %v1284
  %v1286 = vsub.f32 %v1028, %v301
  %v1287 = vmul.f32 %v1169, %v1286
  %v1288 = vsub.f32 %v1285, %v1287
  %v1289 = vmul.f32 %v349, %v1288
  %v1290 = vsub.f32 %v1049, %v313
  %v1291 = vmul.f32 %v1168, %v1290
  %v1292 = vsub.f32 %v1047, %v301
  %v1293 = vmul.f32 %v1169, %v1292
  %v1294 = vsub.f32 %v1291, %v1293
  %v1295 = vmul.f32 %v349, %v1294
  %v1296 = vsub.f32 %v1053, %v313
  %v1297 = vmul.f32 %v1168, %v1296
  %v1298 = vsub.f32 %v1051, %v301
  %v1299 = vmul.f32 %v1169, %v1298
  %v1300 = vsub.f32 %v1297, %v1299
  %v1301 = vmul.f32 %v349, %v1300
  %v1302 = vsub.f32 %v1072, %v313
  %v1303 = vmul.f32 %v1168, %v1302
  %v1304 = vsub.f32 %v1070, %v301
  %v1305 = vmul.f32 %v1169, %v1304
  %v1306 = vsub.f32 %v1303, %v1305
  %v1307 = vmul.f32 %v349, %v1306
  %v1308 = vsub.f32 %v1076, %v313
  %v1309 = vmul.f32 %v1168, %v1308
  %v1310 = vsub.f32 %v1074, %v301
  %v1311 = vmul.f32 %v1169, %v1310
  %v1312 = vsub.f32 %v1309, %v1311
  %v1313 = vmul.f32 %v349, %v1312
  %v1314 = vsub.f32 %v1095, %v313
  %v1315 = vmul.f32 %v1168, %v1314
  %v1316 = vsub.f32 %v1093, %v301
  %v1317 = vmul.f32 %v1169, %v1316
  %v1318 = vsub.f32 %v1315, %v1317
  %v1319 = vmul.f32 %v349, %v1318
  %v1320 = vsub.f32 %v1099, %v313
  %v1321 = vmul.f32 %v1168, %v1320
  %v1322 = vsub.f32 %v1097, %v301
  %v1323 = vmul.f32 %v1169, %v1322
  %v1324 = vsub.f32 %v1321, %v1323
  %v1325 = vmul.f32 %v349, %v1324
  %v1326 = vsub.f32 %v1118, %v313
  %v1327 = vmul.f32 %v1168, %v1326
  %v1328 = vsub.f32 %v1116, %v301
  %v1329 = vmul.f32 %v1169, %v1328
  %v1330 = vsub.f32 %v1327, %v1329
  %v1331 = vmul.f32 %v349, %v1330
  %v1332 = vsub.f32 %v1122, %v313
  %v1333 = vmul.f32 %v1168, %v1332
  %v1334 = vsub.f32 %v1120, %v301
  %v1335 = vmul.f32 %v1169, %v1334
  %v1336 = vsub.f32 %v1333, %v1335
  %v1337 = vmul.f32 %v349, %v1336
  %v1338 = vsub.f32 %v1141, %v313
  %v1339 = vmul.f32 %v1168, %v1338
  %v1340 = vsub.f32 %v1139, %v301
  %v1341 = vmul.f32 %v1169, %v1340
  %v1342 = vsub.f32 %v1339, %v1341
  %v1343 = vmul.f32 %v349, %v1342
  %v1344 = vsub.f32 %v1145, %v313
  %v1345 = vmul.f32 %v1168, %v1344
  %v1346 = vsub.f32 %v1143, %v301
  %v1347 = vmul.f32 %v1169, %v1346
  %v1348 = vsub.f32 %v1345, %v1347
  %v1349 = vmul.f32 %v349, %v1348
  %v1350 = vsub.f32 %v1163, %v313
  %v1351 = vmul.f32 %v1168, %v1350
  %v1352 = vsub.f32 %v1161, %v301
  %v1353 = vmul.f32 %v1169, %v1352
  %v1354 = vsub.f32 %v1351, %v1353
  %v1355 = vmul.f32 %v349, %v1354
  %v1356 = vsub.f32 %v1167, %v313
  %v1357 = vmul.f32 %v1168, %v1356
  %v1358 = vsub.f32 %v1165, %v301
  %v1359 = vmul.f32 %v1169, %v1358
  %v1360 = vsub.f32 %v1357, %v1359
  %v1361 = vmul.f32 %v349, %v1360
  %vm1362 = vcmp.ge.f32.partialorder %v1175, 0.0
  %vm1363 = vcmp.ge.f32.partialorder %v1181, 0.0
  %vm1364 = vmxor %vm1362, %vm1363
  %v1365 = vsub.f32 %v1175, %v1181
  %vm1366 = vcmp.ge.f32.partialorder %v1365, 0.0
  %v1367 = vmax.f32 %v1365, 1e-20
  %v1368 = vmin.f32 %v1365, -1e-20
  %v1369 = vsel %vm1366, %v1367, %v1368
  %v1370 = vrcp.pop %v1369
  %v1371 = vmul.f32 %v1175, %v1370
  %v1372 = vsub.f32 %v821, %v817
  %v1373 = vmul.f32 %v1371, %v1372
  %v1374 = vadd.f32 %v817, %v1373
  %v1375 = vsub.f32 %v823, %v819
  %v1376 = vmul.f32 %v1371, %v1375
  %v1377 = vadd.f32 %v819, %v1376
  %v1378 = vsel %vm1362, %v821, %v301
  %v1379 = vsel %vm1364, %v1374, %v1378
  %v1380 = vsel %vm1362, %v823, %v313
  %v1381 = vsel %vm1364, %v1377, %v1380
  %v1382 = vsel %vm1362, %v1374, %v301
  %v1383 = vsel %vm1363, %v821, %v1382
  %v1384 = vsel %vm1362, %v1377, %v313
  %v1385 = vsel %vm1363, %v823, %v1384
  %vm1386 = vcmp.ge.f32.partialorder %v1187, 0.0
  %vm1387 = vmxor %vm1363, %vm1386
  %v1388 = vsub.f32 %v1181, %v1187
  %vm1389 = vcmp.ge.f32.partialorder %v1388, 0.0
  %v1390 = vmax.f32 %v1388, 1e-20
  %v1391 = vmin.f32 %v1388, -1e-20
  %v1392 = vsel %vm1389, %v1390, %v1391
  %v1393 = vrcp.pop %v1392
  %v1394 = vmul.f32 %v1181, %v1393
  %v1395 = vsub.f32 %v840, %v821
  %v1396 = vmul.f32 %v1394, %v1395
  %v1397 = vadd.f32 %v821, %v1396
  %v1398 = vsub.f32 %v842, %v823
  %v1399 = vmul.f32 %v1394, %v1398
  %v1400 = vadd.f32 %v823, %v1399
  %v1401 = vsel %vm1363, %v840, %v301
  %v1402 = vsel %vm1387, %v1397, %v1401
  %v1403 = vsel %vm1363, %v842, %v313
  %v1404 = vsel %vm1387, %v1400, %v1403
  %v1405 = vsel %vm1363, %v1397, %v301
  %v1406 = vsel %vm1386, %v840, %v1405
  %v1407 = vsel %vm1363, %v1400, %v313
  %v1408 = vsel %vm1386, %v842, %v1407
  %vm1409 = vcmp.ge.f32.partialorder %v1193, 0.0
  %vm1410 = vmxor %vm1386, %vm1409
  %v1411 = vsub.f32 %v1187, %v1193
  %vm1412 = vcmp.ge.f32.partialorder %v1411, 0.0
  %v1413 = vmax.f32 %v1411, 1e-20
  %v1414 = vmin.f32 %v1411, -1e-20
  %v1415 = vsel %vm1412, %v1413, %v1414
  %v1416 = vrcp.pop %v1415
  %v1417 = vmul.f32 %v1187, %v1416
  %v1418 = vsub.f32 %v844, %v840
  %v1419 = vmul.f32 %v1417, %v1418
  %v1420 = vadd.f32 %v840, %v1419
  %v1421 = vsub.f32 %v846, %v842
  %v1422 = vmul.f32 %v1417, %v1421
  %v1423 = vadd.f32 %v842, %v1422
  %v1424 = vsel %vm1386, %v844, %v301
  %v1425 = vsel %vm1410, %v1420, %v1424
  %v1426 = vsel %vm1386, %v846, %v313
  %v1427 = vsel %vm1410, %v1423, %v1426
  %v1428 = vsel %vm1386, %v1420, %v301
  %v1429 = vsel %vm1409, %v844, %v1428
  %v1430 = vsel %vm1386, %v1423, %v313
  %v1431 = vsel %vm1409, %v846, %v1430
  %vm1432 = vcmp.ge.f32.partialorder %v1199, 0.0
  %vm1433 = vmxor %vm1409, %vm1432
  %v1434 = vsub.f32 %v1193, %v1199
  %vm1435 = vcmp.ge.f32.partialorder %v1434, 0.0
  %v1436 = vmax.f32 %v1434, 1e-20
  %v1437 = vmin.f32 %v1434, -1e-20
  %v1438 = vsel %vm1435, %v1436, %v1437
  %v1439 = vrcp.pop %v1438
  %v1440 = vmul.f32 %v1193, %v1439
  %v1441 = vsub.f32 %v863, %v844
  %v1442 = vmul.f32 %v1440, %v1441
  %v1443 = vadd.f32 %v844, %v1442
  %v1444 = vsub.f32 %v865, %v846
  %v1445 = vmul.f32 %v1440, %v1444
  %v1446 = vadd.f32 %v846, %v1445
  %v1447 = vsel %vm1409, %v863, %v301
  %v1448 = vsel %vm1433, %v1443, %v1447
  %v1449 = vsel %vm1409, %v865, %v313
  %v1450 = vsel %vm1433, %v1446, %v1449
  %v1451 = vsel %vm1409, %v1443, %v301
  %v1452 = vsel %vm1432, %v863, %v1451
  %v1453 = vsel %vm1409, %v1446, %v313
  %v1454 = vsel %vm1432, %v865, %v1453
  %vm1455 = vcmp.ge.f32.partialorder %v1205, 0.0
  %vm1456 = vmxor %vm1432, %vm1455
  %v1457 = vsub.f32 %v1199, %v1205
  %vm1458 = vcmp.ge.f32.partialorder %v1457, 0.0
  %v1459 = vmax.f32 %v1457, 1e-20
  %v1460 = vmin.f32 %v1457, -1e-20
  %v1461 = vsel %vm1458, %v1459, %v1460
  %v1462 = vrcp.pop %v1461
  %v1463 = vmul.f32 %v1199, %v1462
  %v1464 = vsub.f32 %v867, %v863
  %v1465 = vmul.f32 %v1463, %v1464
  %v1466 = vadd.f32 %v863, %v1465
  %v1467 = vsub.f32 %v869, %v865
  %v1468 = vmul.f32 %v1463, %v1467
  %v1469 = vadd.f32 %v865, %v1468
  %v1470 = vsel %vm1432, %v867, %v301
  %v1471 = vsel %vm1456, %v1466, %v1470
  %v1472 = vsel %vm1432, %v869, %v313
  %v1473 = vsel %vm1456, %v1469, %v1472
  %v1474 = vsel %vm1432, %v1466, %v301
  %v1475 = vsel %vm1455, %v867, %v1474
  %v1476 = vsel %vm1432, %v1469, %v313
  %v1477 = vsel %vm1455, %v869, %v1476
  %vm1478 = vcmp.ge.f32.partialorder %v1211, 0.0
  %vm1479 = vmxor %vm1455, %vm1478
  %v1480 = vsub.f32 %v1205, %v1211
  %vm1481 = vcmp.ge.f32.partialorder %v1480, 0.0
  %v1482 = vmax.f32 %v1480, 1e-20
  %v1483 = vmin.f32 %v1480, -1e-20
  %v1484 = vsel %vm1481, %v1482, %v1483
  %v1485 = vrcp.pop %v1484
  %v1486 = vmul.f32 %v1205, %v1485
  %v1487 = vsub.f32 %v886, %v867
  %v1488 = vmul.f32 %v1486, %v1487
  %v1489 = vadd.f32 %v867, %v1488
  %v1490 = vsub.f32 %v888, %v869
  %v1491 = vmul.f32 %v1486, %v1490
  %v1492 = vadd.f32 %v869, %v1491
  %v1493 = vsel %vm1455, %v886, %v301
  %v1494 = vsel %vm1479, %v1489, %v1493
  %v1495 = vsel %vm1455, %v888, %v313
  %v1496 = vsel %vm1479, %v1492, %v1495
  %v1497 = vsel %vm1455, %v1489, %v301
  %v1498 = vsel %vm1478, %v886, %v1497
  %v1499 = vsel %vm1455, %v1492, %v313
  %v1500 = vsel %vm1478, %v888, %v1499
  %vm1501 = vcmp.ge.f32.partialorder %v1217, 0.0
  %vm1502 = vmxor %vm1478, %vm1501
  %v1503 = vsub.f32 %v1211, %v1217
  %vm1504 = vcmp.ge.f32.partialorder %v1503, 0.0
  %v1505 = vmax.f32 %v1503, 1e-20
  %v1506 = vmin.f32 %v1503, -1e-20
  %v1507 = vsel %vm1504, %v1505, %v1506
  %v1508 = vrcp.pop %v1507
  %v1509 = vmul.f32 %v1211, %v1508
  %v1510 = vsub.f32 %v890, %v886
  %v1511 = vmul.f32 %v1509, %v1510
  %v1512 = vadd.f32 %v886, %v1511
  %v1513 = vsub.f32 %v892, %v888
  %v1514 = vmul.f32 %v1509, %v1513
  %v1515 = vadd.f32 %v888, %v1514
  %v1516 = vsel %vm1478, %v890, %v301
  %v1517 = vsel %vm1502, %v1512, %v1516
  %v1518 = vsel %vm1478, %v892, %v313
  %v1519 = vsel %vm1502, %v1515, %v1518
  %v1520 = vsel %vm1478, %v1512, %v301
  %v1521 = vsel %vm1501, %v890, %v1520
  %v1522 = vsel %vm1478, %v1515, %v313
  %v1523 = vsel %vm1501, %v892, %v1522
  %vm1524 = vcmp.ge.f32.partialorder %v1223, 0.0
  %vm1525 = vmxor %vm1501, %vm1524
  %v1526 = vsub.f32 %v1217, %v1223
  %vm1527 = vcmp.ge.f32.partialorder %v1526, 0.0
  %v1528 = vmax.f32 %v1526, 1e-20
  %v1529 = vmin.f32 %v1526, -1e-20
  %v1530 = vsel %vm1527, %v1528, %v1529
  %v1531 = vrcp.pop %v1530
  %v1532 = vmul.f32 %v1217, %v1531
  %v1533 = vsub.f32 %v909, %v890
  %v1534 = vmul.f32 %v1532, %v1533
  %v1535 = vadd.f32 %v890, %v1534
  %v1536 = vsub.f32 %v911, %v892
  %v1537 = vmul.f32 %v1532, %v1536
  %v1538 = vadd.f32 %v892, %v1537
  %v1539 = vsel %vm1501, %v909, %v301
  %v1540 = vsel %vm1525, %v1535, %v1539
  %v1541 = vsel %vm1501, %v911, %v313
  %v1542 = vsel %vm1525, %v1538, %v1541
  %v1543 = vsel %vm1501, %v1535, %v301
  %v1544 = vsel %vm1524, %v909, %v1543
  %v1545 = vsel %vm1501, %v1538, %v313
  %v1546 = vsel %vm1524, %v911, %v1545
  %vm1547 = vcmp.ge.f32.partialorder %v1229, 0.0
  %vm1548 = vmxor %vm1524, %vm1547
  %v1549 = vsub.f32 %v1223, %v1229
  %vm1550 = vcmp.ge.f32.partialorder %v1549, 0.0
  %v1551 = vmax.f32 %v1549, 1e-20
  %v1552 = vmin.f32 %v1549, -1e-20
  %v1553 = vsel %vm1550, %v1551, %v1552
  %v1554 = vrcp.pop %v1553
  %v1555 = vmul.f32 %v1223, %v1554
  %v1556 = vsub.f32 %v913, %v909
  %v1557 = vmul.f32 %v1555, %v1556
  %v1558 = vadd.f32 %v909, %v1557
  %v1559 = vsub.f32 %v915, %v911
  %v1560 = vmul.f32 %v1555, %v1559
  %v1561 = vadd.f32 %v911, %v1560
  %v1562 = vsel %vm1524, %v913, %v301
  %v1563 = vsel %vm1548, %v1558, %v1562
  %v1564 = vsel %vm1524, %v915, %v313
  %v1565 = vsel %vm1548, %v1561, %v1564
  %v1566 = vsel %vm1524, %v1558, %v301
  %v1567 = vsel %vm1547, %v913, %v1566
  %v1568 = vsel %vm1524, %v1561, %v313
  %v1569 = vsel %vm1547, %v915, %v1568
  %vm1570 = vcmp.ge.f32.partialorder %v1235, 0.0
  %vm1571 = vmxor %vm1547, %vm1570
  %v1572 = vsub.f32 %v1229, %v1235
  %vm1573 = vcmp.ge.f32.partialorder %v1572, 0.0
  %v1574 = vmax.f32 %v1572, 1e-20
  %v1575 = vmin.f32 %v1572, -1e-20
  %v1576 = vsel %vm1573, %v1574, %v1575
  %v1577 = vrcp.pop %v1576
  %v1578 = vmul.f32 %v1229, %v1577
  %v1579 = vsub.f32 %v932, %v913
  %v1580 = vmul.f32 %v1578, %v1579
  %v1581 = vadd.f32 %v913, %v1580
  %v1582 = vsub.f32 %v934, %v915
  %v1583 = vmul.f32 %v1578, %v1582
  %v1584 = vadd.f32 %v915, %v1583
  %v1585 = vsel %vm1547, %v932, %v301
  %v1586 = vsel %vm1571, %v1581, %v1585
  %v1587 = vsel %vm1547, %v934, %v313
  %v1588 = vsel %vm1571, %v1584, %v1587
  %v1589 = vsel %vm1547, %v1581, %v301
  %v1590 = vsel %vm1570, %v932, %v1589
  %v1591 = vsel %vm1547, %v1584, %v313
  %v1592 = vsel %vm1570, %v934, %v1591
  %vm1593 = vcmp.ge.f32.partialorder %v1241, 0.0
  %vm1594 = vmxor %vm1570, %vm1593
  %v1595 = vsub.f32 %v1235, %v1241
  %vm1596 = vcmp.ge.f32.partialorder %v1595, 0.0
  %v1597 = vmax.f32 %v1595, 1e-20
  %v1598 = vmin.f32 %v1595, -1e-20
  %v1599 = vsel %vm1596, %v1597, %v1598
  %v1600 = vrcp.pop %v1599
  %v1601 = vmul.f32 %v1235, %v1600
  %v1602 = vsub.f32 %v936, %v932
  %v1603 = vmul.f32 %v1601, %v1602
  %v1604 = vadd.f32 %v932, %v1603
  %v1605 = vsub.f32 %v938, %v934
  %v1606 = vmul.f32 %v1601, %v1605
  %v1607 = vadd.f32 %v934, %v1606
  %v1608 = vsel %vm1570, %v936, %v301
  %v1609 = vsel %vm1594, %v1604, %v1608
  %v1610 = vsel %vm1570, %v938, %v313
  %v1611 = vsel %vm1594, %v1607, %v1610
  %v1612 = vsel %vm1570, %v1604, %v301
  %v1613 = vsel %vm1593, %v936, %v1612
  %v1614 = vsel %vm1570, %v1607, %v313
  %v1615 = vsel %vm1593, %v938, %v1614
  %vm1616 = vcmp.ge.f32.partialorder %v1247, 0.0
  %vm1617 = vmxor %vm1593, %vm1616
  %v1618 = vsub.f32 %v1241, %v1247
  %vm1619 = vcmp.ge.f32.partialorder %v1618, 0.0
  %v1620 = vmax.f32 %v1618, 1e-20
  %v1621 = vmin.f32 %v1618, -1e-20
  %v1622 = vsel %vm1619, %v1620, %v1621
  %v1623 = vrcp.pop %v1622
  %v1624 = vmul.f32 %v1241, %v1623
  %v1625 = vsub.f32 %v955, %v936
  %v1626 = vmul.f32 %v1624, %v1625
  %v1627 = vadd.f32 %v936, %v1626
  %v1628 = vsub.f32 %v957, %v938
  %v1629 = vmul.f32 %v1624, %v1628
  %v1630 = vadd.f32 %v938, %v1629
  %v1631 = vsel %vm1593, %v955, %v301
  %v1632 = vsel %vm1617, %v1627, %v1631
  %v1633 = vsel %vm1593, %v957, %v313
  %v1634 = vsel %vm1617, %v1630, %v1633
  %v1635 = vsel %vm1593, %v1627, %v301
  %v1636 = vsel %vm1616, %v955, %v1635
  %v1637 = vsel %vm1593, %v1630, %v313
  %v1638 = vsel %vm1616, %v957, %v1637
  %vm1639 = vcmp.ge.f32.partialorder %v1253, 0.0
  %vm1640 = vmxor %vm1616, %vm1639
  %v1641 = vsub.f32 %v1247, %v1253
  %vm1642 = vcmp.ge.f32.partialorder %v1641, 0.0
  %v1643 = vmax.f32 %v1641, 1e-20
  %v1644 = vmin.f32 %v1641, -1e-20
  %v1645 = vsel %vm1642, %v1643, %v1644
  %v1646 = vrcp.pop %v1645
  %v1647 = vmul.f32 %v1247, %v1646
  %v1648 = vsub.f32 %v959, %v955
  %v1649 = vmul.f32 %v1647, %v1648
  %v1650 = vadd.f32 %v955, %v1649
  %v1651 = vsub.f32 %v961, %v957
  %v1652 = vmul.f32 %v1647, %v1651
  %v1653 = vadd.f32 %v957, %v1652
  %v1654 = vsel %vm1616, %v959, %v301
  %v1655 = vsel %vm1640, %v1650, %v1654
  %v1656 = vsel %vm1616, %v961, %v313
  %v1657 = vsel %vm1640, %v1653, %v1656
  %v1658 = vsel %vm1616, %v1650, %v301
  %v1659 = vsel %vm1639, %v959, %v1658
  %v1660 = vsel %vm1616, %v1653, %v313
  %v1661 = vsel %vm1639, %v961, %v1660
  %vm1662 = vcmp.ge.f32.partialorder %v1259, 0.0
  %vm1663 = vmxor %vm1639, %vm1662
  %v1664 = vsub.f32 %v1253, %v1259
  %vm1665 = vcmp.ge.f32.partialorder %v1664, 0.0
  %v1666 = vmax.f32 %v1664, 1e-20
  %v1667 = vmin.f32 %v1664, -1e-20
  %v1668 = vsel %vm1665, %v1666, %v1667
  %v1669 = vrcp.pop %v1668
  %v1670 = vmul.f32 %v1253, %v1669
  %v1671 = vsub.f32 %v978, %v959
  %v1672 = vmul.f32 %v1670, %v1671
  %v1673 = vadd.f32 %v959, %v1672
  %v1674 = vsub.f32 %v980, %v961
  %v1675 = vmul.f32 %v1670, %v1674
  %v1676 = vadd.f32 %v961, %v1675
  %v1677 = vsel %vm1639, %v978, %v301
  %v1678 = vsel %vm1663, %v1673, %v1677
  %v1679 = vsel %vm1639, %v980, %v313
  %v1680 = vsel %vm1663, %v1676, %v1679
  %v1681 = vsel %vm1639, %v1673, %v301
  %v1682 = vsel %vm1662, %v978, %v1681
  %v1683 = vsel %vm1639, %v1676, %v313
  %v1684 = vsel %vm1662, %v980, %v1683
  %vm1685 = vcmp.ge.f32.partialorder %v1265, 0.0
  %vm1686 = vmxor %vm1662, %vm1685
  %v1687 = vsub.f32 %v1259, %v1265
  %vm1688 = vcmp.ge.f32.partialorder %v1687, 0.0
  %v1689 = vmax.f32 %v1687, 1e-20
  %v1690 = vmin.f32 %v1687, -1e-20
  %v1691 = vsel %vm1688, %v1689, %v1690
  %v1692 = vrcp.pop %v1691
  %v1693 = vmul.f32 %v1259, %v1692
  %v1694 = vsub.f32 %v982, %v978
  %v1695 = vmul.f32 %v1693, %v1694
  %v1696 = vadd.f32 %v978, %v1695
  %v1697 = vsub.f32 %v984, %v980
  %v1698 = vmul.f32 %v1693, %v1697
  %v1699 = vadd.f32 %v980, %v1698
  %v1700 = vsel %vm1662, %v982, %v301
  %v1701 = vsel %vm1686, %v1696, %v1700
  %v1702 = vsel %vm1662, %v984, %v313
  %v1703 = vsel %vm1686, %v1699, %v1702
  %v1704 = vsel %vm1662, %v1696, %v301
  %v1705 = vsel %vm1685, %v982, %v1704
  %v1706 = vsel %vm1662, %v1699, %v313
  %v1707 = vsel %vm1685, %v984, %v1706
  %vm1708 = vcmp.ge.f32.partialorder %v1271, 0.0
  %vm1709 = vmxor %vm1685, %vm1708
  %v1710 = vsub.f32 %v1265, %v1271
  %vm1711 = vcmp.ge.f32.partialorder %v1710, 0.0
  %v1712 = vmax.f32 %v1710, 1e-20
  %v1713 = vmin.f32 %v1710, -1e-20
  %v1714 = vsel %vm1711, %v1712, %v1713
  %v1715 = vrcp.pop %v1714
  %v1716 = vmul.f32 %v1265, %v1715
  %v1717 = vsub.f32 %v1001, %v982
  %v1718 = vmul.f32 %v1716, %v1717
  %v1719 = vadd.f32 %v982, %v1718
  %v1720 = vsub.f32 %v1003, %v984
  %v1721 = vmul.f32 %v1716, %v1720
  %v1722 = vadd.f32 %v984, %v1721
  %v1723 = vsel %vm1685, %v1001, %v301
  %v1724 = vsel %vm1709, %v1719, %v1723
  %v1725 = vsel %vm1685, %v1003, %v313
  %v1726 = vsel %vm1709, %v1722, %v1725
  %v1727 = vsel %vm1685, %v1719, %v301
  %v1728 = vsel %vm1708, %v1001, %v1727
  %v1729 = vsel %vm1685, %v1722, %v313
  %v1730 = vsel %vm1708, %v1003, %v1729
  %vm1731 = vcmp.ge.f32.partialorder %v1277, 0.0
  %vm1732 = vmxor %vm1708, %vm1731
  %v1733 = vsub.f32 %v1271, %v1277
  %vm1734 = vcmp.ge.f32.partialorder %v1733, 0.0
  %v1735 = vmax.f32 %v1733, 1e-20
  %v1736 = vmin.f32 %v1733, -1e-20
  %v1737 = vsel %vm1734, %v1735, %v1736
  %v1738 = vrcp.pop %v1737
  %v1739 = vmul.f32 %v1271, %v1738
  %v1740 = vsub.f32 %v1005, %v1001
  %v1741 = vmul.f32 %v1739, %v1740
  %v1742 = vadd.f32 %v1001, %v1741
  %v1743 = vsub.f32 %v1007, %v1003
  %v1744 = vmul.f32 %v1739, %v1743
  %v1745 = vadd.f32 %v1003, %v1744
  %v1746 = vsel %vm1708, %v1005, %v301
  %v1747 = vsel %vm1732, %v1742, %v1746
  %v1748 = vsel %vm1708, %v1007, %v313
  %v1749 = vsel %vm1732, %v1745, %v1748
  %v1750 = vsel %vm1708, %v1742, %v301
  %v1751 = vsel %vm1731, %v1005, %v1750
  %v1752 = vsel %vm1708, %v1745, %v313
  %v1753 = vsel %vm1731, %v1007, %v1752
  %vm1754 = vcmp.ge.f32.partialorder %v1283, 0.0
  %vm1755 = vmxor %vm1731, %vm1754
  %v1756 = vsub.f32 %v1277, %v1283
  %vm1757 = vcmp.ge.f32.partialorder %v1756, 0.0
  %v1758 = vmax.f32 %v1756, 1e-20
  %v1759 = vmin.f32 %v1756, -1e-20
  %v1760 = vsel %vm1757, %v1758, %v1759
  %v1761 = vrcp.pop %v1760
  %v1762 = vmul.f32 %v1277, %v1761
  %v1763 = vsub.f32 %v1024, %v1005
  %v1764 = vmul.f32 %v1762, %v1763
  %v1765 = vadd.f32 %v1005, %v1764
  %v1766 = vsub.f32 %v1026, %v1007
  %v1767 = vmul.f32 %v1762, %v1766
  %v1768 = vadd.f32 %v1007, %v1767
  %v1769 = vsel %vm1731, %v1024, %v301
  %v1770 = vsel %vm1755, %v1765, %v1769
  %v1771 = vsel %vm1731, %v1026, %v313
  %v1772 = vsel %vm1755, %v1768, %v1771
  %v1773 = vsel %vm1731, %v1765, %v301
  %v1774 = vsel %vm1754, %v1024, %v1773
  %v1775 = vsel %vm1731, %v1768, %v313
  %v1776 = vsel %vm1754, %v1026, %v1775
  %vm1777 = vcmp.ge.f32.partialorder %v1289, 0.0
  %vm1778 = vmxor %vm1754, %vm1777
  %v1779 = vsub.f32 %v1283, %v1289
  %vm1780 = vcmp.ge.f32.partialorder %v1779, 0.0
  %v1781 = vmax.f32 %v1779, 1e-20
  %v1782 = vmin.f32 %v1779, -1e-20
  %v1783 = vsel %vm1780, %v1781, %v1782
  %v1784 = vrcp.pop %v1783
  %v1785 = vmul.f32 %v1283, %v1784
  %v1786 = vsub.f32 %v1028, %v1024
  %v1787 = vmul.f32 %v1785, %v1786
  %v1788 = vadd.f32 %v1024, %v1787
  %v1789 = vsub.f32 %v1030, %v1026
  %v1790 = vmul.f32 %v1785, %v1789
  %v1791 = vadd.f32 %v1026, %v1790
  %v1792 = vsel %vm1754, %v1028, %v301
  %v1793 = vsel %vm1778, %v1788, %v1792
  %v1794 = vsel %vm1754, %v1030, %v313
  %v1795 = vsel %vm1778, %v1791, %v1794
  %v1796 = vsel %vm1754, %v1788, %v301
  %v1797 = vsel %vm1777, %v1028, %v1796
  %v1798 = vsel %vm1754, %v1791, %v313
  %v1799 = vsel %vm1777, %v1030, %v1798
  %vm1800 = vcmp.ge.f32.partialorder %v1295, 0.0
  %vm1801 = vmxor %vm1777, %vm1800
  %v1802 = vsub.f32 %v1289, %v1295
  %vm1803 = vcmp.ge.f32.partialorder %v1802, 0.0
  %v1804 = vmax.f32 %v1802, 1e-20
  %v1805 = vmin.f32 %v1802, -1e-20
  %v1806 = vsel %vm1803, %v1804, %v1805
  %v1807 = vrcp.pop %v1806
  %v1808 = vmul.f32 %v1289, %v1807
  %v1809 = vsub.f32 %v1047, %v1028
  %v1810 = vmul.f32 %v1808, %v1809
  %v1811 = vadd.f32 %v1028, %v1810
  %v1812 = vsub.f32 %v1049, %v1030
  %v1813 = vmul.f32 %v1808, %v1812
  %v1814 = vadd.f32 %v1030, %v1813
  %v1815 = vsel %vm1777, %v1047, %v301
  %v1816 = vsel %vm1801, %v1811, %v1815
  %v1817 = vsel %vm1777, %v1049, %v313
  %v1818 = vsel %vm1801, %v1814, %v1817
  %v1819 = vsel %vm1777, %v1811, %v301
  %v1820 = vsel %vm1800, %v1047, %v1819
  %v1821 = vsel %vm1777, %v1814, %v313
  %v1822 = vsel %vm1800, %v1049, %v1821
  %vm1823 = vcmp.ge.f32.partialorder %v1301, 0.0
  %vm1824 = vmxor %vm1800, %vm1823
  %v1825 = vsub.f32 %v1295, %v1301
  %vm1826 = vcmp.ge.f32.partialorder %v1825, 0.0
  %v1827 = vmax.f32 %v1825, 1e-20
  %v1828 = vmin.f32 %v1825, -1e-20
  %v1829 = vsel %vm1826, %v1827, %v1828
  %v1830 = vrcp.pop %v1829
  %v1831 = vmul.f32 %v1295, %v1830
  %v1832 = vsub.f32 %v1051, %v1047
  %v1833 = vmul.f32 %v1831, %v1832
  %v1834 = vadd.f32 %v1047, %v1833
  %v1835 = vsub.f32 %v1053, %v1049
  %v1836 = vmul.f32 %v1831, %v1835
  %v1837 = vadd.f32 %v1049, %v1836
  %v1838 = vsel %vm1800, %v1051, %v301
  %v1839 = vsel %vm1824, %v1834, %v1838
  %v1840 = vsel %vm1800, %v1053, %v313
  %v1841 = vsel %vm1824, %v1837, %v1840
  %v1842 = vsel %vm1800, %v1834, %v301
  %v1843 = vsel %vm1823, %v1051, %v1842
  %v1844 = vsel %vm1800, %v1837, %v313
  %v1845 = vsel %vm1823, %v1053, %v1844
  %vm1846 = vcmp.ge.f32.partialorder %v1307, 0.0
  %vm1847 = vmxor %vm1823, %vm1846
  %v1848 = vsub.f32 %v1301, %v1307
  %vm1849 = vcmp.ge.f32.partialorder %v1848, 0.0
  %v1850 = vmax.f32 %v1848, 1e-20
  %v1851 = vmin.f32 %v1848, -1e-20
  %v1852 = vsel %vm1849, %v1850, %v1851
  %v1853 = vrcp.pop %v1852
  %v1854 = vmul.f32 %v1301, %v1853
  %v1855 = vsub.f32 %v1070, %v1051
  %v1856 = vmul.f32 %v1854, %v1855
  %v1857 = vadd.f32 %v1051, %v1856
  %v1858 = vsub.f32 %v1072, %v1053
  %v1859 = vmul.f32 %v1854, %v1858
  %v1860 = vadd.f32 %v1053, %v1859
  %v1861 = vsel %vm1823, %v1070, %v301
  %v1862 = vsel %vm1847, %v1857, %v1861
  %v1863 = vsel %vm1823, %v1072, %v313
  %v1864 = vsel %vm1847, %v1860, %v1863
  %v1865 = vsel %vm1823, %v1857, %v301
  %v1866 = vsel %vm1846, %v1070, %v1865
  %v1867 = vsel %vm1823, %v1860, %v313
  %v1868 = vsel %vm1846, %v1072, %v1867
  %vm1869 = vcmp.ge.f32.partialorder %v1313, 0.0
  %vm1870 = vmxor %vm1846, %vm1869
  %v1871 = vsub.f32 %v1307, %v1313
  %vm1872 = vcmp.ge.f32.partialorder %v1871, 0.0
  %v1873 = vmax.f32 %v1871, 1e-20
  %v1874 = vmin.f32 %v1871, -1e-20
  %v1875 = vsel %vm1872, %v1873, %v1874
  %v1876 = vrcp.pop %v1875
  %v1877 = vmul.f32 %v1307, %v1876
  %v1878 = vsub.f32 %v1074, %v1070
  %v1879 = vmul.f32 %v1877, %v1878
  %v1880 = vadd.f32 %v1070, %v1879
  %v1881 = vsub.f32 %v1076, %v1072
  %v1882 = vmul.f32 %v1877, %v1881
  %v1883 = vadd.f32 %v1072, %v1882
  %v1884 = vsel %vm1846, %v1074, %v301
  %v1885 = vsel %vm1870, %v1880, %v1884
  %v1886 = vsel %vm1846, %v1076, %v313
  %v1887 = vsel %vm1870, %v1883, %v1886
  %v1888 = vsel %vm1846, %v1880, %v301
  %v1889 = vsel %vm1869, %v1074, %v1888
  %v1890 = vsel %vm1846, %v1883, %v313
  %v1891 = vsel %vm1869, %v1076, %v1890
  %vm1892 = vcmp.ge.f32.partialorder %v1319, 0.0
  %vm1893 = vmxor %vm1869, %vm1892
  %v1894 = vsub.f32 %v1313, %v1319
  %vm1895 = vcmp.ge.f32.partialorder %v1894, 0.0
  %v1896 = vmax.f32 %v1894, 1e-20
  %v1897 = vmin.f32 %v1894, -1e-20
  %v1898 = vsel %vm1895, %v1896, %v1897
  %v1899 = vrcp.pop %v1898
  %v1900 = vmul.f32 %v1313, %v1899
  %v1901 = vsub.f32 %v1093, %v1074
  %v1902 = vmul.f32 %v1900, %v1901
  %v1903 = vadd.f32 %v1074, %v1902
  %v1904 = vsub.f32 %v1095, %v1076
  %v1905 = vmul.f32 %v1900, %v1904
  %v1906 = vadd.f32 %v1076, %v1905
  %v1907 = vsel %vm1869, %v1093, %v301
  %v1908 = vsel %vm1893, %v1903, %v1907
  %v1909 = vsel %vm1869, %v1095, %v313
  %v1910 = vsel %vm1893, %v1906, %v1909
  %v1911 = vsel %vm1869, %v1903, %v301
  %v1912 = vsel %vm1892, %v1093, %v1911
  %v1913 = vsel %vm1869, %v1906, %v313
  %v1914 = vsel %vm1892, %v1095, %v1913
  %vm1915 = vcmp.ge.f32.partialorder %v1325, 0.0
  %vm1916 = vmxor %vm1892, %vm1915
  %v1917 = vsub.f32 %v1319, %v1325
  %vm1918 = vcmp.ge.f32.partialorder %v1917, 0.0
  %v1919 = vmax.f32 %v1917, 1e-20
  %v1920 = vmin.f32 %v1917, -1e-20
  %v1921 = vsel %vm1918, %v1919, %v1920
  %v1922 = vrcp.pop %v1921
  %v1923 = vmul.f32 %v1319, %v1922
  %v1924 = vsub.f32 %v1097, %v1093
  %v1925 = vmul.f32 %v1923, %v1924
  %v1926 = vadd.f32 %v1093, %v1925
  %v1927 = vsub.f32 %v1099, %v1095
  %v1928 = vmul.f32 %v1923, %v1927
  %v1929 = vadd.f32 %v1095, %v1928
  %v1930 = vsel %vm1892, %v1097, %v301
  %v1931 = vsel %vm1916, %v1926, %v1930
  %v1932 = vsel %vm1892, %v1099, %v313
  %v1933 = vsel %vm1916, %v1929, %v1932
  %v1934 = vsel %vm1892, %v1926, %v301
  %v1935 = vsel %vm1915, %v1097, %v1934
  %v1936 = vsel %vm1892, %v1929, %v313
  %v1937 = vsel %vm1915, %v1099, %v1936
  %vm1938 = vcmp.ge.f32.partialorder %v1331, 0.0
  %vm1939 = vmxor %vm1915, %vm1938
  %v1940 = vsub.f32 %v1325, %v1331
  %vm1941 = vcmp.ge.f32.partialorder %v1940, 0.0
  %v1942 = vmax.f32 %v1940, 1e-20
  %v1943 = vmin.f32 %v1940, -1e-20
  %v1944 = vsel %vm1941, %v1942, %v1943
  %v1945 = vrcp.pop %v1944
  %v1946 = vmul.f32 %v1325, %v1945
  %v1947 = vsub.f32 %v1116, %v1097
  %v1948 = vmul.f32 %v1946, %v1947
  %v1949 = vadd.f32 %v1097, %v1948
  %v1950 = vsub.f32 %v1118, %v1099
  %v1951 = vmul.f32 %v1946, %v1950
  %v1952 = vadd.f32 %v1099, %v1951
  %v1953 = vsel %vm1915, %v1116, %v301
  %v1954 = vsel %vm1939, %v1949, %v1953
  %v1955 = vsel %vm1915, %v1118, %v313
  %v1956 = vsel %vm1939, %v1952, %v1955
  %v1957 = vsel %vm1915, %v1949, %v301
  %v1958 = vsel %vm1938, %v1116, %v1957
  %v1959 = vsel %vm1915, %v1952, %v313
  %v1960 = vsel %vm1938, %v1118, %v1959
  %vm1961 = vcmp.ge.f32.partialorder %v1337, 0.0
  %vm1962 = vmxor %vm1938, %vm1961
  %v1963 = vsub.f32 %v1331, %v1337
  %vm1964 = vcmp.ge.f32.partialorder %v1963, 0.0
  %v1965 = vmax.f32 %v1963, 1e-20
  %v1966 = vmin.f32 %v1963, -1e-20
  %v1967 = vsel %vm1964, %v1965, %v1966
  %v1968 = vrcp.pop %v1967
  %v1969 = vmul.f32 %v1331, %v1968
  %v1970 = vsub.f32 %v1120, %v1116
  %v1971 = vmul.f32 %v1969, %v1970
  %v1972 = vadd.f32 %v1116, %v1971
  %v1973 = vsub.f32 %v1122, %v1118
  %v1974 = vmul.f32 %v1969, %v1973
  %v1975 = vadd.f32 %v1118, %v1974
  %v1976 = vsel %vm1938, %v1120, %v301
  %v1977 = vsel %vm1962, %v1972, %v1976
  %v1978 = vsel %vm1938, %v1122, %v313
  %v1979 = vsel %vm1962, %v1975, %v1978
  %v1980 = vsel %vm1938, %v1972, %v301
  %v1981 = vsel %vm1961, %v1120, %v1980
  %v1982 = vsel %vm1938, %v1975, %v313
  %v1983 = vsel %vm1961, %v1122, %v1982
  %vm1984 = vcmp.ge.f32.partialorder %v1343, 0.0
  %vm1985 = vmxor %vm1961, %vm1984
  %v1986 = vsub.f32 %v1337, %v1343
  %vm1987 = vcmp.ge.f32.partialorder %v1986, 0.0
  %v1988 = vmax.f32 %v1986, 1e-20
  %v1989 = vmin.f32 %v1986, -1e-20
  %v1990 = vsel %vm1987, %v1988, %v1989
  %v1991 = vrcp.pop %v1990
  %v1992 = vmul.f32 %v1337, %v1991
  %v1993 = vsub.f32 %v1139, %v1120
  %v1994 = vmul.f32 %v1992, %v1993
  %v1995 = vadd.f32 %v1120, %v1994
  %v1996 = vsub.f32 %v1141, %v1122
  %v1997 = vmul.f32 %v1992, %v1996
  %v1998 = vadd.f32 %v1122, %v1997
  %v1999 = vsel %vm1961, %v1139, %v301
  %v2000 = vsel %vm1985, %v1995, %v1999
  %v2001 = vsel %vm1961, %v1141, %v313
  %v2002 = vsel %vm1985, %v1998, %v2001
  %v2003 = vsel %vm1961, %v1995, %v301
  %v2004 = vsel %vm1984, %v1139, %v2003
  %v2005 = vsel %vm1961, %v1998, %v313
  %v2006 = vsel %vm1984, %v1141, %v2005
  %vm2007 = vcmp.ge.f32.partialorder %v1349, 0.0
  %vm2008 = vmxor %vm1984, %vm2007
  %v2009 = vsub.f32 %v1343, %v1349
  %vm2010 = vcmp.ge.f32.partialorder %v2009, 0.0
  %v2011 = vmax.f32 %v2009, 1e-20
  %v2012 = vmin.f32 %v2009, -1e-20
  %v2013 = vsel %vm2010, %v2011, %v2012
  %v2014 = vrcp.pop %v2013
  %v2015 = vmul.f32 %v1343, %v2014
  %v2016 = vsub.f32 %v1143, %v1139
  %v2017 = vmul.f32 %v2015, %v2016
  %v2018 = vadd.f32 %v1139, %v2017
  %v2019 = vsub.f32 %v1145, %v1141
  %v2020 = vmul.f32 %v2015, %v2019
  %v2021 = vadd.f32 %v1141, %v2020
  %v2022 = vsel %vm1984, %v1143, %v301
  %v2023 = vsel %vm2008, %v2018, %v2022
  %v2024 = vsel %vm1984, %v1145, %v313
  %v2025 = vsel %vm2008, %v2021, %v2024
  %v2026 = vsel %vm1984, %v2018, %v301
  %v2027 = vsel %vm2007, %v1143, %v2026
  %v2028 = vsel %vm1984, %v2021, %v313
  %v2029 = vsel %vm2007, %v1145, %v2028
  %vm2030 = vcmp.ge.f32.partialorder %v1355, 0.0
  %vm2031 = vmxor %vm2007, %vm2030
  %v2032 = vsub.f32 %v1349, %v1355
  %vm2033 = vcmp.ge.f32.partialorder %v2032, 0.0
  %v2034 = vmax.f32 %v2032, 1e-20
  %v2035 = vmin.f32 %v2032, -1e-20
  %v2036 = vsel %vm2033, %v2034, %v2035
  %v2037 = vrcp.pop %v2036
  %v2038 = vmul.f32 %v1349, %v2037
  %v2039 = vsub.f32 %v1161, %v1143
  %v2040 = vmul.f32 %v2038, %v2039
  %v2041 = vadd.f32 %v1143, %v2040
  %v2042 = vsub.f32 %v1163, %v1145
  %v2043 = vmul.f32 %v2038, %v2042
  %v2044 = vadd.f32 %v1145, %v2043
  %v2045 = vsel %vm2007, %v1161, %v301
  %v2046 = vsel %vm2031, %v2041, %v2045
  %v2047 = vsel %vm2007, %v1163, %v313
  %v2048 = vsel %vm2031, %v2044, %v2047
  %v2049 = vsel %vm2007, %v2041, %v301
  %v2050 = vsel %vm2030, %v1161, %v2049
  %v2051 = vsel %vm2007, %v2044, %v313
  %v2052 = vsel %vm2030, %v1163, %v2051
  %vm2053 = vcmp.ge.f32.partialorder %v1361, 0.0
  %vm2054 = vmxor %vm2030, %vm2053
  %v2055 = vsub.f32 %v1355, %v1361
  %vm2056 = vcmp.ge.f32.partialorder %v2055, 0.0
  %v2057 = vmax.f32 %v2055, 1e-20
  %v2058 = vmin.f32 %v2055, -1e-20
  %v2059 = vsel %vm2056, %v2057, %v2058
  %v2060 = vrcp.pop %v2059
  %v2061 = vmul.f32 %v1355, %v2060
  %v2062 = vsub.f32 %v1165, %v1161
  %v2063 = vmul.f32 %v2061, %v2062
  %v2064 = vadd.f32 %v1161, %v2063
  %v2065 = vsub.f32 %v1167, %v1163
  %v2066 = vmul.f32 %v2061, %v2065
  %v2067 = vadd.f32 %v1163, %v2066
  %v2068 = vsel %vm2030, %v1165, %v301
  %v2069 = vsel %vm2054, %v2064, %v2068
  %v2070 = vsel %vm2030, %v1167, %v313
  %v2071 = vsel %vm2054, %v2067, %v2070
  %v2072 = vsel %vm2030, %v2064, %v301
  %v2073 = vsel %vm2053, %v1165, %v2072
  %v2074 = vsel %vm2030, %v2067, %v313
  %v2075 = vsel %vm2053, %v1167, %v2074
  %vm2076 = vmxor %vm2053, %vm1362
  %v2077 = vsub.f32 %v1361, %v1175
  %vm2078 = vcmp.ge.f32.partialorder %v2077, 0.0
  %v2079 = vmax.f32 %v2077, 1e-20
  %v2080 = vmin.f32 %v2077, -1e-20
  %v2081 = vsel %vm2078, %v2079, %v2080
  %v2082 = vrcp.pop %v2081
  %v2083 = vmul.f32 %v1361, %v2082
  %v2084 = vsub.f32 %v817, %v1165
  %v2085 = vmul.f32 %v2083, %v2084
  %v2086 = vadd.f32 %v1165, %v2085
  %v2087 = vsub.f32 %v819, %v1167
  %v2088 = vmul.f32 %v2083, %v2087
  %v2089 = vadd.f32 %v1167, %v2088
  %v2090 = vsel %vm2053, %v817, %v301
  %v2091 = vsel %vm2076, %v2086, %v2090
  %v2092 = vsel %vm2053, %v819, %v313
  %v2093 = vsel %vm2076, %v2089, %v2092
  %v2094 = vsel %vm2053, %v2086, %v301
  %v2095 = vsel %vm1362, %v817, %v2094
  %v2096 = vsel %vm2053, %v2089, %v313
  %v2097 = vsel %vm1362, %v819, %v2096
  %v2098 = vmul.f32 %v2095, %v1381
  %v2099 = vmul.f32 %v1379, %v2097
  %v2100 = vsub.f32 %v2098, %v2099
  %v2101 = vmul.f32 %v1379, %v1385
  %v2102 = vadd.f32 %v2100, %v2101
  %v2103 = vmul.f32 %v1383, %v1381
  %v2104 = vsub.f32 %v2102, %v2103
  %v2105 = vmul.f32 %v1383, %v1404
  %v2106 = vadd.f32 %v2104, %v2105
  %v2107 = vmul.f32 %v1402, %v1385
  %v2108 = vsub.f32 %v2106, %v2107
  %v2109 = vmul.f32 %v1402, %v1408
  %v2110 = vadd.f32 %v2108, %v2109
  %v2111 = vmul.f32 %v1406, %v1404
  %v2112 = vsub.f32 %v2110, %v2111
  %v2113 = vmul.f32 %v1406, %v1427
  %v2114 = vadd.f32 %v2112, %v2113
  %v2115 = vmul.f32 %v1425, %v1408
  %v2116 = vsub.f32 %v2114, %v2115
  %v2117 = vmul.f32 %v1425, %v1431
  %v2118 = vadd.f32 %v2116, %v2117
  %v2119 = vmul.f32 %v1429, %v1427
  %v2120 = vsub.f32 %v2118, %v2119
  %v2121 = vmul.f32 %v1429, %v1450
  %v2122 = vadd.f32 %v2120, %v2121
  %v2123 = vmul.f32 %v1448, %v1431
  %v2124 = vsub.f32 %v2122, %v2123
  %v2125 = vmul.f32 %v1448, %v1454
  %v2126 = vadd.f32 %v2124, %v2125
  %v2127 = vmul.f32 %v1452, %v1450
  %v2128 = vsub.f32 %v2126, %v2127
  %v2129 = vmul.f32 %v1452, %v1473
  %v2130 = vadd.f32 %v2128, %v2129
  %v2131 = vmul.f32 %v1471, %v1454
  %v2132 = vsub.f32 %v2130, %v2131
  %v2133 = vmul.f32 %v1471, %v1477
  %v2134 = vadd.f32 %v2132, %v2133
  %v2135 = vmul.f32 %v1475, %v1473
  %v2136 = vsub.f32 %v2134, %v2135
  %v2137 = vmul.f32 %v1475, %v1496
  %v2138 = vadd.f32 %v2136, %v2137
  %v2139 = vmul.f32 %v1494, %v1477
  %v2140 = vsub.f32 %v2138, %v2139
  %v2141 = vmul.f32 %v1494, %v1500
  %v2142 = vadd.f32 %v2140, %v2141
  %v2143 = vmul.f32 %v1498, %v1496
  %v2144 = vsub.f32 %v2142, %v2143
  %v2145 = vmul.f32 %v1498, %v1519
  %v2146 = vadd.f32 %v2144, %v2145
  %v2147 = vmul.f32 %v1517, %v1500
  %v2148 = vsub.f32 %v2146, %v2147
  %v2149 = vmul.f32 %v1517, %v1523
  %v2150 = vadd.f32 %v2148, %v2149
  %v2151 = vmul.f32 %v1521, %v1519
  %v2152 = vsub.f32 %v2150, %v2151
  %v2153 = vmul.f32 %v1521, %v1542
  %v2154 = vadd.f32 %v2152, %v2153
  %v2155 = vmul.f32 %v1540, %v1523
  %v2156 = vsub.f32 %v2154, %v2155
  %v2157 = vmul.f32 %v1540, %v1546
  %v2158 = vadd.f32 %v2156, %v2157
  %v2159 = vmul.f32 %v1544, %v1542
  %v2160 = vsub.f32 %v2158, %v2159
  %v2161 = vmul.f32 %v1544, %v1565
  %v2162 = vadd.f32 %v2160, %v2161
  %v2163 = vmul.f32 %v1563, %v1546
  %v2164 = vsub.f32 %v2162, %v2163
  %v2165 = vmul.f32 %v1563, %v1569
  %v2166 = vadd.f32 %v2164, %v2165
  %v2167 = vmul.f32 %v1567, %v1565
  %v2168 = vsub.f32 %v2166, %v2167
  %v2169 = vmul.f32 %v1567, %v1588
  %v2170 = vadd.f32 %v2168, %v2169
  %v2171 = vmul.f32 %v1586, %v1569
  %v2172 = vsub.f32 %v2170, %v2171
  %v2173 = vmul.f32 %v1586, %v1592
  %v2174 = vadd.f32 %v2172, %v2173
  %v2175 = vmul.f32 %v1590, %v1588
  %v2176 = vsub.f32 %v2174, %v2175
  %v2177 = vmul.f32 %v1590, %v1611
  %v2178 = vadd.f32 %v2176, %v2177
  %v2179 = vmul.f32 %v1609, %v1592
  %v2180 = vsub.f32 %v2178, %v2179
  %v2181 = vmul.f32 %v1609, %v1615
  %v2182 = vadd.f32 %v2180, %v2181
  %v2183 = vmul.f32 %v1613, %v1611
  %v2184 = vsub.f32 %v2182, %v2183
  %v2185 = vmul.f32 %v1613, %v1634
  %v2186 = vadd.f32 %v2184, %v2185
  %v2187 = vmul.f32 %v1632, %v1615
  %v2188 = vsub.f32 %v2186, %v2187
  %v2189 = vmul.f32 %v1632, %v1638
  %v2190 = vadd.f32 %v2188, %v2189
  %v2191 = vmul.f32 %v1636, %v1634
  %v2192 = vsub.f32 %v2190, %v2191
  %v2193 = vmul.f32 %v1636, %v1657
  %v2194 = vadd.f32 %v2192, %v2193
  %v2195 = vmul.f32 %v1655, %v1638
  %v2196 = vsub.f32 %v2194, %v2195
  %v2197 = vmul.f32 %v1655, %v1661
  %v2198 = vadd.f32 %v2196, %v2197
  %v2199 = vmul.f32 %v1659, %v1657
  %v2200 = vsub.f32 %v2198, %v2199
  %v2201 = vmul.f32 %v1659, %v1680
  %v2202 = vadd.f32 %v2200, %v2201
  %v2203 = vmul.f32 %v1678, %v1661
  %v2204 = vsub.f32 %v2202, %v2203
  %v2205 = vmul.f32 %v1678, %v1684
  %v2206 = vadd.f32 %v2204, %v2205
  %v2207 = vmul.f32 %v1682, %v1680
  %v2208 = vsub.f32 %v2206, %v2207
  %v2209 = vmul.f32 %v1682, %v1703
  %v2210 = vadd.f32 %v2208, %v2209
  %v2211 = vmul.f32 %v1701, %v1684
  %v2212 = vsub.f32 %v2210, %v2211
  %v2213 = vmul.f32 %v1701, %v1707
  %v2214 = vadd.f32 %v2212, %v2213
  %v2215 = vmul.f32 %v1705, %v1703
  %v2216 = vsub.f32 %v2214, %v2215
  %v2217 = vmul.f32 %v1705, %v1726
  %v2218 = vadd.f32 %v2216, %v2217
  %v2219 = vmul.f32 %v1724, %v1707
  %v2220 = vsub.f32 %v2218, %v2219
  %v2221 = vmul.f32 %v1724, %v1730
  %v2222 = vadd.f32 %v2220, %v2221
  %v2223 = vmul.f32 %v1728, %v1726
  %v2224 = vsub.f32 %v2222, %v2223
  %v2225 = vmul.f32 %v1728, %v1749
  %v2226 = vadd.f32 %v2224, %v2225
  %v2227 = vmul.f32 %v1747, %v1730
  %v2228 = vsub.f32 %v2226, %v2227
  %v2229 = vmul.f32 %v1747, %v1753
  %v2230 = vadd.f32 %v2228, %v2229
  %v2231 = vmul.f32 %v1751, %v1749
  %v2232 = vsub.f32 %v2230, %v2231
  %v2233 = vmul.f32 %v1751, %v1772
  %v2234 = vadd.f32 %v2232, %v2233
  %v2235 = vmul.f32 %v1770, %v1753
  %v2236 = vsub.f32 %v2234, %v2235
  %v2237 = vmul.f32 %v1770, %v1776
  %v2238 = vadd.f32 %v2236, %v2237
  %v2239 = vmul.f32 %v1774, %v1772
  %v2240 = vsub.f32 %v2238, %v2239
  %v2241 = vmul.f32 %v1774, %v1795
  %v2242 = vadd.f32 %v2240, %v2241
  %v2243 = vmul.f32 %v1793, %v1776
  %v2244 = vsub.f32 %v2242, %v2243
  %v2245 = vmul.f32 %v1793, %v1799
  %v2246 = vadd.f32 %v2244, %v2245
  %v2247 = vmul.f32 %v1797, %v1795
  %v2248 = vsub.f32 %v2246, %v2247
  %v2249 = vmul.f32 %v1797, %v1818
  %v2250 = vadd.f32 %v2248, %v2249
  %v2251 = vmul.f32 %v1816, %v1799
  %v2252 = vsub.f32 %v2250, %v2251
  %v2253 = vmul.f32 %v1816, %v1822
  %v2254 = vadd.f32 %v2252, %v2253
  %v2255 = vmul.f32 %v1820, %v1818
  %v2256 = vsub.f32 %v2254, %v2255
  %v2257 = vmul.f32 %v1820, %v1841
  %v2258 = vadd.f32 %v2256, %v2257
  %v2259 = vmul.f32 %v1839, %v1822
  %v2260 = vsub.f32 %v2258, %v2259
  %v2261 = vmul.f32 %v1839, %v1845
  %v2262 = vadd.f32 %v2260, %v2261
  %v2263 = vmul.f32 %v1843, %v1841
  %v2264 = vsub.f32 %v2262, %v2263
  %v2265 = vmul.f32 %v1843, %v1864
  %v2266 = vadd.f32 %v2264, %v2265
  %v2267 = vmul.f32 %v1862, %v1845
  %v2268 = vsub.f32 %v2266, %v2267
  %v2269 = vmul.f32 %v1862, %v1868
  %v2270 = vadd.f32 %v2268, %v2269
  %v2271 = vmul.f32 %v1866, %v1864
  %v2272 = vsub.f32 %v2270, %v2271
  %v2273 = vmul.f32 %v1866, %v1887
  %v2274 = vadd.f32 %v2272, %v2273
  %v2275 = vmul.f32 %v1885, %v1868
  %v2276 = vsub.f32 %v2274, %v2275
  %v2277 = vmul.f32 %v1885, %v1891
  %v2278 = vadd.f32 %v2276, %v2277
  %v2279 = vmul.f32 %v1889, %v1887
  %v2280 = vsub.f32 %v2278, %v2279
  %v2281 = vmul.f32 %v1889, %v1910
  %v2282 = vadd.f32 %v2280, %v2281
  %v2283 = vmul.f32 %v1908, %v1891
  %v2284 = vsub.f32 %v2282, %v2283
  %v2285 = vmul.f32 %v1908, %v1914
  %v2286 = vadd.f32 %v2284, %v2285
  %v2287 = vmul.f32 %v1912, %v1910
  %v2288 = vsub.f32 %v2286, %v2287
  %v2289 = vmul.f32 %v1912, %v1933
  %v2290 = vadd.f32 %v2288, %v2289
  %v2291 = vmul.f32 %v1931, %v1914
  %v2292 = vsub.f32 %v2290, %v2291
  %v2293 = vmul.f32 %v1931, %v1937
  %v2294 = vadd.f32 %v2292, %v2293
  %v2295 = vmul.f32 %v1935, %v1933
  %v2296 = vsub.f32 %v2294, %v2295
  %v2297 = vmul.f32 %v1935, %v1956
  %v2298 = vadd.f32 %v2296, %v2297
  %v2299 = vmul.f32 %v1954, %v1937
  %v2300 = vsub.f32 %v2298, %v2299
  %v2301 = vmul.f32 %v1954, %v1960
  %v2302 = vadd.f32 %v2300, %v2301
  %v2303 = vmul.f32 %v1958, %v1956
  %v2304 = vsub.f32 %v2302, %v2303
  %v2305 = vmul.f32 %v1958, %v1979
  %v2306 = vadd.f32 %v2304, %v2305
  %v2307 = vmul.f32 %v1977, %v1960
  %v2308 = vsub.f32 %v2306, %v2307
  %v2309 = vmul.f32 %v1977, %v1983
  %v2310 = vadd.f32 %v2308, %v2309
  %v2311 = vmul.f32 %v1981, %v1979
  %v2312 = vsub.f32 %v2310, %v2311
  %v2313 = vmul.f32 %v1981, %v2002
  %v2314 = vadd.f32 %v2312, %v2313
  %v2315 = vmul.f32 %v2000, %v1983
  %v2316 = vsub.f32 %v2314, %v2315
  %v2317 = vmul.f32 %v2000, %v2006
  %v2318 = vadd.f32 %v2316, %v2317
  %v2319 = vmul.f32 %v2004, %v2002
  %v2320 = vsub.f32 %v2318, %v2319
  %v2321 = vmul.f32 %v2004, %v2025
  %v2322 = vadd.f32 %v2320, %v2321
  %v2323 = vmul.f32 %v2023, %v2006
  %v2324 = vsub.f32 %v2322, %v2323
  %v2325 = vmul.f32 %v2023, %v2029
  %v2326 = vadd.f32 %v2324, %v2325
  %v2327 = vmul.f32 %v2027, %v2025
  %v2328 = vsub.f32 %v2326, %v2327
  %v2329 = vmul.f32 %v2027, %v2048
  %v2330 = vadd.f32 %v2328, %v2329
  %v2331 = vmul.f32 %v2046, %v2029
  %v2332 = vsub.f32 %v2330, %v2331
  %v2333 = vmul.f32 %v2046, %v2052
  %v2334 = vadd.f32 %v2332, %v2333
  %v2335 = vmul.f32 %v2050, %v2048
  %v2336 = vsub.f32 %v2334, %v2335
  %v2337 = vmul.f32 %v2050, %v2071
  %v2338 = vadd.f32 %v2336, %v2337
  %v2339 = vmul.f32 %v2069, %v2052
  %v2340 = vsub.f32 %v2338, %v2339
  %v2341 = vmul.f32 %v2069, %v2075
  %v2342 = vadd.f32 %v2340, %v2341
  %v2343 = vmul.f32 %v2073, %v2071
  %v2344 = vsub.f32 %v2342, %v2343
  %v2345 = vmul.f32 %v2073, %v2093
  %v2346 = vadd.f32 %v2344, %v2345
  %v2347 = vmul.f32 %v2091, %v2075
  %v2348 = vsub.f32 %v2346, %v2347
  %v2349 = vmul.f32 %v2091, %v2097
  %v2350 = vadd.f32 %v2348, %v2349
  %v2351 = vmul.f32 %v2095, %v2093
  %v2352 = vsub.f32 %v2350, %v2351
  %v2353 = vmul.f32 %v2352, 0.5
  %v2354 = vand.u32 2147483647, %v2353
  %v2355 = vadd.f32 %v330, %v347
  %v2356 = vsub.f32 %v2355, %v2354
  %v2357 = vmax.f32 %v2356, 1e-12
  %v2358 = vrcp.pop %v2357
  %v2359 = vmul.f32 %v2354, %v2358
  %2360 = vst [vmem:[%s3] sm:$0x1] %v2359
  // Predicated region
  $region10: #{iou_training.1} parent=0 // pred_check
    _
  $region11: #{iou_training.1} parent=0 // pred_check_branch
    %2362 = sbr.rel (0) target = $region13
  $region12: #{iou_training.1} parent=0 // pred_region
    _
  $region13: #{iou_training.1} parent=0 // pred_fallthru
    _
  // Predicated region
  $region14: #{iou_training.1} parent=0 // pred_check
    _
  $region15: #{iou_training.1} parent=0 // pred_check_branch
    %2364 = sbr.rel (0) target = $region17
  $region16: #{iou_training.1} parent=0 // pred_region
    _
  $region17: #{iou_training.1} parent=0 // pred_fallthru
    _
  // Predicated region
  $region18: #{iou_training.1} parent=0 // pred_check
    _
  $region19: #{iou_training.1} parent=0 // pred_check_branch
    %2366 = sbr.rel (0) target = $region21
  $region20: #{iou_training.1} parent=0 // pred_region
    _
  $region21: #{iou_training.1} parent=0 // pred_fallthru
    _
  // Predicated region
  $region22: #{iou_training.1} parent=0 // pred_check
    _
  $region23: #{iou_training.1} parent=0 // pred_check_branch
    %2368 = sbr.rel (0) target = $region25
  $region24: #{iou_training.1} parent=0 // pred_region
    _
  $region25: #{iou_training.1} parent=0 // pred_fallthru
    _

</llo_original>
